<compile_context>
chip_gen: v5e
topology: v5e:2x2
jax: 0.10.0
libtpu: 0.0.40
codegen_flags: <defaults>
</compile_context>

<pallas_src>
import math

import jax
import jax.numpy as jnp
from jax.experimental import pallas as pl
from jax.experimental.pallas import tpu as pltpu

# ---------------- model hyper-params (small test config, consistent w/ module) -----
INPUT_SIZE = 16          # input_size (# features)
HIDDEN = 32              # hidden_size (small test config)
NUM_LAYERS = 2
NUM_HEADS = 2
HEAD_DIM = HIDDEN // NUM_HEADS
FF = HIDDEN * 4          # dim_feedforward
EPS = 1e-5               # nn.LayerNorm default eps
MAX_LEN = 5000


# ---------------- in-kernel helpers ------------------------------------------------
def _layernorm(x, w, b):
    # x: (R, H), w/b: (1, H); PyTorch LayerNorm (biased variance, eps inside sqrt)
    mu = jnp.mean(x, axis=-1, keepdims=True)
    xc = x - mu
    var = jnp.mean(xc * xc, axis=-1, keepdims=True)
    return xc * jax.lax.rsqrt(var + EPS) * w + b


def transformer_kernel(x_ref, pe_ref,
                       ipw_ref, ipb_ref,
                       qw_ref, qb_ref,
                       kw_ref, kb_ref,
                       vw_ref, vb_ref,
                       ow_ref, ob_ref,
                       l1w_ref, l1b_ref,
                       l2w_ref, l2b_ref,
                       ln1w_ref, ln1b_ref,
                       ln2w_ref, ln2b_ref,
                       out_ref):
    B, T, F = x_ref.shape

    # PositionalEncoding (dropout p=0 -> identity), then flatten batch*time rows so
    # every projection runs on one (B*T, .) row slab.
    xf = (x_ref[...] + pe_ref[...]).reshape(B * T, F)

    # input projection: Linear(F, H) over all B*T rows at once
    h = jnp.dot(xf, ipw_ref[...], preferred_element_type=jnp.float32) + ipb_ref[...]

    def mha(kv_rows, q_rows, n_q, l):
        # kv_rows: (B*T, H) key/value source rows; q_rows: (B*n_q, H) query rows.
        # Per-head weight slabs: no sub-128-lane column slices, no lane concatenate;
        # 1/sqrt(HEAD_DIM) already folded into qw/qb.
        attn = ob_ref[l]                                           # (1, H) bias
        for hh in range(NUM_HEADS):                                # unrolled (2 heads)
            qh = (jnp.dot(q_rows, qw_ref[l, hh],
                          preferred_element_type=jnp.float32)
                  + qb_ref[l, hh]).reshape(B, n_q, HEAD_DIM)
            kh = (jnp.dot(kv_rows, kw_ref[l, hh],
                          preferred_element_type=jnp.float32)
                  + kb_ref[l, hh]).reshape(B, T, HEAD_DIM)
            vh = (jnp.dot(kv_rows, vw_ref[l, hh],
                          preferred_element_type=jnp.float32)
                  + vb_ref[l, hh]).reshape(B, T, HEAD_DIM)
            # batched score matmul; contracts last dims -> no explicit transpose
            s = jnp.einsum("bqd,bkd->bqk", qh, kh,
                           preferred_element_type=jnp.float32)     # (B, n_q, T)
            s = s - jnp.max(s, axis=-1, keepdims=True)
            p = jnp.exp(s)
            p = p * pl.reciprocal(jnp.sum(p, axis=-1, keepdims=True), approx=True)
            ctx = jnp.einsum("bqk,bkd->bqd", p, vh,
                             preferred_element_type=jnp.float32
                             ).reshape(B * n_q, HEAD_DIM)
            # per-head output projection slab; summing replaces the concatenate
            attn = attn + jnp.dot(ctx, ow_ref[l, hh],
                                  preferred_element_type=jnp.float32)
        return attn                                                # (B*n_q, H)

    def ffn(z, l):
        f = jnp.dot(z, l1w_ref[l], preferred_element_type=jnp.float32) + l1b_ref[l]
        f = jnp.maximum(f, 0.0)
        return jnp.dot(f, l2w_ref[l], preferred_element_type=jnp.float32) + l2b_ref[l]

    # ---- full (all-timestep) encoder layers: 0 .. NUM_LAYERS-2 ---------------------
    for l in range(NUM_LAYERS - 1):
        h = _layernorm(h + mha(h, h, T, l), ln1w_ref[l], ln1b_ref[l])
        h = _layernorm(h + ffn(h, l), ln2w_ref[l], ln2b_ref[l])

    # ---- last encoder layer: only the final timestep row is ever read (out[-1]) ----
    # q / output proj / FFN / layernorms restricted to B rows; k/v still use all T.
    l = NUM_LAYERS - 1
    h_last = h.reshape(B, T, HIDDEN)[:, T - 1:T, :].reshape(B, HIDDEN)
    h_last = _layernorm(h_last + mha(h, h_last, 1, l), ln1w_ref[l], ln1b_ref[l])
    h_last = _layernorm(h_last + ffn(h_last, l), ln2w_ref[l], ln2b_ref[l])

    out_ref[...] = h_last.reshape(B, 1, HIDDEN)                    # (B, 1, H)


# ---------------- hardware / budget helpers ----------------------------------------
def _num_tensorcores():
    """Best-effort TensorCore-per-chip count (v5e/v6e: 1, v7x: 2); defaults to 1."""
    try:
        info = pltpu.get_tpu_info()
        for attr in ("num_cores", "core_count", "tensorcore_count",
                     "num_tensorcores", "tensorcores_per_chip"):
            n = getattr(info, attr, None)
            if isinstance(n, int) and 0 < n <= 8:
                return n
    except Exception:
        pass
    try:
        if "v7" in jax.devices()[0].device_kind.lower():
            return 2
    except Exception:
        pass
    return 1


def _vmem_budget_bytes():
    try:
        cap = getattr(pltpu.get_tpu_info(), "vmem_capacity_bytes", None)
        if cap:
            return int(cap)
    except Exception:
        pass
    return 64 * 1024 * 1024   # conservative: v7x per-TC physical VMEM


def _vmem_estimate_bytes(B, T):
    """Rough upper bound on simultaneously-live f32 buffers inside one grid step."""
    rows = B * T
    act = rows * (3 * INPUT_SIZE        # input block (double-buffered) + pe-added copy
                  + 6 * HIDDEN          # h, per-head q/k/v, ctx, attn/residual temps
                  + 2 * FF)             # ffn intermediate + relu copy
    scores = 3 * NUM_HEADS * B * T * T  # s, exp(s), normalized p potentially co-live
    weights = 2 * (INPUT_SIZE * HIDDEN
                   + NUM_LAYERS * (4 * HIDDEN * HIDDEN + 2 * HIDDEN * FF)
                   + NUM_LAYERS * 8 * HIDDEN)
    return 4 * (act + scores + weights)


# ---------------- wrapper -----------------------------------------------------------
def _full_spec(arr):
    nd = arr.ndim
    return pl.BlockSpec(arr.shape, lambda i, _nd=nd: (0,) * _nd)


def transformer_forward(x, KP):
    N, T, F = x.shape
    assert F == INPUT_SIZE and N >= 1

    # Generation-aware batch block: split across 2 grid steps only when the chip has
    # 2 TensorCores (v7x); single grid step on v5e/v6e avoids per-step overhead.
    B = N // 2 if (_num_tensorcores() >= 2 and N % 2 == 0 and N >= 2) else N
    G = N // B

    est = _vmem_estimate_bytes(B, T)
    budget = _vmem_budget_bytes()
    # TODO(synk): KV-tiled online-softmax (flash-style) for long T (MAX_LEN=5000)
    # so VMEM usage becomes O(T*HIDDEN) instead of O(T^2).
    assert est <= int(0.9 * budget), (est, budget)

    pe_slice = KP["pe"][:T]                                     # (T, F)

    weights = [pe_slice,
               KP["ipw"], KP["ipb"],
               KP["qw"], KP["qb"],
               KP["kw"], KP["kb"],
               KP["vw"], KP["vb"],
               KP["ow"], KP["ob"],
               KP["l1w"], KP["l1b"],
               KP["l2w"], KP["l2b"],
               KP["ln1w"], KP["ln1b"],
               KP["ln2w"], KP["ln2b"]]

    in_specs = [pl.BlockSpec((B, T, F), lambda i: (i, 0, 0))] + \
               [_full_spec(w) for w in weights]

    y = pl.pallas_call(
        transformer_kernel,
        out_shape=jax.ShapeDtypeStruct((N, 1, HIDDEN), jnp.float32),
        grid=(G,),
        in_specs=in_specs,
        out_specs=pl.BlockSpec((B, 1, HIDDEN), lambda i: (i, 0, 0)),
        compiler_params=pltpu.CompilerParams(
            dimension_semantics=("parallel",) if G > 1 else ("arbitrary",),
            vmem_limit_bytes=int(min(budget, max(32 << 20, 2 * est))),
        ),
    )(x, *weights)
    return y[:, 0, :]                                           # (N, HIDDEN)


# ---------------- parameter / PE construction (glue, plain JAX) ---------------------
def make_positional_encoding(d_model, max_len=MAX_LEN):
    position = jnp.arange(max_len, dtype=jnp.float32)[:, None]
    div_term = jnp.exp(jnp.arange(0, d_model, 2, dtype=jnp.float32) *
                       (-math.log(10000.0) / d_model))
    pe = jnp.zeros((max_len, d_model), dtype=jnp.float32)
    pe = pe.at[:, 0::2].set(jnp.sin(position * div_term))
    pe = pe.at[:, 1::2].set(jnp.cos(position * div_term))
    return pe


def init_params(key):
    ks = jax.random.split(key, 18)
    nrm = lambda k, s, sc=0.1: jax.random.normal(k, s, dtype=jnp.float32) * sc
    L, H, F = NUM_LAYERS, HIDDEN, INPUT_SIZE
    return {
        "pe": make_positional_encoding(F),
        # all weight matrices stored (in, out) so forward is x @ W
        "ipw":  nrm(ks[0], (F, H)),        "ipb":  nrm(ks[1], (H,)),
        "qw":   nrm(ks[2], (L, H, H)),     "qb":   nrm(ks[3], (L, H)),
        "kw":   nrm(ks[4], (L, H, H)),     "kb":   nrm(ks[5], (L, H)),
        "vw":   nrm(ks[6], (L, H, H)),     "vb":   nrm(ks[7], (L, H)),
        "ow":   nrm(ks[8], (L, H, H)),     "ob":   nrm(ks[9], (L, H)),
        "l1w":  nrm(ks[10], (L, H, FF)),   "l1b":  nrm(ks[11], (L, FF)),
        "l2w":  nrm(ks[12], (L, FF, H)),   "l2b":  nrm(ks[13], (L, H)),
        "ln1w": 1.0 + nrm(ks[14], (L, H), 0.05), "ln1b": nrm(ks[15], (L, H), 0.05),
        "ln2w": 1.0 + nrm(ks[16], (L, H), 0.05), "ln2b": nrm(ks[17], (L, H), 0.05),
    }


def prepare_kernel_params(P):
    """One-time host transform: split q/k/v/out weights per head and fold the
    1/sqrt(HEAD_DIM) attention scale into the Q projection."""
    scale = 1.0 / math.sqrt(HEAD_DIM)
    L, H, D, NH = NUM_LAYERS, HIDDEN, HEAD_DIM, NUM_HEADS

    def split_w(w, s=1.0):    # (L, H, H) -> (L, NH, H, D)  (output columns head-major)
        return (w * s).reshape(L, H, NH, D).transpose(0, 2, 1, 3)

    def split_b(b, s=1.0):    # (L, H) -> (L, NH, 1, D)
        return (b * s).reshape(L, NH, 1, D)

    return {
        "pe":  P["pe"],
        "ipw": P["ipw"],                 "ipb": P["ipb"].reshape(1, H),
        "qw":  split_w(P["qw"], scale),  "qb":  split_b(P["qb"], scale),
        "kw":  split_w(P["kw"]),         "kb":  split_b(P["kb"]),
        "vw":  split_w(P["vw"]),         "vb":  split_b(P["vb"]),
        # output projection rows are head-major over ctx features: (L,H,H)->(L,NH,D,H)
        "ow":  P["ow"].reshape(L, NH, D, H), "ob": P["ob"].reshape(L, 1, H),
        "l1w": P["l1w"],                 "l1b": P["l1b"].reshape(L, 1, FF),
        "l2w": P["l2w"],                 "l2b": P["l2b"].reshape(L, 1, H),
        "ln1w": P["ln1w"].reshape(L, 1, H), "ln1b": P["ln1b"].reshape(L, 1, H),
        "ln2w": P["ln2w"].reshape(L, 1, H), "ln2b": P["ln2b"].reshape(L, 1, H),
    }


# ---------------- pure-JAX reference (for correctness check) ------------------------
def reference_forward(x, P):
    def ln(z, w, b):
        mu = jnp.mean(z, axis=-1, keepdims=True)
        zc = z - mu
        var = jnp.mean(zc * zc, axis=-1, keepdims=True)
        return zc * jax.lax.rsqrt(var + EPS) * w + b

    T = x.shape[1]
    h = x + P["pe"][:T][None]
    h = jnp.einsum("ntf,fh->nth", h, P["ipw"]) + P["ipb"]
    scale = 1.0 / math.sqrt(HEAD_DIM)
    for l in range(NUM_LAYERS):
        q = jnp.einsum("nth,hk->ntk", h, P["qw"][l]) + P["qb"][l]
        k = jnp.einsum("nth,hk->ntk", h, P["kw"][l]) + P["kb"][l]
        v = jnp.einsum("nth,hk->ntk", h, P["vw"][l]) + P["vb"][l]
        heads = []
        for hh in range(NUM_HEADS):
            sl = slice(hh * HEAD_DIM, (hh + 1) * HEAD_DIM)
            s = jnp.einsum("nqd,nkd->nqk", q[..., sl] * scale, k[..., sl])
            p = jax.nn.softmax(s, axis=-1)
            heads.append(jnp.einsum("nqk,nkd->nqd", p, v[..., sl]))
        ctx = jnp.concatenate(heads, axis=-1)
        attn = jnp.einsum("nth,hk->ntk", ctx, P["ow"][l]) + P["ob"][l]
        h = ln(h + attn, P["ln1w"][l], P["ln1b"][l])
        ff = jax.nn.relu(jnp.einsum("nth,hk->ntk", h, P["l1w"][l]) + P["l1b"][l])
        ff = jnp.einsum("ntk,kh->nth", ff, P["l2w"][l]) + P["l2b"][l]
        h = ln(h + ff, P["ln2w"][l], P["ln2b"][l])
    return h[:, -1, :]


# ---------------- main ---------------------------------------------------------------
if __name__ == "__main__":
    key = jax.random.PRNGKey(0)
    k_param, k_x = jax.random.split(key)

    N, T = 4, 8
    params = init_params(k_param)
    kparams = prepare_kernel_params(params)     # one-time host transform (amortized)
    x = jax.random.normal(k_x, (N, T, INPUT_SIZE), dtype=jnp.float32)

    out = jax.block_until_ready(transformer_forward(x, kparams))
    assert out.shape == (N, HIDDEN), out.shape

    ref = jax.block_until_ready(reference_forward(x, params))
    assert jnp.allclose(out, ref, atol=1e-2, rtol=1e-2), float(jnp.max(jnp.abs(out - ref)))

    print("KERNEL_OK")
</pallas_src>

<mosaic_0001>
module attributes {stable_mosaic.version = 11 : i64} {
  func.func @transformer_kernel(%arg0: i32, %arg1: memref<4x8x16xf32, #tpu.memory_space<vmem>>, %arg2: memref<8x16xf32, #tpu.memory_space<vmem>>, %arg3: memref<16x32xf32, #tpu.memory_space<vmem>>, %arg4: memref<1x32xf32, #tpu.memory_space<vmem>>, %arg5: memref<2x2x32x16xf32, #tpu.memory_space<vmem>>, %arg6: memref<2x2x1x16xf32, #tpu.memory_space<vmem>>, %arg7: memref<2x2x32x16xf32, #tpu.memory_space<vmem>>, %arg8: memref<2x2x1x16xf32, #tpu.memory_space<vmem>>, %arg9: memref<2x2x32x16xf32, #tpu.memory_space<vmem>>, %arg10: memref<2x2x1x16xf32, #tpu.memory_space<vmem>>, %arg11: memref<2x2x16x32xf32, #tpu.memory_space<vmem>>, %arg12: memref<2x1x32xf32, #tpu.memory_space<vmem>>, %arg13: memref<2x32x128xf32, #tpu.memory_space<vmem>>, %arg14: memref<2x1x128xf32, #tpu.memory_space<vmem>>, %arg15: memref<2x128x32xf32, #tpu.memory_space<vmem>>, %arg16: memref<2x1x32xf32, #tpu.memory_space<vmem>>, %arg17: memref<2x1x32xf32, #tpu.memory_space<vmem>>, %arg18: memref<2x1x32xf32, #tpu.memory_space<vmem>>, %arg19: memref<2x1x32xf32, #tpu.memory_space<vmem>>, %arg20: memref<2x1x32xf32, #tpu.memory_space<vmem>>, %arg21: memref<4x1x32xf32, #tpu.memory_space<vmem>>) attributes {dimension_semantics = [#tpu.dimension_semantics<arbitrary>], iteration_bounds = array<i64: 1>, scalar_prefetch = 0 : i64, scratch_operands = 0 : i64, tpu.core_type = #tpu.core_type<tc>, window_params = [{transform_indices = @transform_0, window_bounds = array<i64: 4, 8, 16>}, {pipeline_mode = #tpu.pipeline_mode<synchronous>, transform_indices = @transform_1, window_bounds = array<i64: 8, 16>}, {pipeline_mode = #tpu.pipeline_mode<synchronous>, transform_indices = @transform_2, window_bounds = array<i64: 16, 32>}, {pipeline_mode = #tpu.pipeline_mode<synchronous>, transform_indices = @transform_3, window_bounds = array<i64: 1, 32>}, {pipeline_mode = #tpu.pipeline_mode<synchronous>, transform_indices = @transform_4, window_bounds = array<i64: 2, 2, 32, 16>}, {pipeline_mode = #tpu.pipeline_mode<synchronous>, transform_indices = @transform_5, window_bounds = array<i64: 2, 2, 1, 16>}, {pipeline_mode = #tpu.pipeline_mode<synchronous>, transform_indices = @transform_6, window_bounds = array<i64: 2, 2, 32, 16>}, {pipeline_mode = #tpu.pipeline_mode<synchronous>, transform_indices = @transform_7, window_bounds = array<i64: 2, 2, 1, 16>}, {pipeline_mode = #tpu.pipeline_mode<synchronous>, transform_indices = @transform_8, window_bounds = array<i64: 2, 2, 32, 16>}, {pipeline_mode = #tpu.pipeline_mode<synchronous>, transform_indices = @transform_9, window_bounds = array<i64: 2, 2, 1, 16>}, {pipeline_mode = #tpu.pipeline_mode<synchronous>, transform_indices = @transform_10, window_bounds = array<i64: 2, 2, 16, 32>}, {pipeline_mode = #tpu.pipeline_mode<synchronous>, transform_indices = @transform_11, window_bounds = array<i64: 2, 1, 32>}, {pipeline_mode = #tpu.pipeline_mode<synchronous>, transform_indices = @transform_12, window_bounds = array<i64: 2, 32, 128>}, {pipeline_mode = #tpu.pipeline_mode<synchronous>, transform_indices = @transform_13, window_bounds = array<i64: 2, 1, 128>}, {pipeline_mode = #tpu.pipeline_mode<synchronous>, transform_indices = @transform_14, window_bounds = array<i64: 2, 128, 32>}, {pipeline_mode = #tpu.pipeline_mode<synchronous>, transform_indices = @transform_15, window_bounds = array<i64: 2, 1, 32>}, {pipeline_mode = #tpu.pipeline_mode<synchronous>, transform_indices = @transform_16, window_bounds = array<i64: 2, 1, 32>}, {pipeline_mode = #tpu.pipeline_mode<synchronous>, transform_indices = @transform_17, window_bounds = array<i64: 2, 1, 32>}, {pipeline_mode = #tpu.pipeline_mode<synchronous>, transform_indices = @transform_18, window_bounds = array<i64: 2, 1, 32>}, {pipeline_mode = #tpu.pipeline_mode<synchronous>, transform_indices = @transform_19, window_bounds = array<i64: 2, 1, 32>}, {transform_indices = @transform_20, window_bounds = array<i64: 4, 1, 32>}]} {
    %c0 = arith.constant 0 : index
    %c0_0 = arith.constant 0 : index
    %c0_1 = arith.constant 0 : index
    %0 = vector.load %arg1[%c0, %c0_0, %c0_1] : memref<4x8x16xf32, #tpu.memory_space<vmem>>, vector<4x8x16xf32>
    %c0_2 = arith.constant 0 : index
    %c0_3 = arith.constant 0 : index
    %1 = vector.load %arg2[%c0_2, %c0_3] : memref<8x16xf32, #tpu.memory_space<vmem>>, vector<8x16xf32>
    %2 = vector.shape_cast %1 : vector<8x16xf32> to vector<1x8x16xf32>
    %3 = vector.broadcast %2 : vector<1x8x16xf32> to vector<4x8x16xf32>
    %4 = arith.addf %0, %3 : vector<4x8x16xf32>
    %5 = vector.shape_cast %4 : vector<4x8x16xf32> to vector<32x16xf32>
    %c0_4 = arith.constant 0 : index
    %c0_5 = arith.constant 0 : index
    %6 = vector.load %arg3[%c0_4, %c0_5] : memref<16x32xf32, #tpu.memory_space<vmem>>, vector<16x32xf32>
    %cst = arith.constant dense<0.000000e+00> : vector<32x32xf32>
    %7 = tpu.matmul %5, %6, %cst {dimension_numbers = #tpu.dot_dimension_numbers<[1], [0], [0], [1], [0, 0, 1, 1], [], []>} : vector<32x16xf32>, vector<16x32xf32>, vector<32x32xf32> -> vector<32x32xf32>
    %c0_6 = arith.constant 0 : index
    %c0_7 = arith.constant 0 : index
    %8 = vector.load %arg4[%c0_6, %c0_7] : memref<1x32xf32, #tpu.memory_space<vmem>>, vector<1x32xf32>
    %9 = vector.broadcast %8 : vector<1x32xf32> to vector<32x32xf32>
    %10 = arith.addf %7, %9 : vector<32x32xf32>
    %c0_8 = arith.constant 0 : index
    %c0_9 = arith.constant 0 : index
    %c0_10 = arith.constant 0 : index
    %11 = vector.load %arg12[%c0_8, %c0_9, %c0_10] : memref<2x1x32xf32, #tpu.memory_space<vmem>>, vector<1x1x32xf32>
    %12 = vector.shape_cast %11 : vector<1x1x32xf32> to vector<1x32xf32>
    %c0_11 = arith.constant 0 : index
    %c0_12 = arith.constant 0 : index
    %c0_13 = arith.constant 0 : index
    %c0_14 = arith.constant 0 : index
    %13 = vector.load %arg5[%c0_11, %c0_12, %c0_13, %c0_14] : memref<2x2x32x16xf32, #tpu.memory_space<vmem>>, vector<1x1x32x16xf32>
    %14 = vector.shape_cast %13 : vector<1x1x32x16xf32> to vector<32x16xf32>
    %cst_15 = arith.constant dense<0.000000e+00> : vector<32x16xf32>
    %15 = tpu.matmul %10, %14, %cst_15 {dimension_numbers = #tpu.dot_dimension_numbers<[1], [0], [0], [1], [0, 0, 1, 1], [], []>} : vector<32x32xf32>, vector<32x16xf32>, vector<32x16xf32> -> vector<32x16xf32>
    %c0_16 = arith.constant 0 : index
    %c0_17 = arith.constant 0 : index
    %c0_18 = arith.constant 0 : index
    %c0_19 = arith.constant 0 : index
    %16 = vector.load %arg6[%c0_16, %c0_17, %c0_18, %c0_19] : memref<2x2x1x16xf32, #tpu.memory_space<vmem>>, vector<1x1x1x16xf32>
    %17 = vector.shape_cast %16 : vector<1x1x1x16xf32> to vector<1x16xf32>
    %18 = vector.broadcast %17 : vector<1x16xf32> to vector<32x16xf32>
    %19 = arith.addf %15, %18 : vector<32x16xf32>
    %20 = vector.shape_cast %19 : vector<32x16xf32> to vector<4x8x16xf32>
    %c0_20 = arith.constant 0 : index
    %c0_21 = arith.constant 0 : index
    %c0_22 = arith.constant 0 : index
    %c0_23 = arith.constant 0 : index
    %21 = vector.load %arg7[%c0_20, %c0_21, %c0_22, %c0_23] : memref<2x2x32x16xf32, #tpu.memory_space<vmem>>, vector<1x1x32x16xf32>
    %22 = vector.shape_cast %21 : vector<1x1x32x16xf32> to vector<32x16xf32>
    %cst_24 = arith.constant dense<0.000000e+00> : vector<32x16xf32>
    %23 = tpu.matmul %10, %22, %cst_24 {dimension_numbers = #tpu.dot_dimension_numbers<[1], [0], [0], [1], [0, 0, 1, 1], [], []>} : vector<32x32xf32>, vector<32x16xf32>, vector<32x16xf32> -> vector<32x16xf32>
    %c0_25 = arith.constant 0 : index
    %c0_26 = arith.constant 0 : index
    %c0_27 = arith.constant 0 : index
    %c0_28 = arith.constant 0 : index
    %24 = vector.load %arg8[%c0_25, %c0_26, %c0_27, %c0_28] : memref<2x2x1x16xf32, #tpu.memory_space<vmem>>, vector<1x1x1x16xf32>
    %25 = vector.shape_cast %24 : vector<1x1x1x16xf32> to vector<1x16xf32>
    %26 = vector.broadcast %25 : vector<1x16xf32> to vector<32x16xf32>
    %27 = arith.addf %23, %26 : vector<32x16xf32>
    %28 = vector.shape_cast %27 : vector<32x16xf32> to vector<4x8x16xf32>
    %c0_29 = arith.constant 0 : index
    %c0_30 = arith.constant 0 : index
    %c0_31 = arith.constant 0 : index
    %c0_32 = arith.constant 0 : index
    %29 = vector.load %arg9[%c0_29, %c0_30, %c0_31, %c0_32] : memref<2x2x32x16xf32, #tpu.memory_space<vmem>>, vector<1x1x32x16xf32>
    %30 = vector.shape_cast %29 : vector<1x1x32x16xf32> to vector<32x16xf32>
    %cst_33 = arith.constant dense<0.000000e+00> : vector<32x16xf32>
    %31 = tpu.matmul %10, %30, %cst_33 {dimension_numbers = #tpu.dot_dimension_numbers<[1], [0], [0], [1], [0, 0, 1, 1], [], []>} : vector<32x32xf32>, vector<32x16xf32>, vector<32x16xf32> -> vector<32x16xf32>
    %c0_34 = arith.constant 0 : index
    %c0_35 = arith.constant 0 : index
    %c0_36 = arith.constant 0 : index
    %c0_37 = arith.constant 0 : index
    %32 = vector.load %arg10[%c0_34, %c0_35, %c0_36, %c0_37] : memref<2x2x1x16xf32, #tpu.memory_space<vmem>>, vector<1x1x1x16xf32>
    %33 = vector.shape_cast %32 : vector<1x1x1x16xf32> to vector<1x16xf32>
    %34 = vector.broadcast %33 : vector<1x16xf32> to vector<32x16xf32>
    %35 = arith.addf %31, %34 : vector<32x16xf32>
    %36 = vector.shape_cast %35 : vector<32x16xf32> to vector<4x8x16xf32>
    "tpu.trace_start"() <{level = 10 : i32, message = "bqd,bkd->bqk"}> : () -> ()
    %cst_38 = arith.constant dense<0.000000e+00> : vector<4x8x8xf32>
    %37 = tpu.matmul %20, %28, %cst_38 {dimension_numbers = #tpu.dot_dimension_numbers<[2], [2], [1], [1], [0, 0, 0, 1, 1, 1], [0], [0]>} : vector<4x8x16xf32>, vector<4x8x16xf32>, vector<4x8x8xf32> -> vector<4x8x8xf32>
    "tpu.trace_stop"() : () -> ()
    %cst_39 = arith.constant dense<0xFF800000> : vector<4x8xf32>
    %38 = vector.multi_reduction <maximumf>, %37, %cst_39 [2] : vector<4x8x8xf32> to vector<4x8xf32>
    %39 = vector.shape_cast %38 : vector<4x8xf32> to vector<4x8x1xf32>
    %40 = vector.broadcast %39 : vector<4x8x1xf32> to vector<4x8x8xf32>
    %41 = arith.subf %37, %40 : vector<4x8x8xf32>
    %42 = math.exp %41 : vector<4x8x8xf32>
    %cst_40 = arith.constant dense<0.000000e+00> : vector<4x8xf32>
    %43 = vector.multi_reduction <add>, %42, %cst_40 [2] : vector<4x8x8xf32> to vector<4x8xf32>
    %44 = vector.shape_cast %43 : vector<4x8xf32> to vector<4x8x1xf32>
    %45 = tpu.reciprocal %44 {approx = true} : vector<4x8x1xf32> -> vector<4x8x1xf32>
    %46 = vector.broadcast %45 : vector<4x8x1xf32> to vector<4x8x8xf32>
    %47 = arith.mulf %42, %46 : vector<4x8x8xf32>
    "tpu.trace_start"() <{level = 10 : i32, message = "bqk,bkd->bqd"}> : () -> ()
    %cst_41 = arith.constant dense<0.000000e+00> : vector<4x8x16xf32>
    %48 = tpu.matmul %47, %36, %cst_41 {dimension_numbers = #tpu.dot_dimension_numbers<[2], [1], [1], [2], [0, 0, 0, 1, 1, 2], [0], [0]>} : vector<4x8x8xf32>, vector<4x8x16xf32>, vector<4x8x16xf32> -> vector<4x8x16xf32>
    "tpu.trace_stop"() : () -> ()
    %49 = vector.shape_cast %48 : vector<4x8x16xf32> to vector<32x16xf32>
    %c0_42 = arith.constant 0 : index
    %c0_43 = arith.constant 0 : index
    %c0_44 = arith.constant 0 : index
    %c0_45 = arith.constant 0 : index
    %50 = vector.load %arg11[%c0_42, %c0_43, %c0_44, %c0_45] : memref<2x2x16x32xf32, #tpu.memory_space<vmem>>, vector<1x1x16x32xf32>
    %51 = vector.shape_cast %50 : vector<1x1x16x32xf32> to vector<16x32xf32>
    %cst_46 = arith.constant dense<0.000000e+00> : vector<32x32xf32>
    %52 = tpu.matmul %49, %51, %cst_46 {dimension_numbers = #tpu.dot_dimension_numbers<[1], [0], [0], [1], [0, 0, 1, 1], [], []>} : vector<32x16xf32>, vector<16x32xf32>, vector<32x32xf32> -> vector<32x32xf32>
    %53 = vector.broadcast %12 : vector<1x32xf32> to vector<32x32xf32>
    %54 = arith.addf %53, %52 : vector<32x32xf32>
    %c0_47 = arith.constant 0 : index
    %c1 = arith.constant 1 : index
    %c0_48 = arith.constant 0 : index
    %c0_49 = arith.constant 0 : index
    %55 = vector.load %arg5[%c0_47, %c1, %c0_48, %c0_49] : memref<2x2x32x16xf32, #tpu.memory_space<vmem>>, vector<1x1x32x16xf32>
    %56 = vector.shape_cast %55 : vector<1x1x32x16xf32> to vector<32x16xf32>
    %cst_50 = arith.constant dense<0.000000e+00> : vector<32x16xf32>
    %57 = tpu.matmul %10, %56, %cst_50 {dimension_numbers = #tpu.dot_dimension_numbers<[1], [0], [0], [1], [0, 0, 1, 1], [], []>} : vector<32x32xf32>, vector<32x16xf32>, vector<32x16xf32> -> vector<32x16xf32>
    %c0_51 = arith.constant 0 : index
    %c1_52 = arith.constant 1 : index
    %c0_53 = arith.constant 0 : index
    %c0_54 = arith.constant 0 : index
    %58 = vector.load %arg6[%c0_51, %c1_52, %c0_53, %c0_54] : memref<2x2x1x16xf32, #tpu.memory_space<vmem>>, vector<1x1x1x16xf32>
    %59 = vector.shape_cast %58 : vector<1x1x1x16xf32> to vector<1x16xf32>
    %60 = vector.broadcast %59 : vector<1x16xf32> to vector<32x16xf32>
    %61 = arith.addf %57, %60 : vector<32x16xf32>
    %62 = vector.shape_cast %61 : vector<32x16xf32> to vector<4x8x16xf32>
    %c0_55 = arith.constant 0 : index
    %c1_56 = arith.constant 1 : index
    %c0_57 = arith.constant 0 : index
    %c0_58 = arith.constant 0 : index
    %63 = vector.load %arg7[%c0_55, %c1_56, %c0_57, %c0_58] : memref<2x2x32x16xf32, #tpu.memory_space<vmem>>, vector<1x1x32x16xf32>
    %64 = vector.shape_cast %63 : vector<1x1x32x16xf32> to vector<32x16xf32>
    %cst_59 = arith.constant dense<0.000000e+00> : vector<32x16xf32>
    %65 = tpu.matmul %10, %64, %cst_59 {dimension_numbers = #tpu.dot_dimension_numbers<[1], [0], [0], [1], [0, 0, 1, 1], [], []>} : vector<32x32xf32>, vector<32x16xf32>, vector<32x16xf32> -> vector<32x16xf32>
    %c0_60 = arith.constant 0 : index
    %c1_61 = arith.constant 1 : index
    %c0_62 = arith.constant 0 : index
    %c0_63 = arith.constant 0 : index
    %66 = vector.load %arg8[%c0_60, %c1_61, %c0_62, %c0_63] : memref<2x2x1x16xf32, #tpu.memory_space<vmem>>, vector<1x1x1x16xf32>
    %67 = vector.shape_cast %66 : vector<1x1x1x16xf32> to vector<1x16xf32>
    %68 = vector.broadcast %67 : vector<1x16xf32> to vector<32x16xf32>
    %69 = arith.addf %65, %68 : vector<32x16xf32>
    %70 = vector.shape_cast %69 : vector<32x16xf32> to vector<4x8x16xf32>
    %c0_64 = arith.constant 0 : index
    %c1_65 = arith.constant 1 : index
    %c0_66 = arith.constant 0 : index
    %c0_67 = arith.constant 0 : index
    %71 = vector.load %arg9[%c0_64, %c1_65, %c0_66, %c0_67] : memref<2x2x32x16xf32, #tpu.memory_space<vmem>>, vector<1x1x32x16xf32>
    %72 = vector.shape_cast %71 : vector<1x1x32x16xf32> to vector<32x16xf32>
    %cst_68 = arith.constant dense<0.000000e+00> : vector<32x16xf32>
    %73 = tpu.matmul %10, %72, %cst_68 {dimension_numbers = #tpu.dot_dimension_numbers<[1], [0], [0], [1], [0, 0, 1, 1], [], []>} : vector<32x32xf32>, vector<32x16xf32>, vector<32x16xf32> -> vector<32x16xf32>
    %c0_69 = arith.constant 0 : index
    %c1_70 = arith.constant 1 : index
    %c0_71 = arith.constant 0 : index
    %c0_72 = arith.constant 0 : index
    %74 = vector.load %arg10[%c0_69, %c1_70, %c0_71, %c0_72] : memref<2x2x1x16xf32, #tpu.memory_space<vmem>>, vector<1x1x1x16xf32>
    %75 = vector.shape_cast %74 : vector<1x1x1x16xf32> to vector<1x16xf32>
    %76 = vector.broadcast %75 : vector<1x16xf32> to vector<32x16xf32>
    %77 = arith.addf %73, %76 : vector<32x16xf32>
    %78 = vector.shape_cast %77 : vector<32x16xf32> to vector<4x8x16xf32>
    "tpu.trace_start"() <{level = 10 : i32, message = "bqd,bkd->bqk"}> : () -> ()
    %cst_73 = arith.constant dense<0.000000e+00> : vector<4x8x8xf32>
    %79 = tpu.matmul %62, %70, %cst_73 {dimension_numbers = #tpu.dot_dimension_numbers<[2], [2], [1], [1], [0, 0, 0, 1, 1, 1], [0], [0]>} : vector<4x8x16xf32>, vector<4x8x16xf32>, vector<4x8x8xf32> -> vector<4x8x8xf32>
    "tpu.trace_stop"() : () -> ()
    %cst_74 = arith.constant dense<0xFF800000> : vector<4x8xf32>
    %80 = vector.multi_reduction <maximumf>, %79, %cst_74 [2] : vector<4x8x8xf32> to vector<4x8xf32>
    %81 = vector.shape_cast %80 : vector<4x8xf32> to vector<4x8x1xf32>
    %82 = vector.broadcast %81 : vector<4x8x1xf32> to vector<4x8x8xf32>
    %83 = arith.subf %79, %82 : vector<4x8x8xf32>
    %84 = math.exp %83 : vector<4x8x8xf32>
    %cst_75 = arith.constant dense<0.000000e+00> : vector<4x8xf32>
    %85 = vector.multi_reduction <add>, %84, %cst_75 [2] : vector<4x8x8xf32> to vector<4x8xf32>
    %86 = vector.shape_cast %85 : vector<4x8xf32> to vector<4x8x1xf32>
    %87 = tpu.reciprocal %86 {approx = true} : vector<4x8x1xf32> -> vector<4x8x1xf32>
    %88 = vector.broadcast %87 : vector<4x8x1xf32> to vector<4x8x8xf32>
    %89 = arith.mulf %84, %88 : vector<4x8x8xf32>
    "tpu.trace_start"() <{level = 10 : i32, message = "bqk,bkd->bqd"}> : () -> ()
    %cst_76 = arith.constant dense<0.000000e+00> : vector<4x8x16xf32>
    %90 = tpu.matmul %89, %78, %cst_76 {dimension_numbers = #tpu.dot_dimension_numbers<[2], [1], [1], [2], [0, 0, 0, 1, 1, 2], [0], [0]>} : vector<4x8x8xf32>, vector<4x8x16xf32>, vector<4x8x16xf32> -> vector<4x8x16xf32>
    "tpu.trace_stop"() : () -> ()
    %91 = vector.shape_cast %90 : vector<4x8x16xf32> to vector<32x16xf32>
    %c0_77 = arith.constant 0 : index
    %c1_78 = arith.constant 1 : index
    %c0_79 = arith.constant 0 : index
    %c0_80 = arith.constant 0 : index
    %92 = vector.load %arg11[%c0_77, %c1_78, %c0_79, %c0_80] : memref<2x2x16x32xf32, #tpu.memory_space<vmem>>, vector<1x1x16x32xf32>
    %93 = vector.shape_cast %92 : vector<1x1x16x32xf32> to vector<16x32xf32>
    %cst_81 = arith.constant dense<0.000000e+00> : vector<32x32xf32>
    %94 = tpu.matmul %91, %93, %cst_81 {dimension_numbers = #tpu.dot_dimension_numbers<[1], [0], [0], [1], [0, 0, 1, 1], [], []>} : vector<32x16xf32>, vector<16x32xf32>, vector<32x32xf32> -> vector<32x32xf32>
    %95 = arith.addf %54, %94 : vector<32x32xf32>
    %96 = arith.addf %10, %95 : vector<32x32xf32>
    %c0_82 = arith.constant 0 : index
    %c0_83 = arith.constant 0 : index
    %c0_84 = arith.constant 0 : index
    %97 = vector.load %arg17[%c0_82, %c0_83, %c0_84] : memref<2x1x32xf32, #tpu.memory_space<vmem>>, vector<1x1x32xf32>
    %98 = vector.shape_cast %97 : vector<1x1x32xf32> to vector<1x32xf32>
    %c0_85 = arith.constant 0 : index
    %c0_86 = arith.constant 0 : index
    %c0_87 = arith.constant 0 : index
    %99 = vector.load %arg18[%c0_85, %c0_86, %c0_87] : memref<2x1x32xf32, #tpu.memory_space<vmem>>, vector<1x1x32xf32>
    %100 = vector.shape_cast %99 : vector<1x1x32xf32> to vector<1x32xf32>
    %cst_88 = arith.constant dense<0.000000e+00> : vector<32xf32>
    %101 = vector.multi_reduction <add>, %96, %cst_88 [1] : vector<32x32xf32> to vector<32xf32>
    %102 = vector.shape_cast %101 : vector<32xf32> to vector<32x1xf32>
    %cst_89 = arith.constant 3.200000e+01 : f32
    %103 = vector.broadcast %cst_89 : f32 to vector<32x1xf32>
    %104 = arith.divf %102, %103 : vector<32x1xf32>
    %105 = vector.broadcast %104 : vector<32x1xf32> to vector<32x32xf32>
    %106 = arith.subf %96, %105 : vector<32x32xf32>
    %107 = arith.mulf %106, %106 : vector<32x32xf32>
    %cst_90 = arith.constant dense<0.000000e+00> : vector<32xf32>
    %108 = vector.multi_reduction <add>, %107, %cst_90 [1] : vector<32x32xf32> to vector<32xf32>
    %109 = vector.shape_cast %108 : vector<32xf32> to vector<32x1xf32>
    %cst_91 = arith.constant 3.200000e+01 : f32
    %110 = vector.broadcast %cst_91 : f32 to vector<32x1xf32>
    %111 = arith.divf %109, %110 : vector<32x1xf32>
    %cst_92 = arith.constant 9.99999974E-6 : f32
    %112 = vector.broadcast %cst_92 : f32 to vector<32x1xf32>
    %113 = arith.addf %111, %112 : vector<32x1xf32>
    %114 = math.rsqrt %113 : vector<32x1xf32>
    %115 = vector.broadcast %114 : vector<32x1xf32> to vector<32x32xf32>
    %116 = arith.mulf %106, %115 : vector<32x32xf32>
    %117 = vector.broadcast %98 : vector<1x32xf32> to vector<32x32xf32>
    %118 = arith.mulf %116, %117 : vector<32x32xf32>
    %119 = vector.broadcast %100 : vector<1x32xf32> to vector<32x32xf32>
    %120 = arith.addf %118, %119 : vector<32x32xf32>
    %c0_93 = arith.constant 0 : index
    %c0_94 = arith.constant 0 : index
    %c0_95 = arith.constant 0 : index
    %121 = vector.load %arg13[%c0_93, %c0_94, %c0_95] : memref<2x32x128xf32, #tpu.memory_space<vmem>>, vector<1x32x128xf32>
    %122 = vector.shape_cast %121 : vector<1x32x128xf32> to vector<32x128xf32>
    %cst_96 = arith.constant dense<0.000000e+00> : vector<32x128xf32>
    %123 = tpu.matmul %120, %122, %cst_96 {dimension_numbers = #tpu.dot_dimension_numbers<[1], [0], [0], [1], [0, 0, 1, 1], [], []>} : vector<32x32xf32>, vector<32x128xf32>, vector<32x128xf32> -> vector<32x128xf32>
    %c0_97 = arith.constant 0 : index
    %c0_98 = arith.constant 0 : index
    %c0_99 = arith.constant 0 : index
    %124 = vector.load %arg14[%c0_97, %c0_98, %c0_99] : memref<2x1x128xf32, #tpu.memory_space<vmem>>, vector<1x1x128xf32>
    %125 = vector.shape_cast %124 : vector<1x1x128xf32> to vector<1x128xf32>
    %126 = vector.broadcast %125 : vector<1x128xf32> to vector<32x128xf32>
    %127 = arith.addf %123, %126 : vector<32x128xf32>
    %cst_100 = arith.constant 0.000000e+00 : f32
    %128 = vector.broadcast %cst_100 : f32 to vector<32x128xf32>
    %129 = arith.maximumf %127, %128 : vector<32x128xf32>
    %c0_101 = arith.constant 0 : index
    %c0_102 = arith.constant 0 : index
    %c0_103 = arith.constant 0 : index
    %130 = vector.load %arg15[%c0_101, %c0_102, %c0_103] : memref<2x128x32xf32, #tpu.memory_space<vmem>>, vector<1x128x32xf32>
    %131 = vector.shape_cast %130 : vector<1x128x32xf32> to vector<128x32xf32>
    %cst_104 = arith.constant dense<0.000000e+00> : vector<32x32xf32>
    %132 = tpu.matmul %129, %131, %cst_104 {dimension_numbers = #tpu.dot_dimension_numbers<[1], [0], [0], [1], [0, 0, 1, 1], [], []>} : vector<32x128xf32>, vector<128x32xf32>, vector<32x32xf32> -> vector<32x32xf32>
    %c0_105 = arith.constant 0 : index
    %c0_106 = arith.constant 0 : index
    %c0_107 = arith.constant 0 : index
    %133 = vector.load %arg16[%c0_105, %c0_106, %c0_107] : memref<2x1x32xf32, #tpu.memory_space<vmem>>, vector<1x1x32xf32>
    %134 = vector.shape_cast %133 : vector<1x1x32xf32> to vector<1x32xf32>
    %135 = vector.broadcast %134 : vector<1x32xf32> to vector<32x32xf32>
    %136 = arith.addf %132, %135 : vector<32x32xf32>
    %137 = arith.addf %120, %136 : vector<32x32xf32>
    %c0_108 = arith.constant 0 : index
    %c0_109 = arith.constant 0 : index
    %c0_110 = arith.constant 0 : index
    %138 = vector.load %arg19[%c0_108, %c0_109, %c0_110] : memref<2x1x32xf32, #tpu.memory_space<vmem>>, vector<1x1x32xf32>
    %139 = vector.shape_cast %138 : vector<1x1x32xf32> to vector<1x32xf32>
    %c0_111 = arith.constant 0 : index
    %c0_112 = arith.constant 0 : index
    %c0_113 = arith.constant 0 : index
    %140 = vector.load %arg20[%c0_111, %c0_112, %c0_113] : memref<2x1x32xf32, #tpu.memory_space<vmem>>, vector<1x1x32xf32>
    %141 = vector.shape_cast %140 : vector<1x1x32xf32> to vector<1x32xf32>
    %cst_114 = arith.constant dense<0.000000e+00> : vector<32xf32>
    %142 = vector.multi_reduction <add>, %137, %cst_114 [1] : vector<32x32xf32> to vector<32xf32>
    %143 = vector.shape_cast %142 : vector<32xf32> to vector<32x1xf32>
    %cst_115 = arith.constant 3.200000e+01 : f32
    %144 = vector.broadcast %cst_115 : f32 to vector<32x1xf32>
    %145 = arith.divf %143, %144 : vector<32x1xf32>
    %146 = vector.broadcast %145 : vector<32x1xf32> to vector<32x32xf32>
    %147 = arith.subf %137, %146 : vector<32x32xf32>
    %148 = arith.mulf %147, %147 : vector<32x32xf32>
    %cst_116 = arith.constant dense<0.000000e+00> : vector<32xf32>
    %149 = vector.multi_reduction <add>, %148, %cst_116 [1] : vector<32x32xf32> to vector<32xf32>
    %150 = vector.shape_cast %149 : vector<32xf32> to vector<32x1xf32>
    %cst_117 = arith.constant 3.200000e+01 : f32
    %151 = vector.broadcast %cst_117 : f32 to vector<32x1xf32>
    %152 = arith.divf %150, %151 : vector<32x1xf32>
    %cst_118 = arith.constant 9.99999974E-6 : f32
    %153 = vector.broadcast %cst_118 : f32 to vector<32x1xf32>
    %154 = arith.addf %152, %153 : vector<32x1xf32>
    %155 = math.rsqrt %154 : vector<32x1xf32>
    %156 = vector.broadcast %155 : vector<32x1xf32> to vector<32x32xf32>
    %157 = arith.mulf %147, %156 : vector<32x32xf32>
    %158 = vector.broadcast %139 : vector<1x32xf32> to vector<32x32xf32>
    %159 = arith.mulf %157, %158 : vector<32x32xf32>
    %160 = vector.broadcast %141 : vector<1x32xf32> to vector<32x32xf32>
    %161 = arith.addf %159, %160 : vector<32x32xf32>
    %162 = vector.shape_cast %161 : vector<32x32xf32> to vector<4x8x32xf32>
    %163 = vector.extract_strided_slice %162 {offsets = [0, 7, 0], sizes = [4, 1, 32], strides = [1, 1, 1]} : vector<4x8x32xf32> to vector<4x1x32xf32>
    %164 = vector.shape_cast %163 : vector<4x1x32xf32> to vector<4x32xf32>
    %c1_119 = arith.constant 1 : index
    %c0_120 = arith.constant 0 : index
    %c0_121 = arith.constant 0 : index
    %165 = vector.load %arg12[%c1_119, %c0_120, %c0_121] : memref<2x1x32xf32, #tpu.memory_space<vmem>>, vector<1x1x32xf32>
    %166 = vector.shape_cast %165 : vector<1x1x32xf32> to vector<1x32xf32>
    %c1_122 = arith.constant 1 : index
    %c0_123 = arith.constant 0 : index
    %c0_124 = arith.constant 0 : index
    %c0_125 = arith.constant 0 : index
    %167 = vector.load %arg5[%c1_122, %c0_123, %c0_124, %c0_125] : memref<2x2x32x16xf32, #tpu.memory_space<vmem>>, vector<1x1x32x16xf32>
    %168 = vector.shape_cast %167 : vector<1x1x32x16xf32> to vector<32x16xf32>
    %cst_126 = arith.constant dense<0.000000e+00> : vector<4x16xf32>
    %169 = tpu.matmul %164, %168, %cst_126 {dimension_numbers = #tpu.dot_dimension_numbers<[1], [0], [0], [1], [0, 0, 1, 1], [], []>} : vector<4x32xf32>, vector<32x16xf32>, vector<4x16xf32> -> vector<4x16xf32>
    %c1_127 = arith.constant 1 : index
    %c0_128 = arith.constant 0 : index
    %c0_129 = arith.constant 0 : index
    %c0_130 = arith.constant 0 : index
    %170 = vector.load %arg6[%c1_127, %c0_128, %c0_129, %c0_130] : memref<2x2x1x16xf32, #tpu.memory_space<vmem>>, vector<1x1x1x16xf32>
    %171 = vector.shape_cast %170 : vector<1x1x1x16xf32> to vector<1x16xf32>
    %172 = vector.broadcast %171 : vector<1x16xf32> to vector<4x16xf32>
    %173 = arith.addf %169, %172 : vector<4x16xf32>
    %174 = vector.shape_cast %173 : vector<4x16xf32> to vector<4x1x16xf32>
    %c1_131 = arith.constant 1 : index
    %c0_132 = arith.constant 0 : index
    %c0_133 = arith.constant 0 : index
    %c0_134 = arith.constant 0 : index
    %175 = vector.load %arg7[%c1_131, %c0_132, %c0_133, %c0_134] : memref<2x2x32x16xf32, #tpu.memory_space<vmem>>, vector<1x1x32x16xf32>
    %176 = vector.shape_cast %175 : vector<1x1x32x16xf32> to vector<32x16xf32>
    %cst_135 = arith.constant dense<0.000000e+00> : vector<32x16xf32>
    %177 = tpu.matmul %161, %176, %cst_135 {dimension_numbers = #tpu.dot_dimension_numbers<[1], [0], [0], [1], [0, 0, 1, 1], [], []>} : vector<32x32xf32>, vector<32x16xf32>, vector<32x16xf32> -> vector<32x16xf32>
    %c1_136 = arith.constant 1 : index
    %c0_137 = arith.constant 0 : index
    %c0_138 = arith.constant 0 : index
    %c0_139 = arith.constant 0 : index
    %178 = vector.load %arg8[%c1_136, %c0_137, %c0_138, %c0_139] : memref<2x2x1x16xf32, #tpu.memory_space<vmem>>, vector<1x1x1x16xf32>
    %179 = vector.shape_cast %178 : vector<1x1x1x16xf32> to vector<1x16xf32>
    %180 = vector.broadcast %179 : vector<1x16xf32> to vector<32x16xf32>
    %181 = arith.addf %177, %180 : vector<32x16xf32>
    %182 = vector.shape_cast %181 : vector<32x16xf32> to vector<4x8x16xf32>
    %c1_140 = arith.constant 1 : index
    %c0_141 = arith.constant 0 : index
    %c0_142 = arith.constant 0 : index
    %c0_143 = arith.constant 0 : index
    %183 = vector.load %arg9[%c1_140, %c0_141, %c0_142, %c0_143] : memref<2x2x32x16xf32, #tpu.memory_space<vmem>>, vector<1x1x32x16xf32>
    %184 = vector.shape_cast %183 : vector<1x1x32x16xf32> to vector<32x16xf32>
    %cst_144 = arith.constant dense<0.000000e+00> : vector<32x16xf32>
    %185 = tpu.matmul %161, %184, %cst_144 {dimension_numbers = #tpu.dot_dimension_numbers<[1], [0], [0], [1], [0, 0, 1, 1], [], []>} : vector<32x32xf32>, vector<32x16xf32>, vector<32x16xf32> -> vector<32x16xf32>
    %c1_145 = arith.constant 1 : index
    %c0_146 = arith.constant 0 : index
    %c0_147 = arith.constant 0 : index
    %c0_148 = arith.constant 0 : index
    %186 = vector.load %arg10[%c1_145, %c0_146, %c0_147, %c0_148] : memref<2x2x1x16xf32, #tpu.memory_space<vmem>>, vector<1x1x1x16xf32>
    %187 = vector.shape_cast %186 : vector<1x1x1x16xf32> to vector<1x16xf32>
    %188 = vector.broadcast %187 : vector<1x16xf32> to vector<32x16xf32>
    %189 = arith.addf %185, %188 : vector<32x16xf32>
    %190 = vector.shape_cast %189 : vector<32x16xf32> to vector<4x8x16xf32>
    "tpu.trace_start"() <{level = 10 : i32, message = "bqd,bkd->bqk"}> : () -> ()
    %cst_149 = arith.constant dense<0.000000e+00> : vector<4x1x8xf32>
    %191 = tpu.matmul %174, %182, %cst_149 {dimension_numbers = #tpu.dot_dimension_numbers<[2], [2], [1], [1], [0, 0, 0, 1, 1, 1], [0], [0]>} : vector<4x1x16xf32>, vector<4x8x16xf32>, vector<4x1x8xf32> -> vector<4x1x8xf32>
    "tpu.trace_stop"() : () -> ()
    %cst_150 = arith.constant dense<0xFF800000> : vector<4x1xf32>
    %192 = vector.multi_reduction <maximumf>, %191, %cst_150 [2] : vector<4x1x8xf32> to vector<4x1xf32>
    %193 = vector.shape_cast %192 : vector<4x1xf32> to vector<4x1x1xf32>
    %194 = vector.broadcast %193 : vector<4x1x1xf32> to vector<4x1x8xf32>
    %195 = arith.subf %191, %194 : vector<4x1x8xf32>
    %196 = math.exp %195 : vector<4x1x8xf32>
    %cst_151 = arith.constant dense<0.000000e+00> : vector<4x1xf32>
    %197 = vector.multi_reduction <add>, %196, %cst_151 [2] : vector<4x1x8xf32> to vector<4x1xf32>
    %198 = vector.shape_cast %197 : vector<4x1xf32> to vector<4x1x1xf32>
    %199 = tpu.reciprocal %198 {approx = true} : vector<4x1x1xf32> -> vector<4x1x1xf32>
    %200 = vector.broadcast %199 : vector<4x1x1xf32> to vector<4x1x8xf32>
    %201 = arith.mulf %196, %200 : vector<4x1x8xf32>
    "tpu.trace_start"() <{level = 10 : i32, message = "bqk,bkd->bqd"}> : () -> ()
    %cst_152 = arith.constant dense<0.000000e+00> : vector<4x1x16xf32>
    %202 = tpu.matmul %201, %190, %cst_152 {dimension_numbers = #tpu.dot_dimension_numbers<[2], [1], [1], [2], [0, 0, 0, 1, 1, 2], [0], [0]>} : vector<4x1x8xf32>, vector<4x8x16xf32>, vector<4x1x16xf32> -> vector<4x1x16xf32>
    "tpu.trace_stop"() : () -> ()
    %203 = vector.shape_cast %202 : vector<4x1x16xf32> to vector<4x16xf32>
    %c1_153 = arith.constant 1 : index
    %c0_154 = arith.constant 0 : index
    %c0_155 = arith.constant 0 : index
    %c0_156 = arith.constant 0 : index
    %204 = vector.load %arg11[%c1_153, %c0_154, %c0_155, %c0_156] : memref<2x2x16x32xf32, #tpu.memory_space<vmem>>, vector<1x1x16x32xf32>
    %205 = vector.shape_cast %204 : vector<1x1x16x32xf32> to vector<16x32xf32>
    %cst_157 = arith.constant dense<0.000000e+00> : vector<4x32xf32>
    %206 = tpu.matmul %203, %205, %cst_157 {dimension_numbers = #tpu.dot_dimension_numbers<[1], [0], [0], [1], [0, 0, 1, 1], [], []>} : vector<4x16xf32>, vector<16x32xf32>, vector<4x32xf32> -> vector<4x32xf32>
    %207 = vector.broadcast %166 : vector<1x32xf32> to vector<4x32xf32>
    %208 = arith.addf %207, %206 : vector<4x32xf32>
    %c1_158 = arith.constant 1 : index
    %c1_159 = arith.constant 1 : index
    %c0_160 = arith.constant 0 : index
    %c0_161 = arith.constant 0 : index
    %209 = vector.load %arg5[%c1_158, %c1_159, %c0_160, %c0_161] : memref<2x2x32x16xf32, #tpu.memory_space<vmem>>, vector<1x1x32x16xf32>
    %210 = vector.shape_cast %209 : vector<1x1x32x16xf32> to vector<32x16xf32>
    %cst_162 = arith.constant dense<0.000000e+00> : vector<4x16xf32>
    %211 = tpu.matmul %164, %210, %cst_162 {dimension_numbers = #tpu.dot_dimension_numbers<[1], [0], [0], [1], [0, 0, 1, 1], [], []>} : vector<4x32xf32>, vector<32x16xf32>, vector<4x16xf32> -> vector<4x16xf32>
    %c1_163 = arith.constant 1 : index
    %c1_164 = arith.constant 1 : index
    %c0_165 = arith.constant 0 : index
    %c0_166 = arith.constant 0 : index
    %212 = vector.load %arg6[%c1_163, %c1_164, %c0_165, %c0_166] : memref<2x2x1x16xf32, #tpu.memory_space<vmem>>, vector<1x1x1x16xf32>
    %213 = vector.shape_cast %212 : vector<1x1x1x16xf32> to vector<1x16xf32>
    %214 = vector.broadcast %213 : vector<1x16xf32> to vector<4x16xf32>
    %215 = arith.addf %211, %214 : vector<4x16xf32>
    %216 = vector.shape_cast %215 : vector<4x16xf32> to vector<4x1x16xf32>
    %c1_167 = arith.constant 1 : index
    %c1_168 = arith.constant 1 : index
    %c0_169 = arith.constant 0 : index
    %c0_170 = arith.constant 0 : index
    %217 = vector.load %arg7[%c1_167, %c1_168, %c0_169, %c0_170] : memref<2x2x32x16xf32, #tpu.memory_space<vmem>>, vector<1x1x32x16xf32>
    %218 = vector.shape_cast %217 : vector<1x1x32x16xf32> to vector<32x16xf32>
    %cst_171 = arith.constant dense<0.000000e+00> : vector<32x16xf32>
    %219 = tpu.matmul %161, %218, %cst_171 {dimension_numbers = #tpu.dot_dimension_numbers<[1], [0], [0], [1], [0, 0, 1, 1], [], []>} : vector<32x32xf32>, vector<32x16xf32>, vector<32x16xf32> -> vector<32x16xf32>
    %c1_172 = arith.constant 1 : index
    %c1_173 = arith.constant 1 : index
    %c0_174 = arith.constant 0 : index
    %c0_175 = arith.constant 0 : index
    %220 = vector.load %arg8[%c1_172, %c1_173, %c0_174, %c0_175] : memref<2x2x1x16xf32, #tpu.memory_space<vmem>>, vector<1x1x1x16xf32>
    %221 = vector.shape_cast %220 : vector<1x1x1x16xf32> to vector<1x16xf32>
    %222 = vector.broadcast %221 : vector<1x16xf32> to vector<32x16xf32>
    %223 = arith.addf %219, %222 : vector<32x16xf32>
    %224 = vector.shape_cast %223 : vector<32x16xf32> to vector<4x8x16xf32>
    %c1_176 = arith.constant 1 : index
    %c1_177 = arith.constant 1 : index
    %c0_178 = arith.constant 0 : index
    %c0_179 = arith.constant 0 : index
    %225 = vector.load %arg9[%c1_176, %c1_177, %c0_178, %c0_179] : memref<2x2x32x16xf32, #tpu.memory_space<vmem>>, vector<1x1x32x16xf32>
    %226 = vector.shape_cast %225 : vector<1x1x32x16xf32> to vector<32x16xf32>
    %cst_180 = arith.constant dense<0.000000e+00> : vector<32x16xf32>
    %227 = tpu.matmul %161, %226, %cst_180 {dimension_numbers = #tpu.dot_dimension_numbers<[1], [0], [0], [1], [0, 0, 1, 1], [], []>} : vector<32x32xf32>, vector<32x16xf32>, vector<32x16xf32> -> vector<32x16xf32>
    %c1_181 = arith.constant 1 : index
    %c1_182 = arith.constant 1 : index
    %c0_183 = arith.constant 0 : index
    %c0_184 = arith.constant 0 : index
    %228 = vector.load %arg10[%c1_181, %c1_182, %c0_183, %c0_184] : memref<2x2x1x16xf32, #tpu.memory_space<vmem>>, vector<1x1x1x16xf32>
    %229 = vector.shape_cast %228 : vector<1x1x1x16xf32> to vector<1x16xf32>
    %230 = vector.broadcast %229 : vector<1x16xf32> to vector<32x16xf32>
    %231 = arith.addf %227, %230 : vector<32x16xf32>
    %232 = vector.shape_cast %231 : vector<32x16xf32> to vector<4x8x16xf32>
    "tpu.trace_start"() <{level = 10 : i32, message = "bqd,bkd->bqk"}> : () -> ()
    %cst_185 = arith.constant dense<0.000000e+00> : vector<4x1x8xf32>
    %233 = tpu.matmul %216, %224, %cst_185 {dimension_numbers = #tpu.dot_dimension_numbers<[2], [2], [1], [1], [0, 0, 0, 1, 1, 1], [0], [0]>} : vector<4x1x16xf32>, vector<4x8x16xf32>, vector<4x1x8xf32> -> vector<4x1x8xf32>
    "tpu.trace_stop"() : () -> ()
    %cst_186 = arith.constant dense<0xFF800000> : vector<4x1xf32>
    %234 = vector.multi_reduction <maximumf>, %233, %cst_186 [2] : vector<4x1x8xf32> to vector<4x1xf32>
    %235 = vector.shape_cast %234 : vector<4x1xf32> to vector<4x1x1xf32>
    %236 = vector.broadcast %235 : vector<4x1x1xf32> to vector<4x1x8xf32>
    %237 = arith.subf %233, %236 : vector<4x1x8xf32>
    %238 = math.exp %237 : vector<4x1x8xf32>
    %cst_187 = arith.constant dense<0.000000e+00> : vector<4x1xf32>
    %239 = vector.multi_reduction <add>, %238, %cst_187 [2] : vector<4x1x8xf32> to vector<4x1xf32>
    %240 = vector.shape_cast %239 : vector<4x1xf32> to vector<4x1x1xf32>
    %241 = tpu.reciprocal %240 {approx = true} : vector<4x1x1xf32> -> vector<4x1x1xf32>
    %242 = vector.broadcast %241 : vector<4x1x1xf32> to vector<4x1x8xf32>
    %243 = arith.mulf %238, %242 : vector<4x1x8xf32>
    "tpu.trace_start"() <{level = 10 : i32, message = "bqk,bkd->bqd"}> : () -> ()
    %cst_188 = arith.constant dense<0.000000e+00> : vector<4x1x16xf32>
    %244 = tpu.matmul %243, %232, %cst_188 {dimension_numbers = #tpu.dot_dimension_numbers<[2], [1], [1], [2], [0, 0, 0, 1, 1, 2], [0], [0]>} : vector<4x1x8xf32>, vector<4x8x16xf32>, vector<4x1x16xf32> -> vector<4x1x16xf32>
    "tpu.trace_stop"() : () -> ()
    %245 = vector.shape_cast %244 : vector<4x1x16xf32> to vector<4x16xf32>
    %c1_189 = arith.constant 1 : index
    %c1_190 = arith.constant 1 : index
    %c0_191 = arith.constant 0 : index
    %c0_192 = arith.constant 0 : index
    %246 = vector.load %arg11[%c1_189, %c1_190, %c0_191, %c0_192] : memref<2x2x16x32xf32, #tpu.memory_space<vmem>>, vector<1x1x16x32xf32>
    %247 = vector.shape_cast %246 : vector<1x1x16x32xf32> to vector<16x32xf32>
    %cst_193 = arith.constant dense<0.000000e+00> : vector<4x32xf32>
    %248 = tpu.matmul %245, %247, %cst_193 {dimension_numbers = #tpu.dot_dimension_numbers<[1], [0], [0], [1], [0, 0, 1, 1], [], []>} : vector<4x16xf32>, vector<16x32xf32>, vector<4x32xf32> -> vector<4x32xf32>
    %249 = arith.addf %208, %248 : vector<4x32xf32>
    %250 = arith.addf %164, %249 : vector<4x32xf32>
    %c1_194 = arith.constant 1 : index
    %c0_195 = arith.constant 0 : index
    %c0_196 = arith.constant 0 : index
    %251 = vector.load %arg17[%c1_194, %c0_195, %c0_196] : memref<2x1x32xf32, #tpu.memory_space<vmem>>, vector<1x1x32xf32>
    %252 = vector.shape_cast %251 : vector<1x1x32xf32> to vector<1x32xf32>
    %c1_197 = arith.constant 1 : index
    %c0_198 = arith.constant 0 : index
    %c0_199 = arith.constant 0 : index
    %253 = vector.load %arg18[%c1_197, %c0_198, %c0_199] : memref<2x1x32xf32, #tpu.memory_space<vmem>>, vector<1x1x32xf32>
    %254 = vector.shape_cast %253 : vector<1x1x32xf32> to vector<1x32xf32>
    %cst_200 = arith.constant dense<0.000000e+00> : vector<4xf32>
    %255 = vector.multi_reduction <add>, %250, %cst_200 [1] : vector<4x32xf32> to vector<4xf32>
    %256 = vector.shape_cast %255 : vector<4xf32> to vector<4x1xf32>
    %cst_201 = arith.constant 3.200000e+01 : f32
    %257 = vector.broadcast %cst_201 : f32 to vector<4x1xf32>
    %258 = arith.divf %256, %257 : vector<4x1xf32>
    %259 = vector.broadcast %258 : vector<4x1xf32> to vector<4x32xf32>
    %260 = arith.subf %250, %259 : vector<4x32xf32>
    %261 = arith.mulf %260, %260 : vector<4x32xf32>
    %cst_202 = arith.constant dense<0.000000e+00> : vector<4xf32>
    %262 = vector.multi_reduction <add>, %261, %cst_202 [1] : vector<4x32xf32> to vector<4xf32>
    %263 = vector.shape_cast %262 : vector<4xf32> to vector<4x1xf32>
    %cst_203 = arith.constant 3.200000e+01 : f32
    %264 = vector.broadcast %cst_203 : f32 to vector<4x1xf32>
    %265 = arith.divf %263, %264 : vector<4x1xf32>
    %cst_204 = arith.constant 9.99999974E-6 : f32
    %266 = vector.broadcast %cst_204 : f32 to vector<4x1xf32>
    %267 = arith.addf %265, %266 : vector<4x1xf32>
    %268 = math.rsqrt %267 : vector<4x1xf32>
    %269 = vector.broadcast %268 : vector<4x1xf32> to vector<4x32xf32>
    %270 = arith.mulf %260, %269 : vector<4x32xf32>
    %271 = vector.broadcast %252 : vector<1x32xf32> to vector<4x32xf32>
    %272 = arith.mulf %270, %271 : vector<4x32xf32>
    %273 = vector.broadcast %254 : vector<1x32xf32> to vector<4x32xf32>
    %274 = arith.addf %272, %273 : vector<4x32xf32>
    %c1_205 = arith.constant 1 : index
    %c0_206 = arith.constant 0 : index
    %c0_207 = arith.constant 0 : index
    %275 = vector.load %arg13[%c1_205, %c0_206, %c0_207] : memref<2x32x128xf32, #tpu.memory_space<vmem>>, vector<1x32x128xf32>
    %276 = vector.shape_cast %275 : vector<1x32x128xf32> to vector<32x128xf32>
    %cst_208 = arith.constant dense<0.000000e+00> : vector<4x128xf32>
    %277 = tpu.matmul %274, %276, %cst_208 {dimension_numbers = #tpu.dot_dimension_numbers<[1], [0], [0], [1], [0, 0, 1, 1], [], []>} : vector<4x32xf32>, vector<32x128xf32>, vector<4x128xf32> -> vector<4x128xf32>
    %c1_209 = arith.constant 1 : index
    %c0_210 = arith.constant 0 : index
    %c0_211 = arith.constant 0 : index
    %278 = vector.load %arg14[%c1_209, %c0_210, %c0_211] : memref<2x1x128xf32, #tpu.memory_space<vmem>>, vector<1x1x128xf32>
    %279 = vector.shape_cast %278 : vector<1x1x128xf32> to vector<1x128xf32>
    %280 = vector.broadcast %279 : vector<1x128xf32> to vector<4x128xf32>
    %281 = arith.addf %277, %280 : vector<4x128xf32>
    %cst_212 = arith.constant 0.000000e+00 : f32
    %282 = vector.broadcast %cst_212 : f32 to vector<4x128xf32>
    %283 = arith.maximumf %281, %282 : vector<4x128xf32>
    %c1_213 = arith.constant 1 : index
    %c0_214 = arith.constant 0 : index
    %c0_215 = arith.constant 0 : index
    %284 = vector.load %arg15[%c1_213, %c0_214, %c0_215] : memref<2x128x32xf32, #tpu.memory_space<vmem>>, vector<1x128x32xf32>
    %285 = vector.shape_cast %284 : vector<1x128x32xf32> to vector<128x32xf32>
    %cst_216 = arith.constant dense<0.000000e+00> : vector<4x32xf32>
    %286 = tpu.matmul %283, %285, %cst_216 {dimension_numbers = #tpu.dot_dimension_numbers<[1], [0], [0], [1], [0, 0, 1, 1], [], []>} : vector<4x128xf32>, vector<128x32xf32>, vector<4x32xf32> -> vector<4x32xf32>
    %c1_217 = arith.constant 1 : index
    %c0_218 = arith.constant 0 : index
    %c0_219 = arith.constant 0 : index
    %287 = vector.load %arg16[%c1_217, %c0_218, %c0_219] : memref<2x1x32xf32, #tpu.memory_space<vmem>>, vector<1x1x32xf32>
    %288 = vector.shape_cast %287 : vector<1x1x32xf32> to vector<1x32xf32>
    %289 = vector.broadcast %288 : vector<1x32xf32> to vector<4x32xf32>
    %290 = arith.addf %286, %289 : vector<4x32xf32>
    %291 = arith.addf %274, %290 : vector<4x32xf32>
    %c1_220 = arith.constant 1 : index
    %c0_221 = arith.constant 0 : index
    %c0_222 = arith.constant 0 : index
    %292 = vector.load %arg19[%c1_220, %c0_221, %c0_222] : memref<2x1x32xf32, #tpu.memory_space<vmem>>, vector<1x1x32xf32>
    %293 = vector.shape_cast %292 : vector<1x1x32xf32> to vector<1x32xf32>
    %c1_223 = arith.constant 1 : index
    %c0_224 = arith.constant 0 : index
    %c0_225 = arith.constant 0 : index
    %294 = vector.load %arg20[%c1_223, %c0_224, %c0_225] : memref<2x1x32xf32, #tpu.memory_space<vmem>>, vector<1x1x32xf32>
    %295 = vector.shape_cast %294 : vector<1x1x32xf32> to vector<1x32xf32>
    %cst_226 = arith.constant dense<0.000000e+00> : vector<4xf32>
    %296 = vector.multi_reduction <add>, %291, %cst_226 [1] : vector<4x32xf32> to vector<4xf32>
    %297 = vector.shape_cast %296 : vector<4xf32> to vector<4x1xf32>
    %cst_227 = arith.constant 3.200000e+01 : f32
    %298 = vector.broadcast %cst_227 : f32 to vector<4x1xf32>
    %299 = arith.divf %297, %298 : vector<4x1xf32>
    %300 = vector.broadcast %299 : vector<4x1xf32> to vector<4x32xf32>
    %301 = arith.subf %291, %300 : vector<4x32xf32>
    %302 = arith.mulf %301, %301 : vector<4x32xf32>
    %cst_228 = arith.constant dense<0.000000e+00> : vector<4xf32>
    %303 = vector.multi_reduction <add>, %302, %cst_228 [1] : vector<4x32xf32> to vector<4xf32>
    %304 = vector.shape_cast %303 : vector<4xf32> to vector<4x1xf32>
    %cst_229 = arith.constant 3.200000e+01 : f32
    %305 = vector.broadcast %cst_229 : f32 to vector<4x1xf32>
    %306 = arith.divf %304, %305 : vector<4x1xf32>
    %cst_230 = arith.constant 9.99999974E-6 : f32
    %307 = vector.broadcast %cst_230 : f32 to vector<4x1xf32>
    %308 = arith.addf %306, %307 : vector<4x1xf32>
    %309 = math.rsqrt %308 : vector<4x1xf32>
    %310 = vector.broadcast %309 : vector<4x1xf32> to vector<4x32xf32>
    %311 = arith.mulf %301, %310 : vector<4x32xf32>
    %312 = vector.broadcast %293 : vector<1x32xf32> to vector<4x32xf32>
    %313 = arith.mulf %311, %312 : vector<4x32xf32>
    %314 = vector.broadcast %295 : vector<1x32xf32> to vector<4x32xf32>
    %315 = arith.addf %313, %314 : vector<4x32xf32>
    %316 = vector.shape_cast %315 : vector<4x32xf32> to vector<4x1x32xf32>
    %c0_231 = arith.constant 0 : index
    %c0_232 = arith.constant 0 : index
    %c0_233 = arith.constant 0 : index
    %317 = vector.load %arg21[%c0_231, %c0_232, %c0_233] : memref<4x1x32xf32, #tpu.memory_space<vmem>>, vector<4x1x32xf32>
    tpu.vector_store %arg21[%c0_231, %c0_232, %c0_233], %316 {strides = array<i32>} : memref<4x1x32xf32, #tpu.memory_space<vmem>>, vector<4x1x32xf32>,
    return
  }
  func.func @transform_0(%arg0: i32) -> (i32, i32, i32) {
    %c0_i32 = arith.constant 0 : i32
    %c0_i32_0 = arith.constant 0 : i32
    %c0_i32_1 = arith.constant 0 : i32
    return %arg0, %c0_i32, %c0_i32_0 : i32, i32, i32
  }
  func.func @transform_1(%arg0: i32) -> (i32, i32) {
    %c0_i32 = arith.constant 0 : i32
    %c0_i32_0 = arith.constant 0 : i32
    %c0_i32_1 = arith.constant 0 : i32
    return %c0_i32, %c0_i32_0 : i32, i32
  }
  func.func @transform_2(%arg0: i32) -> (i32, i32) {
    %c0_i32 = arith.constant 0 : i32
    %c0_i32_0 = arith.constant 0 : i32
    %c0_i32_1 = arith.constant 0 : i32
    return %c0_i32, %c0_i32_0 : i32, i32
  }
  func.func @transform_3(%arg0: i32) -> (i32, i32) {
    %c0_i32 = arith.constant 0 : i32
    %c0_i32_0 = arith.constant 0 : i32
    %c0_i32_1 = arith.constant 0 : i32
    return %c0_i32, %c0_i32_0 : i32, i32
  }
  func.func @transform_4(%arg0: i32) -> (i32, i32, i32, i32) {
    %c0_i32 = arith.constant 0 : i32
    %c0_i32_0 = arith.constant 0 : i32
    %c0_i32_1 = arith.constant 0 : i32
    %c0_i32_2 = arith.constant 0 : i32
    %c0_i32_3 = arith.constant 0 : i32
    return %c0_i32, %c0_i32_0, %c0_i32_1, %c0_i32_2 : i32, i32, i32, i32
  }
  func.func @transform_5(%arg0: i32) -> (i32, i32, i32, i32) {
    %c0_i32 = arith.constant 0 : i32
    %c0_i32_0 = arith.constant 0 : i32
    %c0_i32_1 = arith.constant 0 : i32
    %c0_i32_2 = arith.constant 0 : i32
    %c0_i32_3 = arith.constant 0 : i32
    return %c0_i32, %c0_i32_0, %c0_i32_1, %c0_i32_2 : i32, i32, i32, i32
  }
  func.func @transform_6(%arg0: i32) -> (i32, i32, i32, i32) {
    %c0_i32 = arith.constant 0 : i32
    %c0_i32_0 = arith.constant 0 : i32
    %c0_i32_1 = arith.constant 0 : i32
    %c0_i32_2 = arith.constant 0 : i32
    %c0_i32_3 = arith.constant 0 : i32
    return %c0_i32, %c0_i32_0, %c0_i32_1, %c0_i32_2 : i32, i32, i32, i32
  }
  func.func @transform_7(%arg0: i32) -> (i32, i32, i32, i32) {
    %c0_i32 = arith.constant 0 : i32
    %c0_i32_0 = arith.constant 0 : i32
    %c0_i32_1 = arith.constant 0 : i32
    %c0_i32_2 = arith.constant 0 : i32
    %c0_i32_3 = arith.constant 0 : i32
    return %c0_i32, %c0_i32_0, %c0_i32_1, %c0_i32_2 : i32, i32, i32, i32
  }
  func.func @transform_8(%arg0: i32) -> (i32, i32, i32, i32) {
    %c0_i32 = arith.constant 0 : i32
    %c0_i32_0 = arith.constant 0 : i32
    %c0_i32_1 = arith.constant 0 : i32
    %c0_i32_2 = arith.constant 0 : i32
    %c0_i32_3 = arith.constant 0 : i32
    return %c0_i32, %c0_i32_0, %c0_i32_1, %c0_i32_2 : i32, i32, i32, i32
  }
  func.func @transform_9(%arg0: i32) -> (i32, i32, i32, i32) {
    %c0_i32 = arith.constant 0 : i32
    %c0_i32_0 = arith.constant 0 : i32
    %c0_i32_1 = arith.constant 0 : i32
    %c0_i32_2 = arith.constant 0 : i32
    %c0_i32_3 = arith.constant 0 : i32
    return %c0_i32, %c0_i32_0, %c0_i32_1, %c0_i32_2 : i32, i32, i32, i32
  }
  func.func @transform_10(%arg0: i32) -> (i32, i32, i32, i32) {
    %c0_i32 = arith.constant 0 : i32
    %c0_i32_0 = arith.constant 0 : i32
    %c0_i32_1 = arith.constant 0 : i32
    %c0_i32_2 = arith.constant 0 : i32
    %c0_i32_3 = arith.constant 0 : i32
    return %c0_i32, %c0_i32_0, %c0_i32_1, %c0_i32_2 : i32, i32, i32, i32
  }
  func.func @transform_11(%arg0: i32) -> (i32, i32, i32) {
    %c0_i32 = arith.constant 0 : i32
    %c0_i32_0 = arith.constant 0 : i32
    %c0_i32_1 = arith.constant 0 : i32
    %c0_i32_2 = arith.constant 0 : i32
    return %c0_i32, %c0_i32_0, %c0_i32_1 : i32, i32, i32
  }
  func.func @transform_12(%arg0: i32) -> (i32, i32, i32) {
    %c0_i32 = arith.constant 0 : i32
    %c0_i32_0 = arith.constant 0 : i32
    %c0_i32_1 = arith.constant 0 : i32
    %c0_i32_2 = arith.constant 0 : i32
    return %c0_i32, %c0_i32_0, %c0_i32_1 : i32, i32, i32
  }
  func.func @transform_13(%arg0: i32) -> (i32, i32, i32) {
    %c0_i32 = arith.constant 0 : i32
    %c0_i32_0 = arith.constant 0 : i32
    %c0_i32_1 = arith.constant 0 : i32
    %c0_i32_2 = arith.constant 0 : i32
    return %c0_i32, %c0_i32_0, %c0_i32_1 : i32, i32, i32
  }
  func.func @transform_14(%arg0: i32) -> (i32, i32, i32) {
    %c0_i32 = arith.constant 0 : i32
    %c0_i32_0 = arith.constant 0 : i32
    %c0_i32_1 = arith.constant 0 : i32
    %c0_i32_2 = arith.constant 0 : i32
    return %c0_i32, %c0_i32_0, %c0_i32_1 : i32, i32, i32
  }
  func.func @transform_15(%arg0: i32) -> (i32, i32, i32) {
    %c0_i32 = arith.constant 0 : i32
    %c0_i32_0 = arith.constant 0 : i32
    %c0_i32_1 = arith.constant 0 : i32
    %c0_i32_2 = arith.constant 0 : i32
    return %c0_i32, %c0_i32_0, %c0_i32_1 : i32, i32, i32
  }
  func.func @transform_16(%arg0: i32) -> (i32, i32, i32) {
    %c0_i32 = arith.constant 0 : i32
    %c0_i32_0 = arith.constant 0 : i32
    %c0_i32_1 = arith.constant 0 : i32
    %c0_i32_2 = arith.constant 0 : i32
    return %c0_i32, %c0_i32_0, %c0_i32_1 : i32, i32, i32
  }
  func.func @transform_17(%arg0: i32) -> (i32, i32, i32) {
    %c0_i32 = arith.constant 0 : i32
    %c0_i32_0 = arith.constant 0 : i32
    %c0_i32_1 = arith.constant 0 : i32
    %c0_i32_2 = arith.constant 0 : i32
    return %c0_i32, %c0_i32_0, %c0_i32_1 : i32, i32, i32
  }
  func.func @transform_18(%arg0: i32) -> (i32, i32, i32) {
    %c0_i32 = arith.constant 0 : i32
    %c0_i32_0 = arith.constant 0 : i32
    %c0_i32_1 = arith.constant 0 : i32
    %c0_i32_2 = arith.constant 0 : i32
    return %c0_i32, %c0_i32_0, %c0_i32_1 : i32, i32, i32
  }
  func.func @transform_19(%arg0: i32) -> (i32, i32, i32) {
    %c0_i32 = arith.constant 0 : i32
    %c0_i32_0 = arith.constant 0 : i32
    %c0_i32_1 = arith.constant 0 : i32
    %c0_i32_2 = arith.constant 0 : i32
    return %c0_i32, %c0_i32_0, %c0_i32_1 : i32, i32, i32
  }
  func.func @transform_20(%arg0: i32) -> (i32, i32, i32) {
    %c0_i32 = arith.constant 0 : i32
    %c0_i32_0 = arith.constant 0 : i32
    %c0_i32_1 = arith.constant 0 : i32
    return %arg0, %c0_i32, %c0_i32_0 : i32, i32, i32
  }
}

</mosaic_0001>

<llo_original>
// kernel: tpu_custom_call.1
$region0: #{tpu_custom_call.1}
  #allocation0 [shape = 'u32[]', space=smem, size = 0x4, offset = 0x4, fixed_abs, tag = 'smem constant byte address 0x4 - core index']
  #allocation1 [shape = 'u32[72,128]{1,0:T(1,128)}', space=vmem, size = 0x9000, scoped, tag = 'internal scratch']
  %s0 = inlined_call_operand.vmem [shape: f32[4,8,16], index: 0, kind: input, shape index: {}]
  %s1 = inlined_call_operand.vmem [shape: f32[8,16], index: 1, kind: input, shape index: {}]
  %s2 = inlined_call_operand.vmem [shape: f32[16,32], index: 2, kind: input, shape index: {}]
  %s3 = inlined_call_operand.vmem [shape: f32[1,32], index: 3, kind: input, shape index: {}]
  %s4 = inlined_call_operand.vmem [shape: f32[2,2,32,16], index: 4, kind: input, shape index: {}]
  %s5 = inlined_call_operand.vmem [shape: f32[2,2,1,16], index: 5, kind: input, shape index: {}]
  %s6 = inlined_call_operand.vmem [shape: f32[2,2,32,16], index: 6, kind: input, shape index: {}]
  %s7 = inlined_call_operand.vmem [shape: f32[2,2,1,16], index: 7, kind: input, shape index: {}]
  %s8 = inlined_call_operand.vmem [shape: f32[2,2,32,16], index: 8, kind: input, shape index: {}]
  %s9 = inlined_call_operand.vmem [shape: f32[2,2,1,16], index: 9, kind: input, shape index: {}]
  %s10 = inlined_call_operand.vmem [shape: f32[2,2,16,32], index: 10, kind: input, shape index: {}]
  %s11 = inlined_call_operand.vmem [shape: f32[2,1,32], index: 11, kind: input, shape index: {}]
  %s12 = inlined_call_operand.vmem [shape: f32[2,32,128], index: 12, kind: input, shape index: {}]
  %s13 = inlined_call_operand.vmem [shape: f32[2,1,128], index: 13, kind: input, shape index: {}]
  %s14 = inlined_call_operand.vmem [shape: f32[2,128,32], index: 14, kind: input, shape index: {}]
  %s15 = inlined_call_operand.vmem [shape: f32[2,1,32], index: 15, kind: input, shape index: {}]
  %s16 = inlined_call_operand.vmem [shape: f32[2,1,32], index: 16, kind: input, shape index: {}]
  %s17 = inlined_call_operand.vmem [shape: f32[2,1,32], index: 17, kind: input, shape index: {}]
  %s18 = inlined_call_operand.vmem [shape: f32[2,1,32], index: 18, kind: input, shape index: {}]
  %s19 = inlined_call_operand.vmem [shape: f32[2,1,32], index: 19, kind: input, shape index: {}]
  %s20 = inlined_call_operand.hbm [shape: f32[4,1,32], index: 20, kind: output, shape index: {}]
  %s21 = sld [smem:[#allocation0]]
  $region90: #{tpu_custom_call.1} parent=0
    _
  %s23 = ssub.s32 1, %s21
  %s24 = scalar_select 0, %s23, %s21
  $region1: #{tpu_custom_call.1} parent=0
    #allocation2 [shape = 'u8[2048]{0}', space=vmem, size = 0x800, scoped, tag = 'output window, operand 0, single buffered']
    #allocation3 [shape = 's32[1]{0}', space=sflag, size = 0x4, scoped, tag = 'scoped memory for tpu_custom_call.1']
    %25 = vsyncpa [#allocation3], 0
    // Predicated region
    $region2: #{tpu_custom_call.1} parent=1 // pred_check
      _
    $region3: #{tpu_custom_call.1} parent=1 // pred_check_branch
      %27 = sbr.rel (0) target = $region5
    $region4: #{tpu_custom_call.1} parent=1 // pred_region
      _
    $region5: #{tpu_custom_call.1} parent=1 // pred_fallthru
      _
    // Predicated region
    $region6: #{tpu_custom_call.1} parent=1 // pred_check
      _
    $region7: #{tpu_custom_call.1} parent=1 // pred_check_branch
      %29 = sbr.rel (0) target = $region9
    $region8: #{tpu_custom_call.1} parent=1 // pred_region
      _
    $region9: #{tpu_custom_call.1} parent=1 // pred_fallthru
      _
    // Predicated region
    $region10: #{tpu_custom_call.1} parent=1 // pred_check
      _
    $region11: #{tpu_custom_call.1} parent=1 // pred_check_branch
      %31 = sbr.rel (0) target = $region13
    $region12: #{tpu_custom_call.1} parent=1 // pred_region
      _
    $region13: #{tpu_custom_call.1} parent=1 // pred_fallthru
      _
    // Predicated region
    $region14: #{tpu_custom_call.1} parent=1 // pred_check
      _
    $region15: #{tpu_custom_call.1} parent=1 // pred_check_branch
      %33 = sbr.rel (0) target = $region17
    $region16: #{tpu_custom_call.1} parent=1 // pred_region
      _
    $region17: #{tpu_custom_call.1} parent=1 // pred_fallthru
      _
    // Predicated region
    $region18: #{tpu_custom_call.1} parent=1 // pred_check
      _
    $region19: #{tpu_custom_call.1} parent=1 // pred_check_branch
      %35 = sbr.rel (0) target = $region21
    $region20: #{tpu_custom_call.1} parent=1 // pred_region
      _
    $region21: #{tpu_custom_call.1} parent=1 // pred_fallthru
      _
    // Predicated region
    $region22: #{tpu_custom_call.1} parent=1 // pred_check
      _
    $region23: #{tpu_custom_call.1} parent=1 // pred_check_branch
      %37 = sbr.rel (0) target = $region25
    $region24: #{tpu_custom_call.1} parent=1 // pred_region
      _
    $region25: #{tpu_custom_call.1} parent=1 // pred_fallthru
      _
    // Predicated region
    $region26: #{tpu_custom_call.1} parent=1 // pred_check
      _
    $region27: #{tpu_custom_call.1} parent=1 // pred_check_branch
      %39 = sbr.rel (0) target = $region29
    $region28: #{tpu_custom_call.1} parent=1 // pred_region
      _
    $region29: #{tpu_custom_call.1} parent=1 // pred_fallthru
      _
    // Predicated region
    $region30: #{tpu_custom_call.1} parent=1 // pred_check
      _
    $region31: #{tpu_custom_call.1} parent=1 // pred_check_branch
      %41 = sbr.rel (0) target = $region33
    $region32: #{tpu_custom_call.1} parent=1 // pred_region
      _
    $region33: #{tpu_custom_call.1} parent=1 // pred_fallthru
      _
    // Predicated region
    $region34: #{tpu_custom_call.1} parent=1 // pred_check
      _
    $region35: #{tpu_custom_call.1} parent=1 // pred_check_branch
      %43 = sbr.rel (0) target = $region37
    $region36: #{tpu_custom_call.1} parent=1 // pred_region
      _
    $region37: #{tpu_custom_call.1} parent=1 // pred_fallthru
      _
    // Predicated region
    $region38: #{tpu_custom_call.1} parent=1 // pred_check
      _
    $region39: #{tpu_custom_call.1} parent=1 // pred_check_branch
      %45 = sbr.rel (0) target = $region41
    $region40: #{tpu_custom_call.1} parent=1 // pred_region
      _
    $region41: #{tpu_custom_call.1} parent=1 // pred_fallthru
      _
    // Predicated region
    $region42: #{tpu_custom_call.1} parent=1 // pred_check
      _
    $region43: #{tpu_custom_call.1} parent=1 // pred_check_branch
      %47 = sbr.rel (0) target = $region45
    $region44: #{tpu_custom_call.1} parent=1 // pred_region
      _
    $region45: #{tpu_custom_call.1} parent=1 // pred_fallthru
      _
    // Predicated region
    $region46: #{tpu_custom_call.1} parent=1 // pred_check
      _
    $region47: #{tpu_custom_call.1} parent=1 // pred_check_branch
      %49 = sbr.rel (0) target = $region49
    $region48: #{tpu_custom_call.1} parent=1 // pred_region
      _
    $region49: #{tpu_custom_call.1} parent=1 // pred_fallthru
      _
    // Predicated region
    $region50: #{tpu_custom_call.1} parent=1 // pred_check
      _
    $region51: #{tpu_custom_call.1} parent=1 // pred_check_branch
      %51 = sbr.rel (0) target = $region53
    $region52: #{tpu_custom_call.1} parent=1 // pred_region
      _
    $region53: #{tpu_custom_call.1} parent=1 // pred_fallthru
      _
    // Predicated region
    $region54: #{tpu_custom_call.1} parent=1 // pred_check
      _
    $region55: #{tpu_custom_call.1} parent=1 // pred_check_branch
      %53 = sbr.rel (0) target = $region57
    $region56: #{tpu_custom_call.1} parent=1 // pred_region
      _
    $region57: #{tpu_custom_call.1} parent=1 // pred_fallthru
      _
    // Predicated region
    $region58: #{tpu_custom_call.1} parent=1 // pred_check
      _
    $region59: #{tpu_custom_call.1} parent=1 // pred_check_branch
      %55 = sbr.rel (0) target = $region61
    $region60: #{tpu_custom_call.1} parent=1 // pred_region
      _
    $region61: #{tpu_custom_call.1} parent=1 // pred_fallthru
      _
    // Predicated region
    $region62: #{tpu_custom_call.1} parent=1 // pred_check
      _
    $region63: #{tpu_custom_call.1} parent=1 // pred_check_branch
      %57 = sbr.rel (0) target = $region65
    $region64: #{tpu_custom_call.1} parent=1 // pred_region
      _
    $region65: #{tpu_custom_call.1} parent=1 // pred_fallthru
      _
    // Predicated region
    $region66: #{tpu_custom_call.1} parent=1 // pred_check
      _
    $region67: #{tpu_custom_call.1} parent=1 // pred_check_branch
      %59 = sbr.rel (0) target = $region69
    $region68: #{tpu_custom_call.1} parent=1 // pred_region
      _
    $region69: #{tpu_custom_call.1} parent=1 // pred_fallthru
      _
    // Predicated region
    $region70: #{tpu_custom_call.1} parent=1 // pred_check
      _
    $region71: #{tpu_custom_call.1} parent=1 // pred_check_branch
      %61 = sbr.rel (0) target = $region73
    $region72: #{tpu_custom_call.1} parent=1 // pred_region
      _
    $region73: #{tpu_custom_call.1} parent=1 // pred_fallthru
      _
    // Predicated region
    $region74: #{tpu_custom_call.1} parent=1 // pred_check
      _
    $region75: #{tpu_custom_call.1} parent=1 // pred_check_branch
      %63 = sbr.rel (0) target = $region77
    $region76: #{tpu_custom_call.1} parent=1 // pred_region
      _
    $region77: #{tpu_custom_call.1} parent=1 // pred_fallthru
      _
    // Predicated region
    $region78: #{tpu_custom_call.1} parent=1 // pred_check
      _
    $region79: #{tpu_custom_call.1} parent=1 // pred_check_branch
      %65 = sbr.rel (0) target = $region81
    $region80: #{tpu_custom_call.1} parent=1 // pred_region
      _
    $region81: #{tpu_custom_call.1} parent=1 // pred_fallthru
      _
    %v66 = vld [vmem:[%s0] sm:$0xff]
    %v67 = vld [vmem:[%s0 + $0x8] sm:$0xff]
    %v68 = vld [vmem:[%s0 + $0x10] sm:$0xff]
    %v69 = vld [vmem:[%s0 + $0x18] sm:$0xff]
    %v70 = vld [vmem:[%s1] sm:$0xff]
    %v71 = vadd.f32 %v66, %v70
    %v72 = vadd.f32 %v67, %v70
    %v73 = vadd.f32 %v68, %v70
    %v74 = vadd.f32 %v69, %v70
    %v75 = vld [vmem:[%s2] sm:$0xff]
    %v76 = vld [vmem:[%s2 + $0x8] sm:$0xff]
    %v77 = vld [vmem:[%s3] sm:$0x1]
    %v79 = vperm.slane %v77, 0
    %vm81 = vcmask 130048
    %v83 = vsel %vm81, %v71, 0
    %v86 = vsel %vm81, %v72, 0
    %v89 = vsel %vm81, %v73, 0
    %v92 = vsel %vm81, %v74, 0
    %94 = vmatpush.msra.mxu0 0.0
    %95 = vmatpush.msra.mxu0 0.0
    %96 = vmatpush.msra.mxu0 0.0
    %97 = vmatpush.msra.mxu0 0.0
    %98 = vmatpush.msra.mxu0 0.0
    %99 = vmatpush.msra.mxu0 0.0
    %100 = vmatpush.msra.mxu0 0.0
    %101 = vmatpush.msra.mxu0 0.0
    %102 = vmatpush.msra.mxu0 0.0
    %103 = vmatpush.msra.mxu0 0.0
    %104 = vmatpush.msra.mxu0 0.0
    %105 = vmatpush.msra.mxu0 0.0
    %106 = vmatpush.msra.mxu0 0.0
    %107 = vmatpush.msra.mxu0 0.0
    %108 = vmatpush.msra.mxu0 %v76
    %109 = vmatpush.msra.mxu0 %v75
    %110 = vmatmul.f32.gmra.mxu0 %v83
    %v111 = vpop.f32.mrf.mxu0
    %v112 = vadd.f32 %v79, %v111
    %113 = vmatmul.f32.gmra.mxu0 %v86
    %v114 = vpop.f32.mrf.mxu0
    %v115 = vadd.f32 %v79, %v114
    %116 = vmatmul.f32.gmra.mxu0 %v89
    %v117 = vpop.f32.mrf.mxu0
    %v118 = vadd.f32 %v79, %v117
    %119 = vmatmul.f32.gmra.mxu0 %v92
    %v120 = vpop.f32.mrf.mxu0
    %v121 = vadd.f32 %v79, %v120
    %122 = vdwg.mxu0
    %v123 = vld [vmem:[%s11] sm:$0x1]
    %v124 = vld [vmem:[%s4] sm:$0xff]
    %v125 = vld [vmem:[%s4 + $0x8] sm:$0xff]
    %v126 = vld [vmem:[%s4 + $0x10] sm:$0xff]
    %v127 = vld [vmem:[%s4 + $0x18] sm:$0xff]
    %v128 = vld [vmem:[%s5] sm:$0x1]
    %v130 = vperm.slane %v128, 0
    %vm132 = vcmask 261120
    %v134 = vsel %vm132, %v112, 0
    %v137 = vsel %vm132, %v115, 0
    %v140 = vsel %vm132, %v118, 0
    %v143 = vsel %vm132, %v121, 0
    %145 = vmatpush.msra.mxu0 0.0
    %146 = vmatpush.msra.mxu0 0.0
    %147 = vmatpush.msra.mxu0 0.0
    %148 = vmatpush.msra.mxu0 0.0
    %149 = vmatpush.msra.mxu0 0.0
    %150 = vmatpush.msra.mxu0 0.0
    %151 = vmatpush.msra.mxu0 0.0
    %152 = vmatpush.msra.mxu0 0.0
    %153 = vmatpush.msra.mxu0 0.0
    %154 = vmatpush.msra.mxu0 0.0
    %155 = vmatpush.msra.mxu0 0.0
    %156 = vmatpush.msra.mxu0 0.0
    %157 = vmatpush.msra.mxu0 %v127
    %158 = vmatpush.msra.mxu0 %v126
    %159 = vmatpush.msra.mxu0 %v125
    %160 = vmatpush.msra.mxu0 %v124
    %161 = vmatmul.f32.gmra.mxu0 %v134
    %v162 = vpop.f32.mrf.mxu0
    %v163 = vadd.f32 %v130, %v162
    %164 = vmatmul.f32.gmra.mxu0 %v137
    %v165 = vpop.f32.mrf.mxu0
    %v166 = vadd.f32 %v130, %v165
    %167 = vmatmul.f32.gmra.mxu0 %v140
    %v168 = vpop.f32.mrf.mxu0
    %v169 = vadd.f32 %v130, %v168
    %170 = vmatmul.f32.gmra.mxu0 %v143
    %v171 = vpop.f32.mrf.mxu0
    %v172 = vadd.f32 %v130, %v171
    %173 = vdwg.mxu0
    %v174 = vld [vmem:[%s6] sm:$0xff]
    %v175 = vld [vmem:[%s6 + $0x8] sm:$0xff]
    %v176 = vld [vmem:[%s6 + $0x10] sm:$0xff]
    %v177 = vld [vmem:[%s6 + $0x18] sm:$0xff]
    %v178 = vld [vmem:[%s7] sm:$0x1]
    %v180 = vperm.slane %v178, 0
    %182 = vmatpush.msra.mxu0 0.0
    %183 = vmatpush.msra.mxu0 0.0
    %184 = vmatpush.msra.mxu0 0.0
    %185 = vmatpush.msra.mxu0 0.0
    %186 = vmatpush.msra.mxu0 0.0
    %187 = vmatpush.msra.mxu0 0.0
    %188 = vmatpush.msra.mxu0 0.0
    %189 = vmatpush.msra.mxu0 0.0
    %190 = vmatpush.msra.mxu0 0.0
    %191 = vmatpush.msra.mxu0 0.0
    %192 = vmatpush.msra.mxu0 0.0
    %193 = vmatpush.msra.mxu0 0.0
    %194 = vmatpush.msra.mxu0 %v177
    %195 = vmatpush.msra.mxu0 %v176
    %196 = vmatpush.msra.mxu0 %v175
    %197 = vmatpush.msra.mxu0 %v174
    %198 = vmatmul.f32.gmra.mxu0 %v134
    %v199 = vpop.f32.mrf.mxu0
    %v200 = vadd.f32 %v180, %v199
    %201 = vmatmul.f32.gmra.mxu0 %v137
    %v202 = vpop.f32.mrf.mxu0
    %v203 = vadd.f32 %v180, %v202
    %204 = vmatmul.f32.gmra.mxu0 %v140
    %v205 = vpop.f32.mrf.mxu0
    %v206 = vadd.f32 %v180, %v205
    %207 = vmatmul.f32.gmra.mxu0 %v143
    %v208 = vpop.f32.mrf.mxu0
    %v209 = vadd.f32 %v180, %v208
    %210 = vdwg.mxu0
    %v211 = vld [vmem:[%s8] sm:$0xff]
    %v212 = vld [vmem:[%s8 + $0x8] sm:$0xff]
    %v213 = vld [vmem:[%s8 + $0x10] sm:$0xff]
    %v214 = vld [vmem:[%s8 + $0x18] sm:$0xff]
    %v215 = vld [vmem:[%s9] sm:$0x1]
    %v217 = vperm.slane %v215, 0
    %219 = vmatpush.msra.mxu0 0.0
    %220 = vmatpush.msra.mxu0 0.0
    %221 = vmatpush.msra.mxu0 0.0
    %222 = vmatpush.msra.mxu0 0.0
    %223 = vmatpush.msra.mxu0 0.0
    %224 = vmatpush.msra.mxu0 0.0
    %225 = vmatpush.msra.mxu0 0.0
    %226 = vmatpush.msra.mxu0 0.0
    %227 = vmatpush.msra.mxu0 0.0
    %228 = vmatpush.msra.mxu0 0.0
    %229 = vmatpush.msra.mxu0 0.0
    %230 = vmatpush.msra.mxu0 0.0
    %231 = vmatpush.msra.mxu0 %v214
    %232 = vmatpush.msra.mxu0 %v213
    %233 = vmatpush.msra.mxu0 %v212
    %234 = vmatpush.msra.mxu0 %v211
    %235 = vmatmul.f32.gmra.mxu0 %v134
    %v236 = vpop.f32.mrf.mxu0
    %v237 = vadd.f32 %v217, %v236
    %238 = vmatmul.f32.gmra.mxu0 %v137
    %v239 = vpop.f32.mrf.mxu0
    %v240 = vadd.f32 %v217, %v239
    %241 = vmatmul.f32.gmra.mxu0 %v140
    %v242 = vpop.f32.mrf.mxu0
    %v243 = vadd.f32 %v217, %v242
    %244 = vmatmul.f32.gmra.mxu0 %v143
    %v245 = vpop.f32.mrf.mxu0
    %v246 = vadd.f32 %v217, %v245
    %247 = vdwg.mxu0
    %v249 = vsel %vm81, %v163, 0
    %v252 = vsel %vm81, %v200, 0
    %254 = vmatpush.xpose.msra.mxu0 0.0
    %255 = vmatpush.xpose.msra.mxu0 0.0
    %256 = vmatpush.xpose.msra.mxu0 0.0
    %257 = vmatpush.xpose.msra.mxu0 0.0
    %258 = vmatpush.xpose.msra.mxu0 0.0
    %259 = vmatpush.xpose.msra.mxu0 0.0
    %260 = vmatpush.xpose.msra.mxu0 0.0
    %261 = vmatpush.xpose.msra.mxu0 0.0
    %262 = vmatpush.xpose.msra.mxu0 0.0
    %263 = vmatpush.xpose.msra.mxu0 0.0
    %264 = vmatpush.xpose.msra.mxu0 0.0
    %265 = vmatpush.xpose.msra.mxu0 0.0
    %266 = vmatpush.xpose.msra.mxu0 0.0
    %267 = vmatpush.xpose.msra.mxu0 0.0
    %268 = vmatpush.xpose.msra.mxu0 0.0
    %269 = vmatpush.xpose.msra.mxu0 %v252
    %270 = vmatmul.f32.gmra.mxu0 %v249
    %v271 = vpop.f32.mrf.mxu0
    %v272 = vadd.f32 0.0, %v271
    %273 = vdwg.mxu0
    %v275 = vsel %vm81, %v166, 0
    %v278 = vsel %vm81, %v203, 0
    %280 = vmatpush.xpose.msra.mxu0 0.0
    %281 = vmatpush.xpose.msra.mxu0 0.0
    %282 = vmatpush.xpose.msra.mxu0 0.0
    %283 = vmatpush.xpose.msra.mxu0 0.0
    %284 = vmatpush.xpose.msra.mxu0 0.0
    %285 = vmatpush.xpose.msra.mxu0 0.0
    %286 = vmatpush.xpose.msra.mxu0 0.0
    %287 = vmatpush.xpose.msra.mxu0 0.0
    %288 = vmatpush.xpose.msra.mxu0 0.0
    %289 = vmatpush.xpose.msra.mxu0 0.0
    %290 = vmatpush.xpose.msra.mxu0 0.0
    %291 = vmatpush.xpose.msra.mxu0 0.0
    %292 = vmatpush.xpose.msra.mxu0 0.0
    %293 = vmatpush.xpose.msra.mxu0 0.0
    %294 = vmatpush.xpose.msra.mxu0 0.0
    %295 = vmatpush.xpose.msra.mxu0 %v278
    %296 = vmatmul.f32.gmra.mxu0 %v275
    %v297 = vpop.f32.mrf.mxu0
    %v298 = vadd.f32 0.0, %v297
    %299 = vdwg.mxu0
    %v301 = vsel %vm81, %v169, 0
    %v304 = vsel %vm81, %v206, 0
    %306 = vmatpush.xpose.msra.mxu0 0.0
    %307 = vmatpush.xpose.msra.mxu0 0.0
    %308 = vmatpush.xpose.msra.mxu0 0.0
    %309 = vmatpush.xpose.msra.mxu0 0.0
    %310 = vmatpush.xpose.msra.mxu0 0.0
    %311 = vmatpush.xpose.msra.mxu0 0.0
    %312 = vmatpush.xpose.msra.mxu0 0.0
    %313 = vmatpush.xpose.msra.mxu0 0.0
    %314 = vmatpush.xpose.msra.mxu0 0.0
    %315 = vmatpush.xpose.msra.mxu0 0.0
    %316 = vmatpush.xpose.msra.mxu0 0.0
    %317 = vmatpush.xpose.msra.mxu0 0.0
    %318 = vmatpush.xpose.msra.mxu0 0.0
    %319 = vmatpush.xpose.msra.mxu0 0.0
    %320 = vmatpush.xpose.msra.mxu0 0.0
    %321 = vmatpush.xpose.msra.mxu0 %v304
    %322 = vmatmul.f32.gmra.mxu0 %v301
    %v323 = vpop.f32.mrf.mxu0
    %v324 = vadd.f32 0.0, %v323
    %325 = vdwg.mxu0
    %v327 = vsel %vm81, %v172, 0
    %v330 = vsel %vm81, %v209, 0
    %332 = vmatpush.xpose.msra.mxu0 0.0
    %333 = vmatpush.xpose.msra.mxu0 0.0
    %334 = vmatpush.xpose.msra.mxu0 0.0
    %335 = vmatpush.xpose.msra.mxu0 0.0
    %336 = vmatpush.xpose.msra.mxu0 0.0
    %337 = vmatpush.xpose.msra.mxu0 0.0
    %338 = vmatpush.xpose.msra.mxu0 0.0
    %339 = vmatpush.xpose.msra.mxu0 0.0
    %340 = vmatpush.xpose.msra.mxu0 0.0
    %341 = vmatpush.xpose.msra.mxu0 0.0
    %342 = vmatpush.xpose.msra.mxu0 0.0
    %343 = vmatpush.xpose.msra.mxu0 0.0
    %344 = vmatpush.xpose.msra.mxu0 0.0
    %345 = vmatpush.xpose.msra.mxu0 0.0
    %346 = vmatpush.xpose.msra.mxu0 0.0
    %347 = vmatpush.xpose.msra.mxu0 %v330
    %348 = vmatmul.f32.gmra.mxu0 %v327
    %v349 = vpop.f32.mrf.mxu0
    %v350 = vadd.f32 0.0, %v349
    %351 = vdwg.mxu0
    %vm352 = vcmask 64512
    %v353 = vsel %vm352, %v272, -inf
    %354 = vmax.xlane.f32.xlu0 %v353
    %v355 = vpop.xlane.xlu0 %354
    %v356 = vsel %vm352, %v298, -inf
    %357 = vmax.xlane.f32.xlu0 %v356
    %v358 = vpop.xlane.xlu0 %357
    %v359 = vsel %vm352, %v324, -inf
    %360 = vmax.xlane.f32.xlu0 %v359
    %v361 = vpop.xlane.xlu0 %360
    %v362 = vsel %vm352, %v350, -inf
    %363 = vmax.xlane.f32.xlu0 %v362
    %v364 = vpop.xlane.xlu0 %363
    %v365 = vsub.f32 %v272, %v355
    %v366 = vsub.f32 %v298, %v358
    %v367 = vsub.f32 %v324, %v361
    %v368 = vsub.f32 %v350, %v364
    %v369 = vmul.f32 %v365, 1.442695
    %v370 = vpow.pop %v369
    %v371 = vmul.f32 %v366, 1.442695
    %v372 = vpow.pop %v371
    %v373 = vmul.f32 %v367, 1.442695
    %v374 = vpow.pop %v373
    %v375 = vmul.f32 %v368, 1.442695
    %v376 = vpow.pop %v375
    %v377 = vsel %vm352, %v370, 0.0
    %378 = vadd.xlane.f32.xlu0 %v377
    %v379 = vpop.xlane.xlu0 %378
    %v380 = vsel %vm352, %v372, 0.0
    %381 = vadd.xlane.f32.xlu0 %v380
    %v382 = vpop.xlane.xlu0 %381
    %v383 = vsel %vm352, %v374, 0.0
    %384 = vadd.xlane.f32.xlu0 %v383
    %v385 = vpop.xlane.xlu0 %384
    %v386 = vsel %vm352, %v376, 0.0
    %387 = vadd.xlane.f32.xlu0 %v386
    %v388 = vpop.xlane.xlu0 %387
    %v389 = vrcp.pop %v379
    %v390 = vrcp.pop %v382
    %v391 = vrcp.pop %v385
    %v392 = vrcp.pop %v388
    %v393 = vmul.f32 %v370, %v389
    %v394 = vmul.f32 %v372, %v390
    %v395 = vmul.f32 %v374, %v391
    %v396 = vmul.f32 %v376, %v392
    %v398 = vsel %vm352, %v393, 0
    %400 = vmatpush.msra.mxu0 0.0
    %401 = vmatpush.msra.mxu0 0.0
    %402 = vmatpush.msra.mxu0 0.0
    %403 = vmatpush.msra.mxu0 0.0
    %404 = vmatpush.msra.mxu0 0.0
    %405 = vmatpush.msra.mxu0 0.0
    %406 = vmatpush.msra.mxu0 0.0
    %407 = vmatpush.msra.mxu0 0.0
    %408 = vmatpush.msra.mxu0 0.0
    %409 = vmatpush.msra.mxu0 0.0
    %410 = vmatpush.msra.mxu0 0.0
    %411 = vmatpush.msra.mxu0 0.0
    %412 = vmatpush.msra.mxu0 0.0
    %413 = vmatpush.msra.mxu0 0.0
    %414 = vmatpush.msra.mxu0 0.0
    %415 = vmatpush.msra.mxu0 %v237
    %416 = vmatmul.f32.gmra.mxu0 %v398
    %v417 = vpop.f32.mrf.mxu0
    %v418 = vadd.f32 0.0, %v417
    %419 = vdwg.mxu0
    %v421 = vsel %vm352, %v394, 0
    %423 = vmatpush.msra.mxu0 0.0
    %424 = vmatpush.msra.mxu0 0.0
    %425 = vmatpush.msra.mxu0 0.0
    %426 = vmatpush.msra.mxu0 0.0
    %427 = vmatpush.msra.mxu0 0.0
    %428 = vmatpush.msra.mxu0 0.0
    %429 = vmatpush.msra.mxu0 0.0
    %430 = vmatpush.msra.mxu0 0.0
    %431 = vmatpush.msra.mxu0 0.0
    %432 = vmatpush.msra.mxu0 0.0
    %433 = vmatpush.msra.mxu0 0.0
    %434 = vmatpush.msra.mxu0 0.0
    %435 = vmatpush.msra.mxu0 0.0
    %436 = vmatpush.msra.mxu0 0.0
    %437 = vmatpush.msra.mxu0 0.0
    %438 = vmatpush.msra.mxu0 %v240
    %439 = vmatmul.f32.gmra.mxu0 %v421
    %v440 = vpop.f32.mrf.mxu0
    %v441 = vadd.f32 0.0, %v440
    %442 = vdwg.mxu0
    %v444 = vsel %vm352, %v395, 0
    %446 = vmatpush.msra.mxu0 0.0
    %447 = vmatpush.msra.mxu0 0.0
    %448 = vmatpush.msra.mxu0 0.0
    %449 = vmatpush.msra.mxu0 0.0
    %450 = vmatpush.msra.mxu0 0.0
    %451 = vmatpush.msra.mxu0 0.0
    %452 = vmatpush.msra.mxu0 0.0
    %453 = vmatpush.msra.mxu0 0.0
    %454 = vmatpush.msra.mxu0 0.0
    %455 = vmatpush.msra.mxu0 0.0
    %456 = vmatpush.msra.mxu0 0.0
    %457 = vmatpush.msra.mxu0 0.0
    %458 = vmatpush.msra.mxu0 0.0
    %459 = vmatpush.msra.mxu0 0.0
    %460 = vmatpush.msra.mxu0 0.0
    %461 = vmatpush.msra.mxu0 %v243
    %462 = vmatmul.f32.gmra.mxu0 %v444
    %v463 = vpop.f32.mrf.mxu0
    %v464 = vadd.f32 0.0, %v463
    %465 = vdwg.mxu0
    %v467 = vsel %vm352, %v396, 0
    %469 = vmatpush.msra.mxu0 0.0
    %470 = vmatpush.msra.mxu0 0.0
    %471 = vmatpush.msra.mxu0 0.0
    %472 = vmatpush.msra.mxu0 0.0
    %473 = vmatpush.msra.mxu0 0.0
    %474 = vmatpush.msra.mxu0 0.0
    %475 = vmatpush.msra.mxu0 0.0
    %476 = vmatpush.msra.mxu0 0.0
    %477 = vmatpush.msra.mxu0 0.0
    %478 = vmatpush.msra.mxu0 0.0
    %479 = vmatpush.msra.mxu0 0.0
    %480 = vmatpush.msra.mxu0 0.0
    %481 = vmatpush.msra.mxu0 0.0
    %482 = vmatpush.msra.mxu0 0.0
    %483 = vmatpush.msra.mxu0 0.0
    %484 = vmatpush.msra.mxu0 %v246
    %485 = vmatmul.f32.gmra.mxu0 %v467
    %v486 = vpop.f32.mrf.mxu0
    %v487 = vadd.f32 0.0, %v486
    %488 = vdwg.mxu0
    %v489 = vld [vmem:[%s10] sm:$0xff]
    %v490 = vld [vmem:[%s10 + $0x8] sm:$0xff]
    %v492 = vsel %vm81, %v418, 0
    %v495 = vsel %vm81, %v441, 0
    %v498 = vsel %vm81, %v464, 0
    %v501 = vsel %vm81, %v487, 0
    %503 = vmatpush.msra.mxu0 0.0
    %504 = vmatpush.msra.mxu0 0.0
    %505 = vmatpush.msra.mxu0 0.0
    %506 = vmatpush.msra.mxu0 0.0
    %507 = vmatpush.msra.mxu0 0.0
    %508 = vmatpush.msra.mxu0 0.0
    %509 = vmatpush.msra.mxu0 0.0
    %510 = vmatpush.msra.mxu0 0.0
    %511 = vmatpush.msra.mxu0 0.0
    %512 = vmatpush.msra.mxu0 0.0
    %513 = vmatpush.msra.mxu0 0.0
    %514 = vmatpush.msra.mxu0 0.0
    %515 = vmatpush.msra.mxu0 0.0
    %516 = vmatpush.msra.mxu0 0.0
    %517 = vmatpush.msra.mxu0 %v490
    %518 = vmatpush.msra.mxu0 %v489
    %519 = vmatmul.f32.gmra.mxu0 %v492
    %v520 = vpop.f32.mrf.mxu0
    %v521 = vadd.f32 0.0, %v520
    %522 = vmatmul.f32.gmra.mxu0 %v495
    %v523 = vpop.f32.mrf.mxu0
    %v524 = vadd.f32 0.0, %v523
    %525 = vmatmul.f32.gmra.mxu0 %v498
    %v526 = vpop.f32.mrf.mxu0
    %v527 = vadd.f32 0.0, %v526
    %528 = vmatmul.f32.gmra.mxu0 %v501
    %v529 = vpop.f32.mrf.mxu0
    %v530 = vadd.f32 0.0, %v529
    %531 = vdwg.mxu0
    %v533 = vperm.slane %v123, 0
    %v535 = vadd.f32 %v533, %v521
    %v536 = vadd.f32 %v533, %v524
    %v537 = vadd.f32 %v533, %v527
    %v538 = vadd.f32 %v533, %v530
    %s539 = scalar_lea.vmem %s4, 32
    %v540 = vld [vmem:[%s539] sm:$0xff]
    %v541 = vld [vmem:[%s539 + $0x8] sm:$0xff]
    %v542 = vld [vmem:[%s539 + $0x10] sm:$0xff]
    %v543 = vld [vmem:[%s539 + $0x18] sm:$0xff]
    %s544 = scalar_lea.vmem %s5, 1
    %v545 = vld [vmem:[%s544] sm:$0x1]
    %v547 = vperm.slane %v545, 0
    %549 = vmatpush.msra.mxu0 0.0
    %550 = vmatpush.msra.mxu0 0.0
    %551 = vmatpush.msra.mxu0 0.0
    %552 = vmatpush.msra.mxu0 0.0
    %553 = vmatpush.msra.mxu0 0.0
    %554 = vmatpush.msra.mxu0 0.0
    %555 = vmatpush.msra.mxu0 0.0
    %556 = vmatpush.msra.mxu0 0.0
    %557 = vmatpush.msra.mxu0 0.0
    %558 = vmatpush.msra.mxu0 0.0
    %559 = vmatpush.msra.mxu0 0.0
    %560 = vmatpush.msra.mxu0 0.0
    %561 = vmatpush.msra.mxu0 %v543
    %562 = vmatpush.msra.mxu0 %v542
    %563 = vmatpush.msra.mxu0 %v541
    %564 = vmatpush.msra.mxu0 %v540
    %565 = vmatmul.f32.gmra.mxu0 %v134
    %v566 = vpop.f32.mrf.mxu0
    %v567 = vadd.f32 %v547, %v566
    %568 = vmatmul.f32.gmra.mxu0 %v137
    %v569 = vpop.f32.mrf.mxu0
    %v570 = vadd.f32 %v547, %v569
    %571 = vmatmul.f32.gmra.mxu0 %v140
    %v572 = vpop.f32.mrf.mxu0
    %v573 = vadd.f32 %v547, %v572
    %574 = vmatmul.f32.gmra.mxu0 %v143
    %v575 = vpop.f32.mrf.mxu0
    %v576 = vadd.f32 %v547, %v575
    %577 = vdwg.mxu0
    %s578 = scalar_lea.vmem %s6, 32
    %v579 = vld [vmem:[%s578] sm:$0xff]
    %v580 = vld [vmem:[%s578 + $0x8] sm:$0xff]
    %v581 = vld [vmem:[%s578 + $0x10] sm:$0xff]
    %v582 = vld [vmem:[%s578 + $0x18] sm:$0xff]
    %s583 = scalar_lea.vmem %s7, 1
    %v584 = vld [vmem:[%s583] sm:$0x1]
    %v586 = vperm.slane %v584, 0
    %588 = vmatpush.msra.mxu0 0.0
    %589 = vmatpush.msra.mxu0 0.0
    %590 = vmatpush.msra.mxu0 0.0
    %591 = vmatpush.msra.mxu0 0.0
    %592 = vmatpush.msra.mxu0 0.0
    %593 = vmatpush.msra.mxu0 0.0
    %594 = vmatpush.msra.mxu0 0.0
    %595 = vmatpush.msra.mxu0 0.0
    %596 = vmatpush.msra.mxu0 0.0
    %597 = vmatpush.msra.mxu0 0.0
    %598 = vmatpush.msra.mxu0 0.0
    %599 = vmatpush.msra.mxu0 0.0
    %600 = vmatpush.msra.mxu0 %v582
    %601 = vmatpush.msra.mxu0 %v581
    %602 = vmatpush.msra.mxu0 %v580
    %603 = vmatpush.msra.mxu0 %v579
    %604 = vmatmul.f32.gmra.mxu0 %v134
    %v605 = vpop.f32.mrf.mxu0
    %v606 = vadd.f32 %v586, %v605
    %607 = vmatmul.f32.gmra.mxu0 %v137
    %v608 = vpop.f32.mrf.mxu0
    %v609 = vadd.f32 %v586, %v608
    %610 = vmatmul.f32.gmra.mxu0 %v140
    %v611 = vpop.f32.mrf.mxu0
    %v612 = vadd.f32 %v586, %v611
    %613 = vmatmul.f32.gmra.mxu0 %v143
    %v614 = vpop.f32.mrf.mxu0
    %v615 = vadd.f32 %v586, %v614
    %616 = vdwg.mxu0
    %s617 = scalar_lea.vmem %s8, 32
    %v618 = vld [vmem:[%s617] sm:$0xff]
    %v619 = vld [vmem:[%s617 + $0x8] sm:$0xff]
    %v620 = vld [vmem:[%s617 + $0x10] sm:$0xff]
    %v621 = vld [vmem:[%s617 + $0x18] sm:$0xff]
    %s622 = scalar_lea.vmem %s9, 1
    %v623 = vld [vmem:[%s622] sm:$0x1]
    %v625 = vperm.slane %v623, 0
    %627 = vmatpush.msra.mxu0 0.0
    %628 = vmatpush.msra.mxu0 0.0
    %629 = vmatpush.msra.mxu0 0.0
    %630 = vmatpush.msra.mxu0 0.0
    %631 = vmatpush.msra.mxu0 0.0
    %632 = vmatpush.msra.mxu0 0.0
    %633 = vmatpush.msra.mxu0 0.0
    %634 = vmatpush.msra.mxu0 0.0
    %635 = vmatpush.msra.mxu0 0.0
    %636 = vmatpush.msra.mxu0 0.0
    %637 = vmatpush.msra.mxu0 0.0
    %638 = vmatpush.msra.mxu0 0.0
    %639 = vmatpush.msra.mxu0 %v621
    %640 = vmatpush.msra.mxu0 %v620
    %641 = vmatpush.msra.mxu0 %v619
    %642 = vmatpush.msra.mxu0 %v618
    %643 = vmatmul.f32.gmra.mxu0 %v134
    %v644 = vpop.f32.mrf.mxu0
    %v645 = vadd.f32 %v625, %v644
    %646 = vmatmul.f32.gmra.mxu0 %v137
    %v647 = vpop.f32.mrf.mxu0
    %v648 = vadd.f32 %v625, %v647
    %649 = vmatmul.f32.gmra.mxu0 %v140
    %v650 = vpop.f32.mrf.mxu0
    %v651 = vadd.f32 %v625, %v650
    %652 = vmatmul.f32.gmra.mxu0 %v143
    %v653 = vpop.f32.mrf.mxu0
    %v654 = vadd.f32 %v625, %v653
    %655 = vdwg.mxu0
    %v657 = vsel %vm81, %v567, 0
    %v660 = vsel %vm81, %v606, 0
    %662 = vmatpush.xpose.msra.mxu0 0.0
    %663 = vmatpush.xpose.msra.mxu0 0.0
    %664 = vmatpush.xpose.msra.mxu0 0.0
    %665 = vmatpush.xpose.msra.mxu0 0.0
    %666 = vmatpush.xpose.msra.mxu0 0.0
    %667 = vmatpush.xpose.msra.mxu0 0.0
    %668 = vmatpush.xpose.msra.mxu0 0.0
    %669 = vmatpush.xpose.msra.mxu0 0.0
    %670 = vmatpush.xpose.msra.mxu0 0.0
    %671 = vmatpush.xpose.msra.mxu0 0.0
    %672 = vmatpush.xpose.msra.mxu0 0.0
    %673 = vmatpush.xpose.msra.mxu0 0.0
    %674 = vmatpush.xpose.msra.mxu0 0.0
    %675 = vmatpush.xpose.msra.mxu0 0.0
    %676 = vmatpush.xpose.msra.mxu0 0.0
    %677 = vmatpush.xpose.msra.mxu0 %v660
    %678 = vmatmul.f32.gmra.mxu0 %v657
    %v679 = vpop.f32.mrf.mxu0
    %v680 = vadd.f32 0.0, %v679
    %681 = vdwg.mxu0
    %v683 = vsel %vm81, %v570, 0
    %v686 = vsel %vm81, %v609, 0
    %688 = vmatpush.xpose.msra.mxu0 0.0
    %689 = vmatpush.xpose.msra.mxu0 0.0
    %690 = vmatpush.xpose.msra.mxu0 0.0
    %691 = vmatpush.xpose.msra.mxu0 0.0
    %692 = vmatpush.xpose.msra.mxu0 0.0
    %693 = vmatpush.xpose.msra.mxu0 0.0
    %694 = vmatpush.xpose.msra.mxu0 0.0
    %695 = vmatpush.xpose.msra.mxu0 0.0
    %696 = vmatpush.xpose.msra.mxu0 0.0
    %697 = vmatpush.xpose.msra.mxu0 0.0
    %698 = vmatpush.xpose.msra.mxu0 0.0
    %699 = vmatpush.xpose.msra.mxu0 0.0
    %700 = vmatpush.xpose.msra.mxu0 0.0
    %701 = vmatpush.xpose.msra.mxu0 0.0
    %702 = vmatpush.xpose.msra.mxu0 0.0
    %703 = vmatpush.xpose.msra.mxu0 %v686
    %704 = vmatmul.f32.gmra.mxu0 %v683
    %v705 = vpop.f32.mrf.mxu0
    %v706 = vadd.f32 0.0, %v705
    %707 = vdwg.mxu0
    %v709 = vsel %vm81, %v573, 0
    %v712 = vsel %vm81, %v612, 0
    %714 = vmatpush.xpose.msra.mxu0 0.0
    %715 = vmatpush.xpose.msra.mxu0 0.0
    %716 = vmatpush.xpose.msra.mxu0 0.0
    %717 = vmatpush.xpose.msra.mxu0 0.0
    %718 = vmatpush.xpose.msra.mxu0 0.0
    %719 = vmatpush.xpose.msra.mxu0 0.0
    %720 = vmatpush.xpose.msra.mxu0 0.0
    %721 = vmatpush.xpose.msra.mxu0 0.0
    %722 = vmatpush.xpose.msra.mxu0 0.0
    %723 = vmatpush.xpose.msra.mxu0 0.0
    %724 = vmatpush.xpose.msra.mxu0 0.0
    %725 = vmatpush.xpose.msra.mxu0 0.0
    %726 = vmatpush.xpose.msra.mxu0 0.0
    %727 = vmatpush.xpose.msra.mxu0 0.0
    %728 = vmatpush.xpose.msra.mxu0 0.0
    %729 = vmatpush.xpose.msra.mxu0 %v712
    %730 = vmatmul.f32.gmra.mxu0 %v709
    %v731 = vpop.f32.mrf.mxu0
    %v732 = vadd.f32 0.0, %v731
    %733 = vdwg.mxu0
    %v735 = vsel %vm81, %v576, 0
    %v738 = vsel %vm81, %v615, 0
    %740 = vmatpush.xpose.msra.mxu0 0.0
    %741 = vmatpush.xpose.msra.mxu0 0.0
    %742 = vmatpush.xpose.msra.mxu0 0.0
    %743 = vmatpush.xpose.msra.mxu0 0.0
    %744 = vmatpush.xpose.msra.mxu0 0.0
    %745 = vmatpush.xpose.msra.mxu0 0.0
    %746 = vmatpush.xpose.msra.mxu0 0.0
    %747 = vmatpush.xpose.msra.mxu0 0.0
    %748 = vmatpush.xpose.msra.mxu0 0.0
    %749 = vmatpush.xpose.msra.mxu0 0.0
    %750 = vmatpush.xpose.msra.mxu0 0.0
    %751 = vmatpush.xpose.msra.mxu0 0.0
    %752 = vmatpush.xpose.msra.mxu0 0.0
    %753 = vmatpush.xpose.msra.mxu0 0.0
    %754 = vmatpush.xpose.msra.mxu0 0.0
    %755 = vmatpush.xpose.msra.mxu0 %v738
    %756 = vmatmul.f32.gmra.mxu0 %v735
    %v757 = vpop.f32.mrf.mxu0
    %v758 = vadd.f32 0.0, %v757
    %759 = vdwg.mxu0
    %v760 = vsel %vm352, %v680, -inf
    %761 = vmax.xlane.f32.xlu0 %v760
    %v762 = vpop.xlane.xlu0 %761
    %v763 = vsel %vm352, %v706, -inf
    %764 = vmax.xlane.f32.xlu0 %v763
    %v765 = vpop.xlane.xlu0 %764
    %v766 = vsel %vm352, %v732, -inf
    %767 = vmax.xlane.f32.xlu0 %v766
    %v768 = vpop.xlane.xlu0 %767
    %v769 = vsel %vm352, %v758, -inf
    %770 = vmax.xlane.f32.xlu0 %v769
    %v771 = vpop.xlane.xlu0 %770
    %v772 = vsub.f32 %v680, %v762
    %v773 = vsub.f32 %v706, %v765
    %v774 = vsub.f32 %v732, %v768
    %v775 = vsub.f32 %v758, %v771
    %v776 = vmul.f32 %v772, 1.442695
    %v777 = vpow.pop %v776
    %v778 = vmul.f32 %v773, 1.442695
    %v779 = vpow.pop %v778
    %v780 = vmul.f32 %v774, 1.442695
    %v781 = vpow.pop %v780
    %v782 = vmul.f32 %v775, 1.442695
    %v783 = vpow.pop %v782
    %v784 = vsel %vm352, %v777, 0.0
    %785 = vadd.xlane.f32.xlu0 %v784
    %v786 = vpop.xlane.xlu0 %785
    %v787 = vsel %vm352, %v779, 0.0
    %788 = vadd.xlane.f32.xlu0 %v787
    %v789 = vpop.xlane.xlu0 %788
    %v790 = vsel %vm352, %v781, 0.0
    %791 = vadd.xlane.f32.xlu0 %v790
    %v792 = vpop.xlane.xlu0 %791
    %v793 = vsel %vm352, %v783, 0.0
    %794 = vadd.xlane.f32.xlu0 %v793
    %v795 = vpop.xlane.xlu0 %794
    %v796 = vrcp.pop %v786
    %v797 = vrcp.pop %v789
    %v798 = vrcp.pop %v792
    %v799 = vrcp.pop %v795
    %v800 = vmul.f32 %v777, %v796
    %v801 = vmul.f32 %v779, %v797
    %v802 = vmul.f32 %v781, %v798
    %v803 = vmul.f32 %v783, %v799
    %v805 = vsel %vm352, %v800, 0
    %807 = vmatpush.msra.mxu0 0.0
    %808 = vmatpush.msra.mxu0 0.0
    %809 = vmatpush.msra.mxu0 0.0
    %810 = vmatpush.msra.mxu0 0.0
    %811 = vmatpush.msra.mxu0 0.0
    %812 = vmatpush.msra.mxu0 0.0
    %813 = vmatpush.msra.mxu0 0.0
    %814 = vmatpush.msra.mxu0 0.0
    %815 = vmatpush.msra.mxu0 0.0
    %816 = vmatpush.msra.mxu0 0.0
    %817 = vmatpush.msra.mxu0 0.0
    %818 = vmatpush.msra.mxu0 0.0
    %819 = vmatpush.msra.mxu0 0.0
    %820 = vmatpush.msra.mxu0 0.0
    %821 = vmatpush.msra.mxu0 0.0
    %822 = vmatpush.msra.mxu0 %v645
    %823 = vmatmul.f32.gmra.mxu0 %v805
    %v824 = vpop.f32.mrf.mxu0
    %v825 = vadd.f32 0.0, %v824
    %826 = vdwg.mxu0
    %v828 = vsel %vm352, %v801, 0
    %830 = vmatpush.msra.mxu0 0.0
    %831 = vmatpush.msra.mxu0 0.0
    %832 = vmatpush.msra.mxu0 0.0
    %833 = vmatpush.msra.mxu0 0.0
    %834 = vmatpush.msra.mxu0 0.0
    %835 = vmatpush.msra.mxu0 0.0
    %836 = vmatpush.msra.mxu0 0.0
    %837 = vmatpush.msra.mxu0 0.0
    %838 = vmatpush.msra.mxu0 0.0
    %839 = vmatpush.msra.mxu0 0.0
    %840 = vmatpush.msra.mxu0 0.0
    %841 = vmatpush.msra.mxu0 0.0
    %842 = vmatpush.msra.mxu0 0.0
    %843 = vmatpush.msra.mxu0 0.0
    %844 = vmatpush.msra.mxu0 0.0
    %845 = vmatpush.msra.mxu0 %v648
    %846 = vmatmul.f32.gmra.mxu0 %v828
    %v847 = vpop.f32.mrf.mxu0
    %v848 = vadd.f32 0.0, %v847
    %849 = vdwg.mxu0
    %v851 = vsel %vm352, %v802, 0
    %853 = vmatpush.msra.mxu0 0.0
    %854 = vmatpush.msra.mxu0 0.0
    %855 = vmatpush.msra.mxu0 0.0
    %856 = vmatpush.msra.mxu0 0.0
    %857 = vmatpush.msra.mxu0 0.0
    %858 = vmatpush.msra.mxu0 0.0
    %859 = vmatpush.msra.mxu0 0.0
    %860 = vmatpush.msra.mxu0 0.0
    %861 = vmatpush.msra.mxu0 0.0
    %862 = vmatpush.msra.mxu0 0.0
    %863 = vmatpush.msra.mxu0 0.0
    %864 = vmatpush.msra.mxu0 0.0
    %865 = vmatpush.msra.mxu0 0.0
    %866 = vmatpush.msra.mxu0 0.0
    %867 = vmatpush.msra.mxu0 0.0
    %868 = vmatpush.msra.mxu0 %v651
    %869 = vmatmul.f32.gmra.mxu0 %v851
    %v870 = vpop.f32.mrf.mxu0
    %v871 = vadd.f32 0.0, %v870
    %872 = vdwg.mxu0
    %v874 = vsel %vm352, %v803, 0
    %876 = vmatpush.msra.mxu0 0.0
    %877 = vmatpush.msra.mxu0 0.0
    %878 = vmatpush.msra.mxu0 0.0
    %879 = vmatpush.msra.mxu0 0.0
    %880 = vmatpush.msra.mxu0 0.0
    %881 = vmatpush.msra.mxu0 0.0
    %882 = vmatpush.msra.mxu0 0.0
    %883 = vmatpush.msra.mxu0 0.0
    %884 = vmatpush.msra.mxu0 0.0
    %885 = vmatpush.msra.mxu0 0.0
    %886 = vmatpush.msra.mxu0 0.0
    %887 = vmatpush.msra.mxu0 0.0
    %888 = vmatpush.msra.mxu0 0.0
    %889 = vmatpush.msra.mxu0 0.0
    %890 = vmatpush.msra.mxu0 0.0
    %891 = vmatpush.msra.mxu0 %v654
    %892 = vmatmul.f32.gmra.mxu0 %v874
    %v893 = vpop.f32.mrf.mxu0
    %v894 = vadd.f32 0.0, %v893
    %895 = vdwg.mxu0
    %s896 = scalar_lea.vmem %s10, 16
    %v897 = vld [vmem:[%s896] sm:$0xff]
    %v898 = vld [vmem:[%s896 + $0x8] sm:$0xff]
    %v900 = vsel %vm81, %v825, 0
    %v903 = vsel %vm81, %v848, 0
    %v906 = vsel %vm81, %v871, 0
    %v909 = vsel %vm81, %v894, 0
    %911 = vmatpush.msra.mxu0 0.0
    %912 = vmatpush.msra.mxu0 0.0
    %913 = vmatpush.msra.mxu0 0.0
    %914 = vmatpush.msra.mxu0 0.0
    %915 = vmatpush.msra.mxu0 0.0
    %916 = vmatpush.msra.mxu0 0.0
    %917 = vmatpush.msra.mxu0 0.0
    %918 = vmatpush.msra.mxu0 0.0
    %919 = vmatpush.msra.mxu0 0.0
    %920 = vmatpush.msra.mxu0 0.0
    %921 = vmatpush.msra.mxu0 0.0
    %922 = vmatpush.msra.mxu0 0.0
    %923 = vmatpush.msra.mxu0 0.0
    %924 = vmatpush.msra.mxu0 0.0
    %925 = vmatpush.msra.mxu0 %v898
    %926 = vmatpush.msra.mxu0 %v897
    %927 = vmatmul.f32.gmra.mxu0 %v900
    %v928 = vpop.f32.mrf.mxu0
    %v929 = vadd.f32 0.0, %v928
    %930 = vmatmul.f32.gmra.mxu0 %v903
    %v931 = vpop.f32.mrf.mxu0
    %v932 = vadd.f32 0.0, %v931
    %933 = vmatmul.f32.gmra.mxu0 %v906
    %v934 = vpop.f32.mrf.mxu0
    %v935 = vadd.f32 0.0, %v934
    %936 = vmatmul.f32.gmra.mxu0 %v909
    %v937 = vpop.f32.mrf.mxu0
    %v938 = vadd.f32 0.0, %v937
    %939 = vdwg.mxu0
    %v940 = vadd.f32 %v535, %v929
    %v941 = vadd.f32 %v536, %v932
    %v942 = vadd.f32 %v537, %v935
    %v943 = vadd.f32 %v538, %v938
    %v944 = vadd.f32 %v112, %v940
    %v945 = vadd.f32 %v115, %v941
    %v946 = vadd.f32 %v118, %v942
    %v947 = vadd.f32 %v121, %v943
    %v948 = vld [vmem:[%s16] sm:$0x1]
    %v949 = vld [vmem:[%s17] sm:$0x1]
    %v950 = vsel %vm132, %v944, 0.0
    %951 = vadd.xlane.f32.xlu0 %v950
    %v952 = vpop.xlane.xlu0 %951
    %v953 = vsel %vm132, %v945, 0.0
    %954 = vadd.xlane.f32.xlu0 %v953
    %v955 = vpop.xlane.xlu0 %954
    %v956 = vsel %vm132, %v946, 0.0
    %957 = vadd.xlane.f32.xlu0 %v956
    %v958 = vpop.xlane.xlu0 %957
    %v959 = vsel %vm132, %v947, 0.0
    %960 = vadd.xlane.f32.xlu0 %v959
    %v961 = vpop.xlane.xlu0 %960
    %v962 = vrcp.pop 32.0
    %v963 = vmul.f32 32.0, %v962
    %v964 = vsub.f32 1.0, %v963
    %v965 = vmul.f32 %v962, %v964
    %v966 = vadd.f32 %v962, %v965
    %vm967 = vweird.f32 %v962
    %v968 = vsel %vm967, %v962, %v966
    %v969 = vmul.f32 %v952, %v968
    %v970 = vmul.f32 %v955, %v968
    %v971 = vmul.f32 %v958, %v968
    %v972 = vmul.f32 %v961, %v968
    %v973 = vsub.f32 %v944, %v969
    %v974 = vsub.f32 %v945, %v970
    %v975 = vsub.f32 %v946, %v971
    %v976 = vsub.f32 %v947, %v972
    %v977 = vmul.f32 %v973, %v973
    %v978 = vmul.f32 %v974, %v974
    %v979 = vmul.f32 %v975, %v975
    %v980 = vmul.f32 %v976, %v976
    %v981 = vsel %vm132, %v977, 0.0
    %982 = vadd.xlane.f32.xlu0 %v981
    %v983 = vpop.xlane.xlu0 %982
    %v984 = vsel %vm132, %v978, 0.0
    %985 = vadd.xlane.f32.xlu0 %v984
    %v986 = vpop.xlane.xlu0 %985
    %v987 = vsel %vm132, %v979, 0.0
    %988 = vadd.xlane.f32.xlu0 %v987
    %v989 = vpop.xlane.xlu0 %988
    %v990 = vsel %vm132, %v980, 0.0
    %991 = vadd.xlane.f32.xlu0 %v990
    %v992 = vpop.xlane.xlu0 %991
    %v993 = vmul.f32 %v983, %v968
    %v994 = vmul.f32 %v986, %v968
    %v995 = vmul.f32 %v989, %v968
    %v996 = vmul.f32 %v992, %v968
    %v997 = vadd.f32 %v993, 1e-05
    %v998 = vadd.f32 %v994, 1e-05
    %v999 = vadd.f32 %v995, 1e-05
    %v1000 = vadd.f32 %v996, 1e-05
    %v1001 = vrsqrt.pop %v997
    %v1002 = vmul.f32 %v1001, %v997
    %v1003 = vmul.f32 %v1002, %v1001
    %v1004 = vmul.f32 0.5, %v1003
    %v1005 = vsub.f32 1.5, %v1004
    %v1006 = vmul.f32 %v1001, %v1005
    %vm1007 = vweird.f32 %v997
    %vm1008 = vweird.f32 %v1001
    %vm1009 = vmor %vm1007, %vm1008
    %v1010 = vsel %vm1009, %v1001, %v1006
    %v1011 = vrsqrt.pop %v998
    %v1012 = vmul.f32 %v1011, %v998
    %v1013 = vmul.f32 %v1012, %v1011
    %v1014 = vmul.f32 0.5, %v1013
    %v1015 = vsub.f32 1.5, %v1014
    %v1016 = vmul.f32 %v1011, %v1015
    %vm1017 = vweird.f32 %v998
    %vm1018 = vweird.f32 %v1011
    %vm1019 = vmor %vm1017, %vm1018
    %v1020 = vsel %vm1019, %v1011, %v1016
    %v1021 = vrsqrt.pop %v999
    %v1022 = vmul.f32 %v1021, %v999
    %v1023 = vmul.f32 %v1022, %v1021
    %v1024 = vmul.f32 0.5, %v1023
    %v1025 = vsub.f32 1.5, %v1024
    %v1026 = vmul.f32 %v1021, %v1025
    %vm1027 = vweird.f32 %v999
    %vm1028 = vweird.f32 %v1021
    %vm1029 = vmor %vm1027, %vm1028
    %v1030 = vsel %vm1029, %v1021, %v1026
    %v1031 = vrsqrt.pop %v1000
    %v1032 = vmul.f32 %v1031, %v1000
    %v1033 = vmul.f32 %v1032, %v1031
    %v1034 = vmul.f32 0.5, %v1033
    %v1035 = vsub.f32 1.5, %v1034
    %v1036 = vmul.f32 %v1031, %v1035
    %vm1037 = vweird.f32 %v1000
    %vm1038 = vweird.f32 %v1031
    %vm1039 = vmor %vm1037, %vm1038
    %v1040 = vsel %vm1039, %v1031, %v1036
    %v1041 = vmul.f32 %v973, %v1010
    %v1042 = vmul.f32 %v974, %v1020
    %v1043 = vmul.f32 %v975, %v1030
    %v1044 = vmul.f32 %v976, %v1040
    %v1046 = vperm.slane %v948, 0
    %v1048 = vmul.f32 %v1041, %v1046
    %v1049 = vmul.f32 %v1042, %v1046
    %v1050 = vmul.f32 %v1043, %v1046
    %v1051 = vmul.f32 %v1044, %v1046
    %v1053 = vperm.slane %v949, 0
    %v1055 = vadd.f32 %v1048, %v1053
    %v1056 = vadd.f32 %v1049, %v1053
    %v1057 = vadd.f32 %v1050, %v1053
    %v1058 = vadd.f32 %v1051, %v1053
    %v1059 = vld [vmem:[%s12] sm:$0xff]
    %v1060 = vld [vmem:[%s12 + $0x8] sm:$0xff]
    %v1061 = vld [vmem:[%s12 + $0x10] sm:$0xff]
    %v1062 = vld [vmem:[%s12 + $0x18] sm:$0xff]
    %v1063 = vld [vmem:[%s13] sm:$0x1]
    %v1065 = vperm.slane %v1063, 0
    %v1068 = vsel %vm132, %v1055, 0
    %v1071 = vsel %vm132, %v1056, 0
    %v1074 = vsel %vm132, %v1057, 0
    %v1077 = vsel %vm132, %v1058, 0
    %1079 = vmatpush.msra.mxu0 0.0
    %1080 = vmatpush.msra.mxu0 0.0
    %1081 = vmatpush.msra.mxu0 0.0
    %1082 = vmatpush.msra.mxu0 0.0
    %1083 = vmatpush.msra.mxu0 0.0
    %1084 = vmatpush.msra.mxu0 0.0
    %1085 = vmatpush.msra.mxu0 0.0
    %1086 = vmatpush.msra.mxu0 0.0
    %1087 = vmatpush.msra.mxu0 0.0
    %1088 = vmatpush.msra.mxu0 0.0
    %1089 = vmatpush.msra.mxu0 0.0
    %1090 = vmatpush.msra.mxu0 0.0
    %1091 = vmatpush.msra.mxu0 %v1062
    %1092 = vmatpush.msra.mxu0 %v1061
    %1093 = vmatpush.msra.mxu0 %v1060
    %1094 = vmatpush.msra.mxu0 %v1059
    %1095 = vmatmul.f32.gmra.mxu0 %v1068
    %v1096 = vpop.f32.mrf.mxu0
    %v1097 = vadd.f32 %v1065, %v1096
    %1098 = vmatmul.f32.gmra.mxu0 %v1071
    %v1099 = vpop.f32.mrf.mxu0
    %v1100 = vadd.f32 %v1065, %v1099
    %1101 = vmatmul.f32.gmra.mxu0 %v1074
    %v1102 = vpop.f32.mrf.mxu0
    %v1103 = vadd.f32 %v1065, %v1102
    %1104 = vmatmul.f32.gmra.mxu0 %v1077
    %v1105 = vpop.f32.mrf.mxu0
    %v1106 = vadd.f32 %v1065, %v1105
    %1107 = vdwg.mxu0
    %v1108 = vmax.f32 %v1097, 0.0
    %v1109 = vmax.f32 %v1100, 0.0
    %v1110 = vmax.f32 %v1103, 0.0
    %v1111 = vmax.f32 %v1106, 0.0
    %v1112 = vld [vmem:[%s14] sm:$0xff]
    %v1113 = vld [vmem:[%s14 + $0x8] sm:$0xff]
    %v1114 = vld [vmem:[%s14 + $0x10] sm:$0xff]
    %v1115 = vld [vmem:[%s14 + $0x18] sm:$0xff]
    %v1116 = vld [vmem:[%s14 + $0x20] sm:$0xff]
    %v1117 = vld [vmem:[%s14 + $0x28] sm:$0xff]
    %v1118 = vld [vmem:[%s14 + $0x30] sm:$0xff]
    %v1119 = vld [vmem:[%s14 + $0x38] sm:$0xff]
    %v1120 = vld [vmem:[%s14 + $0x40] sm:$0xff]
    %v1121 = vld [vmem:[%s14 + $0x48] sm:$0xff]
    %v1122 = vld [vmem:[%s14 + $0x50] sm:$0xff]
    %v1123 = vld [vmem:[%s14 + $0x58] sm:$0xff]
    %v1124 = vld [vmem:[%s14 + $0x60] sm:$0xff]
    %v1125 = vld [vmem:[%s14 + $0x68] sm:$0xff]
    %v1126 = vld [vmem:[%s14 + $0x70] sm:$0xff]
    %v1127 = vld [vmem:[%s14 + $0x78] sm:$0xff]
    %v1128 = vld [vmem:[%s15] sm:$0x1]
    %v1130 = vperm.slane %v1128, 0
    %1132 = vmatpush.msra.mxu0 %v1127
    %1133 = vmatpush.msra.mxu0 %v1126
    %1134 = vmatpush.msra.mxu0 %v1125
    %1135 = vmatpush.msra.mxu0 %v1124
    %1136 = vmatpush.msra.mxu0 %v1123
    %1137 = vmatpush.msra.mxu0 %v1122
    %1138 = vmatpush.msra.mxu0 %v1121
    %1139 = vmatpush.msra.mxu0 %v1120
    %1140 = vmatpush.msra.mxu0 %v1119
    %1141 = vmatpush.msra.mxu0 %v1118
    %1142 = vmatpush.msra.mxu0 %v1117
    %1143 = vmatpush.msra.mxu0 %v1116
    %1144 = vmatpush.msra.mxu0 %v1115
    %1145 = vmatpush.msra.mxu0 %v1114
    %1146 = vmatpush.msra.mxu0 %v1113
    %1147 = vmatpush.msra.mxu0 %v1112
    %1148 = vmatmul.f32.gmra.mxu0 %v1108
    %v1149 = vpop.f32.mrf.mxu0
    %v1150 = vadd.f32 %v1130, %v1149
    %1151 = vmatmul.f32.gmra.mxu0 %v1109
    %v1152 = vpop.f32.mrf.mxu0
    %v1153 = vadd.f32 %v1130, %v1152
    %1154 = vmatmul.f32.gmra.mxu0 %v1110
    %v1155 = vpop.f32.mrf.mxu0
    %v1156 = vadd.f32 %v1130, %v1155
    %1157 = vmatmul.f32.gmra.mxu0 %v1111
    %v1158 = vpop.f32.mrf.mxu0
    %v1159 = vadd.f32 %v1130, %v1158
    %1160 = vdwg.mxu0
    %v1161 = vadd.f32 %v1055, %v1150
    %v1162 = vadd.f32 %v1056, %v1153
    %v1163 = vadd.f32 %v1057, %v1156
    %v1164 = vadd.f32 %v1058, %v1159
    %v1165 = vld [vmem:[%s18] sm:$0x1]
    %v1166 = vld [vmem:[%s19] sm:$0x1]
    %v1167 = vsel %vm132, %v1161, 0.0
    %1168 = vadd.xlane.f32.xlu0 %v1167
    %v1169 = vpop.xlane.xlu0 %1168
    %v1170 = vsel %vm132, %v1162, 0.0
    %1171 = vadd.xlane.f32.xlu0 %v1170
    %v1172 = vpop.xlane.xlu0 %1171
    %v1173 = vsel %vm132, %v1163, 0.0
    %1174 = vadd.xlane.f32.xlu0 %v1173
    %v1175 = vpop.xlane.xlu0 %1174
    %v1176 = vsel %vm132, %v1164, 0.0
    %1177 = vadd.xlane.f32.xlu0 %v1176
    %v1178 = vpop.xlane.xlu0 %1177
    %v1179 = vmul.f32 %v1169, %v968
    %v1180 = vmul.f32 %v1172, %v968
    %v1181 = vmul.f32 %v1175, %v968
    %v1182 = vmul.f32 %v1178, %v968
    %v1183 = vsub.f32 %v1161, %v1179
    %v1184 = vsub.f32 %v1162, %v1180
    %v1185 = vsub.f32 %v1163, %v1181
    %v1186 = vsub.f32 %v1164, %v1182
    %v1187 = vmul.f32 %v1183, %v1183
    %v1188 = vmul.f32 %v1184, %v1184
    %v1189 = vmul.f32 %v1185, %v1185
    %v1190 = vmul.f32 %v1186, %v1186
    %v1191 = vsel %vm132, %v1187, 0.0
    %1192 = vadd.xlane.f32.xlu0 %v1191
    %v1193 = vpop.xlane.xlu0 %1192
    %v1194 = vsel %vm132, %v1188, 0.0
    %1195 = vadd.xlane.f32.xlu0 %v1194
    %v1196 = vpop.xlane.xlu0 %1195
    %v1197 = vsel %vm132, %v1189, 0.0
    %1198 = vadd.xlane.f32.xlu0 %v1197
    %v1199 = vpop.xlane.xlu0 %1198
    %v1200 = vsel %vm132, %v1190, 0.0
    %1201 = vadd.xlane.f32.xlu0 %v1200
    %v1202 = vpop.xlane.xlu0 %1201
    %v1203 = vmul.f32 %v1193, %v968
    %v1204 = vmul.f32 %v1196, %v968
    %v1205 = vmul.f32 %v1199, %v968
    %v1206 = vmul.f32 %v1202, %v968
    %v1207 = vadd.f32 %v1203, 1e-05
    %v1208 = vadd.f32 %v1204, 1e-05
    %v1209 = vadd.f32 %v1205, 1e-05
    %v1210 = vadd.f32 %v1206, 1e-05
    %v1211 = vrsqrt.pop %v1207
    %v1212 = vmul.f32 %v1211, %v1207
    %v1213 = vmul.f32 %v1212, %v1211
    %v1214 = vmul.f32 0.5, %v1213
    %v1215 = vsub.f32 1.5, %v1214
    %v1216 = vmul.f32 %v1211, %v1215
    %vm1217 = vweird.f32 %v1207
    %vm1218 = vweird.f32 %v1211
    %vm1219 = vmor %vm1217, %vm1218
    %v1220 = vsel %vm1219, %v1211, %v1216
    %v1221 = vrsqrt.pop %v1208
    %v1222 = vmul.f32 %v1221, %v1208
    %v1223 = vmul.f32 %v1222, %v1221
    %v1224 = vmul.f32 0.5, %v1223
    %v1225 = vsub.f32 1.5, %v1224
    %v1226 = vmul.f32 %v1221, %v1225
    %vm1227 = vweird.f32 %v1208
    %vm1228 = vweird.f32 %v1221
    %vm1229 = vmor %vm1227, %vm1228
    %v1230 = vsel %vm1229, %v1221, %v1226
    %v1231 = vrsqrt.pop %v1209
    %v1232 = vmul.f32 %v1231, %v1209
    %v1233 = vmul.f32 %v1232, %v1231
    %v1234 = vmul.f32 0.5, %v1233
    %v1235 = vsub.f32 1.5, %v1234
    %v1236 = vmul.f32 %v1231, %v1235
    %vm1237 = vweird.f32 %v1209
    %vm1238 = vweird.f32 %v1231
    %vm1239 = vmor %vm1237, %vm1238
    %v1240 = vsel %vm1239, %v1231, %v1236
    %v1241 = vrsqrt.pop %v1210
    %v1242 = vmul.f32 %v1241, %v1210
    %v1243 = vmul.f32 %v1242, %v1241
    %v1244 = vmul.f32 0.5, %v1243
    %v1245 = vsub.f32 1.5, %v1244
    %v1246 = vmul.f32 %v1241, %v1245
    %vm1247 = vweird.f32 %v1210
    %vm1248 = vweird.f32 %v1241
    %vm1249 = vmor %vm1247, %vm1248
    %v1250 = vsel %vm1249, %v1241, %v1246
    %v1251 = vmul.f32 %v1183, %v1220
    %v1252 = vmul.f32 %v1184, %v1230
    %v1253 = vmul.f32 %v1185, %v1240
    %v1254 = vmul.f32 %v1186, %v1250
    %v1256 = vperm.slane %v1165, 0
    %v1258 = vmul.f32 %v1251, %v1256
    %v1259 = vmul.f32 %v1252, %v1256
    %v1260 = vmul.f32 %v1253, %v1256
    %v1261 = vmul.f32 %v1254, %v1256
    %v1263 = vperm.slane %v1166, 0
    %v1265 = vadd.f32 %v1258, %v1263
    %v1266 = vadd.f32 %v1259, %v1263
    %v1267 = vadd.f32 %v1260, %v1263
    %v1268 = vadd.f32 %v1261, %v1263
    %s1269 = scalar_lea.vmem %s11, 1
    %v1270 = vld [vmem:[%s1269] sm:$0x1]
    %s1271 = scalar_lea.vmem %s4, 64
    %v1272 = vld [vmem:[%s1271] sm:$0xff]
    %v1273 = vld [vmem:[%s1271 + $0x8] sm:$0xff]
    %v1274 = vld [vmem:[%s1271 + $0x10] sm:$0xff]
    %v1275 = vld [vmem:[%s1271 + $0x18] sm:$0xff]
    %s1276 = scalar_lea.vmem %s5, 2
    %v1277 = vld [vmem:[%s1276] sm:$0x1]
    %v1279 = vperm.slane %v1277, 0
    %v1285 = vrot.slane %v1265, 7
    %v1286 = vrot.slane %v1266, 6
    %vm1287 = vcmask 1041409
    %v1288 = vsel %vm1287, %v1286, %v1285
    %v1289 = vrot.slane %v1267, 5
    %vm1290 = vcmask 1042434
    %v1291 = vsel %vm1290, %v1289, %v1288
    %v1292 = vrot.slane %v1268, 4
    %vm1293 = vcmask 1043459
    %v1294 = vsel %vm1293, %v1292, %v1291
    %v1295 = vsel %vm132, %v1294, 0
    %1297 = vmatpush.msra.mxu0 0.0
    %1298 = vmatpush.msra.mxu0 0.0
    %1299 = vmatpush.msra.mxu0 0.0
    %1300 = vmatpush.msra.mxu0 0.0
    %1301 = vmatpush.msra.mxu0 0.0
    %1302 = vmatpush.msra.mxu0 0.0
    %1303 = vmatpush.msra.mxu0 0.0
    %1304 = vmatpush.msra.mxu0 0.0
    %1305 = vmatpush.msra.mxu0 0.0
    %1306 = vmatpush.msra.mxu0 0.0
    %1307 = vmatpush.msra.mxu0 0.0
    %1308 = vmatpush.msra.mxu0 0.0
    %1309 = vmatpush.msra.mxu0 %v1275
    %1310 = vmatpush.msra.mxu0 %v1274
    %1311 = vmatpush.msra.mxu0 %v1273
    %1312 = vmatpush.msra.mxu0 %v1272
    %1313 = vmatmul.f32.gmra.mxu0 %v1295
    %v1314 = vpop.f32.mrf.mxu0
    %v1315 = vadd.f32 %v1279, %v1314
    %1316 = vdwg.mxu0
    %v1318 = vrot.slane %v1315, 1
    %v1319 = vrot.slane %v1315, 2
    %v1320 = vrot.slane %v1315, 3
    %s1321 = scalar_lea.vmem %s6, 64
    %v1322 = vld [vmem:[%s1321] sm:$0xff]
    %v1323 = vld [vmem:[%s1321 + $0x8] sm:$0xff]
    %v1324 = vld [vmem:[%s1321 + $0x10] sm:$0xff]
    %v1325 = vld [vmem:[%s1321 + $0x18] sm:$0xff]
    %s1326 = scalar_lea.vmem %s7, 2
    %v1327 = vld [vmem:[%s1326] sm:$0x1]
    %v1329 = vperm.slane %v1327, 0
    %v1331 = vsel %vm132, %v1265, 0
    %v1333 = vsel %vm132, %v1266, 0
    %v1335 = vsel %vm132, %v1267, 0
    %v1337 = vsel %vm132, %v1268, 0
    %1339 = vmatpush.msra.mxu0 0.0
    %1340 = vmatpush.msra.mxu0 0.0
    %1341 = vmatpush.msra.mxu0 0.0
    %1342 = vmatpush.msra.mxu0 0.0
    %1343 = vmatpush.msra.mxu0 0.0
    %1344 = vmatpush.msra.mxu0 0.0
    %1345 = vmatpush.msra.mxu0 0.0
    %1346 = vmatpush.msra.mxu0 0.0
    %1347 = vmatpush.msra.mxu0 0.0
    %1348 = vmatpush.msra.mxu0 0.0
    %1349 = vmatpush.msra.mxu0 0.0
    %1350 = vmatpush.msra.mxu0 0.0
    %1351 = vmatpush.msra.mxu0 %v1325
    %1352 = vmatpush.msra.mxu0 %v1324
    %1353 = vmatpush.msra.mxu0 %v1323
    %1354 = vmatpush.msra.mxu0 %v1322
    %1355 = vmatmul.f32.gmra.mxu0 %v1331
    %v1356 = vpop.f32.mrf.mxu0
    %v1357 = vadd.f32 %v1329, %v1356
    %1358 = vmatmul.f32.gmra.mxu0 %v1333
    %v1359 = vpop.f32.mrf.mxu0
    %v1360 = vadd.f32 %v1329, %v1359
    %1361 = vmatmul.f32.gmra.mxu0 %v1335
    %v1362 = vpop.f32.mrf.mxu0
    %v1363 = vadd.f32 %v1329, %v1362
    %1364 = vmatmul.f32.gmra.mxu0 %v1337
    %v1365 = vpop.f32.mrf.mxu0
    %v1366 = vadd.f32 %v1329, %v1365
    %1367 = vdwg.mxu0
    %s1368 = scalar_lea.vmem %s8, 64
    %v1369 = vld [vmem:[%s1368] sm:$0xff]
    %v1370 = vld [vmem:[%s1368 + $0x8] sm:$0xff]
    %v1371 = vld [vmem:[%s1368 + $0x10] sm:$0xff]
    %v1372 = vld [vmem:[%s1368 + $0x18] sm:$0xff]
    %s1373 = scalar_lea.vmem %s9, 2
    %v1374 = vld [vmem:[%s1373] sm:$0x1]
    %v1376 = vperm.slane %v1374, 0
    %1378 = vmatpush.msra.mxu0 0.0
    %1379 = vmatpush.msra.mxu0 0.0
    %1380 = vmatpush.msra.mxu0 0.0
    %1381 = vmatpush.msra.mxu0 0.0
    %1382 = vmatpush.msra.mxu0 0.0
    %1383 = vmatpush.msra.mxu0 0.0
    %1384 = vmatpush.msra.mxu0 0.0
    %1385 = vmatpush.msra.mxu0 0.0
    %1386 = vmatpush.msra.mxu0 0.0
    %1387 = vmatpush.msra.mxu0 0.0
    %1388 = vmatpush.msra.mxu0 0.0
    %1389 = vmatpush.msra.mxu0 0.0
    %1390 = vmatpush.msra.mxu0 %v1372
    %1391 = vmatpush.msra.mxu0 %v1371
    %1392 = vmatpush.msra.mxu0 %v1370
    %1393 = vmatpush.msra.mxu0 %v1369
    %1394 = vmatmul.f32.gmra.mxu0 %v1331
    %v1395 = vpop.f32.mrf.mxu0
    %v1396 = vadd.f32 %v1376, %v1395
    %1397 = vmatmul.f32.gmra.mxu0 %v1333
    %v1398 = vpop.f32.mrf.mxu0
    %v1399 = vadd.f32 %v1376, %v1398
    %1400 = vmatmul.f32.gmra.mxu0 %v1335
    %v1401 = vpop.f32.mrf.mxu0
    %v1402 = vadd.f32 %v1376, %v1401
    %1403 = vmatmul.f32.gmra.mxu0 %v1337
    %v1404 = vpop.f32.mrf.mxu0
    %v1405 = vadd.f32 %v1376, %v1404
    %1406 = vdwg.mxu0
    %v1407 = vsel %vm81, %v1315, 0
    %v1410 = vsel %vm81, %v1357, 0
    %1412 = vmatpush.xpose.msra.mxu0 0.0
    %1413 = vmatpush.xpose.msra.mxu0 0.0
    %1414 = vmatpush.xpose.msra.mxu0 0.0
    %1415 = vmatpush.xpose.msra.mxu0 0.0
    %1416 = vmatpush.xpose.msra.mxu0 0.0
    %1417 = vmatpush.xpose.msra.mxu0 0.0
    %1418 = vmatpush.xpose.msra.mxu0 0.0
    %1419 = vmatpush.xpose.msra.mxu0 0.0
    %1420 = vmatpush.xpose.msra.mxu0 0.0
    %1421 = vmatpush.xpose.msra.mxu0 0.0
    %1422 = vmatpush.xpose.msra.mxu0 0.0
    %1423 = vmatpush.xpose.msra.mxu0 0.0
    %1424 = vmatpush.xpose.msra.mxu0 0.0
    %1425 = vmatpush.xpose.msra.mxu0 0.0
    %1426 = vmatpush.xpose.msra.mxu0 0.0
    %1427 = vmatpush.xpose.msra.mxu0 %v1410
    %1428 = vmatmul.f32.gmra.mxu0 %v1407
    %v1429 = vpop.f32.mrf.mxu0
    %v1430 = vadd.f32 0.0, %v1429
    %1431 = vdwg.mxu0
    %v1432 = vsel %vm81, %v1318, 0
    %v1435 = vsel %vm81, %v1360, 0
    %1437 = vmatpush.xpose.msra.mxu0 0.0
    %1438 = vmatpush.xpose.msra.mxu0 0.0
    %1439 = vmatpush.xpose.msra.mxu0 0.0
    %1440 = vmatpush.xpose.msra.mxu0 0.0
    %1441 = vmatpush.xpose.msra.mxu0 0.0
    %1442 = vmatpush.xpose.msra.mxu0 0.0
    %1443 = vmatpush.xpose.msra.mxu0 0.0
    %1444 = vmatpush.xpose.msra.mxu0 0.0
    %1445 = vmatpush.xpose.msra.mxu0 0.0
    %1446 = vmatpush.xpose.msra.mxu0 0.0
    %1447 = vmatpush.xpose.msra.mxu0 0.0
    %1448 = vmatpush.xpose.msra.mxu0 0.0
    %1449 = vmatpush.xpose.msra.mxu0 0.0
    %1450 = vmatpush.xpose.msra.mxu0 0.0
    %1451 = vmatpush.xpose.msra.mxu0 0.0
    %1452 = vmatpush.xpose.msra.mxu0 %v1435
    %1453 = vmatmul.f32.gmra.mxu0 %v1432
    %v1454 = vpop.f32.mrf.mxu0
    %v1455 = vadd.f32 0.0, %v1454
    %1456 = vdwg.mxu0
    %v1457 = vsel %vm81, %v1319, 0
    %v1460 = vsel %vm81, %v1363, 0
    %1462 = vmatpush.xpose.msra.mxu0 0.0
    %1463 = vmatpush.xpose.msra.mxu0 0.0
    %1464 = vmatpush.xpose.msra.mxu0 0.0
    %1465 = vmatpush.xpose.msra.mxu0 0.0
    %1466 = vmatpush.xpose.msra.mxu0 0.0
    %1467 = vmatpush.xpose.msra.mxu0 0.0
    %1468 = vmatpush.xpose.msra.mxu0 0.0
    %1469 = vmatpush.xpose.msra.mxu0 0.0
    %1470 = vmatpush.xpose.msra.mxu0 0.0
    %1471 = vmatpush.xpose.msra.mxu0 0.0
    %1472 = vmatpush.xpose.msra.mxu0 0.0
    %1473 = vmatpush.xpose.msra.mxu0 0.0
    %1474 = vmatpush.xpose.msra.mxu0 0.0
    %1475 = vmatpush.xpose.msra.mxu0 0.0
    %1476 = vmatpush.xpose.msra.mxu0 0.0
    %1477 = vmatpush.xpose.msra.mxu0 %v1460
    %1478 = vmatmul.f32.gmra.mxu0 %v1457
    %v1479 = vpop.f32.mrf.mxu0
    %v1480 = vadd.f32 0.0, %v1479
    %1481 = vdwg.mxu0
    %v1482 = vsel %vm81, %v1320, 0
    %v1485 = vsel %vm81, %v1366, 0
    %1487 = vmatpush.xpose.msra.mxu0 0.0
    %1488 = vmatpush.xpose.msra.mxu0 0.0
    %1489 = vmatpush.xpose.msra.mxu0 0.0
    %1490 = vmatpush.xpose.msra.mxu0 0.0
    %1491 = vmatpush.xpose.msra.mxu0 0.0
    %1492 = vmatpush.xpose.msra.mxu0 0.0
    %1493 = vmatpush.xpose.msra.mxu0 0.0
    %1494 = vmatpush.xpose.msra.mxu0 0.0
    %1495 = vmatpush.xpose.msra.mxu0 0.0
    %1496 = vmatpush.xpose.msra.mxu0 0.0
    %1497 = vmatpush.xpose.msra.mxu0 0.0
    %1498 = vmatpush.xpose.msra.mxu0 0.0
    %1499 = vmatpush.xpose.msra.mxu0 0.0
    %1500 = vmatpush.xpose.msra.mxu0 0.0
    %1501 = vmatpush.xpose.msra.mxu0 0.0
    %1502 = vmatpush.xpose.msra.mxu0 %v1485
    %1503 = vmatmul.f32.gmra.mxu0 %v1482
    %v1504 = vpop.f32.mrf.mxu0
    %v1505 = vadd.f32 0.0, %v1504
    %1506 = vdwg.mxu0
    %vm1507 = vcmask 57344
    %v1508 = vsel %vm1507, %v1430, -inf
    %1509 = vmax.xlane.f32.xlu0 %v1508
    %v1510 = vpop.xlane.xlu0 %1509
    %v1511 = vsel %vm1507, %v1455, -inf
    %1512 = vmax.xlane.f32.xlu0 %v1511
    %v1513 = vpop.xlane.xlu0 %1512
    %v1514 = vsel %vm1507, %v1480, -inf
    %1515 = vmax.xlane.f32.xlu0 %v1514
    %v1516 = vpop.xlane.xlu0 %1515
    %v1517 = vsel %vm1507, %v1505, -inf
    %1518 = vmax.xlane.f32.xlu0 %v1517
    %v1519 = vpop.xlane.xlu0 %1518
    %v1520 = vsub.f32 %v1430, %v1510
    %v1521 = vsub.f32 %v1455, %v1513
    %v1522 = vsub.f32 %v1480, %v1516
    %v1523 = vsub.f32 %v1505, %v1519
    %v1524 = vmul.f32 %v1520, 1.442695
    %v1525 = vpow.pop %v1524
    %v1526 = vmul.f32 %v1521, 1.442695
    %v1527 = vpow.pop %v1526
    %v1528 = vmul.f32 %v1522, 1.442695
    %v1529 = vpow.pop %v1528
    %v1530 = vmul.f32 %v1523, 1.442695
    %v1531 = vpow.pop %v1530
    %v1532 = vsel %vm1507, %v1525, 0.0
    %1533 = vadd.xlane.f32.xlu0 %v1532
    %v1534 = vpop.xlane.xlu0 %1533
    %v1535 = vsel %vm1507, %v1527, 0.0
    %1536 = vadd.xlane.f32.xlu0 %v1535
    %v1537 = vpop.xlane.xlu0 %1536
    %v1538 = vsel %vm1507, %v1529, 0.0
    %1539 = vadd.xlane.f32.xlu0 %v1538
    %v1540 = vpop.xlane.xlu0 %1539
    %v1541 = vsel %vm1507, %v1531, 0.0
    %1542 = vadd.xlane.f32.xlu0 %v1541
    %v1543 = vpop.xlane.xlu0 %1542
    %v1544 = vrcp.pop %v1534
    %v1545 = vrcp.pop %v1537
    %v1546 = vrcp.pop %v1540
    %v1547 = vrcp.pop %v1543
    %v1548 = vmul.f32 %v1525, %v1544
    %v1549 = vmul.f32 %v1527, %v1545
    %v1550 = vmul.f32 %v1529, %v1546
    %v1551 = vmul.f32 %v1531, %v1547
    %v1553 = vsel %vm352, %v1548, 0
    %1555 = vmatpush.msra.mxu0 0.0
    %1556 = vmatpush.msra.mxu0 0.0
    %1557 = vmatpush.msra.mxu0 0.0
    %1558 = vmatpush.msra.mxu0 0.0
    %1559 = vmatpush.msra.mxu0 0.0
    %1560 = vmatpush.msra.mxu0 0.0
    %1561 = vmatpush.msra.mxu0 0.0
    %1562 = vmatpush.msra.mxu0 0.0
    %1563 = vmatpush.msra.mxu0 0.0
    %1564 = vmatpush.msra.mxu0 0.0
    %1565 = vmatpush.msra.mxu0 0.0
    %1566 = vmatpush.msra.mxu0 0.0
    %1567 = vmatpush.msra.mxu0 0.0
    %1568 = vmatpush.msra.mxu0 0.0
    %1569 = vmatpush.msra.mxu0 0.0
    %1570 = vmatpush.msra.mxu0 %v1396
    %1571 = vmatmul.f32.gmra.mxu0 %v1553
    %v1572 = vpop.f32.mrf.mxu0
    %v1573 = vadd.f32 0.0, %v1572
    %1574 = vdwg.mxu0
    %v1576 = vsel %vm352, %v1549, 0
    %1578 = vmatpush.msra.mxu0 0.0
    %1579 = vmatpush.msra.mxu0 0.0
    %1580 = vmatpush.msra.mxu0 0.0
    %1581 = vmatpush.msra.mxu0 0.0
    %1582 = vmatpush.msra.mxu0 0.0
    %1583 = vmatpush.msra.mxu0 0.0
    %1584 = vmatpush.msra.mxu0 0.0
    %1585 = vmatpush.msra.mxu0 0.0
    %1586 = vmatpush.msra.mxu0 0.0
    %1587 = vmatpush.msra.mxu0 0.0
    %1588 = vmatpush.msra.mxu0 0.0
    %1589 = vmatpush.msra.mxu0 0.0
    %1590 = vmatpush.msra.mxu0 0.0
    %1591 = vmatpush.msra.mxu0 0.0
    %1592 = vmatpush.msra.mxu0 0.0
    %1593 = vmatpush.msra.mxu0 %v1399
    %1594 = vmatmul.f32.gmra.mxu0 %v1576
    %v1595 = vpop.f32.mrf.mxu0
    %v1596 = vadd.f32 0.0, %v1595
    %1597 = vdwg.mxu0
    %v1599 = vsel %vm352, %v1550, 0
    %1601 = vmatpush.msra.mxu0 0.0
    %1602 = vmatpush.msra.mxu0 0.0
    %1603 = vmatpush.msra.mxu0 0.0
    %1604 = vmatpush.msra.mxu0 0.0
    %1605 = vmatpush.msra.mxu0 0.0
    %1606 = vmatpush.msra.mxu0 0.0
    %1607 = vmatpush.msra.mxu0 0.0
    %1608 = vmatpush.msra.mxu0 0.0
    %1609 = vmatpush.msra.mxu0 0.0
    %1610 = vmatpush.msra.mxu0 0.0
    %1611 = vmatpush.msra.mxu0 0.0
    %1612 = vmatpush.msra.mxu0 0.0
    %1613 = vmatpush.msra.mxu0 0.0
    %1614 = vmatpush.msra.mxu0 0.0
    %1615 = vmatpush.msra.mxu0 0.0
    %1616 = vmatpush.msra.mxu0 %v1402
    %1617 = vmatmul.f32.gmra.mxu0 %v1599
    %v1618 = vpop.f32.mrf.mxu0
    %v1619 = vadd.f32 0.0, %v1618
    %1620 = vdwg.mxu0
    %v1622 = vsel %vm352, %v1551, 0
    %1624 = vmatpush.msra.mxu0 0.0
    %1625 = vmatpush.msra.mxu0 0.0
    %1626 = vmatpush.msra.mxu0 0.0
    %1627 = vmatpush.msra.mxu0 0.0
    %1628 = vmatpush.msra.mxu0 0.0
    %1629 = vmatpush.msra.mxu0 0.0
    %1630 = vmatpush.msra.mxu0 0.0
    %1631 = vmatpush.msra.mxu0 0.0
    %1632 = vmatpush.msra.mxu0 0.0
    %1633 = vmatpush.msra.mxu0 0.0
    %1634 = vmatpush.msra.mxu0 0.0
    %1635 = vmatpush.msra.mxu0 0.0
    %1636 = vmatpush.msra.mxu0 0.0
    %1637 = vmatpush.msra.mxu0 0.0
    %1638 = vmatpush.msra.mxu0 0.0
    %1639 = vmatpush.msra.mxu0 %v1405
    %1640 = vmatmul.f32.gmra.mxu0 %v1622
    %v1641 = vpop.f32.mrf.mxu0
    %v1642 = vadd.f32 0.0, %v1641
    %1643 = vdwg.mxu0
    %s1644 = scalar_lea.vmem %s10, 32
    %v1645 = vld [vmem:[%s1644] sm:$0xff]
    %v1646 = vld [vmem:[%s1644 + $0x8] sm:$0xff]
    %v1651 = vrot.slane %v1596, 7
    %v1652 = vsel %vm1287, %v1651, %v1573
    %v1653 = vrot.slane %v1619, 6
    %v1654 = vsel %vm1290, %v1653, %v1652
    %v1655 = vrot.slane %v1642, 5
    %v1656 = vsel %vm1293, %v1655, %v1654
    %v1657 = vsel %vm81, %v1656, 0
    %1659 = vmatpush.msra.mxu0 0.0
    %1660 = vmatpush.msra.mxu0 0.0
    %1661 = vmatpush.msra.mxu0 0.0
    %1662 = vmatpush.msra.mxu0 0.0
    %1663 = vmatpush.msra.mxu0 0.0
    %1664 = vmatpush.msra.mxu0 0.0
    %1665 = vmatpush.msra.mxu0 0.0
    %1666 = vmatpush.msra.mxu0 0.0
    %1667 = vmatpush.msra.mxu0 0.0
    %1668 = vmatpush.msra.mxu0 0.0
    %1669 = vmatpush.msra.mxu0 0.0
    %1670 = vmatpush.msra.mxu0 0.0
    %1671 = vmatpush.msra.mxu0 0.0
    %1672 = vmatpush.msra.mxu0 0.0
    %1673 = vmatpush.msra.mxu0 %v1646
    %1674 = vmatpush.msra.mxu0 %v1645
    %1675 = vmatmul.f32.gmra.mxu0 %v1657
    %v1676 = vpop.f32.mrf.mxu0
    %v1677 = vadd.f32 0.0, %v1676
    %1678 = vdwg.mxu0
    %v1680 = vperm.slane %v1270, 0
    %v1682 = vadd.f32 %v1680, %v1677
    %s1683 = scalar_lea.vmem %s4, 96
    %v1684 = vld [vmem:[%s1683] sm:$0xff]
    %v1685 = vld [vmem:[%s1683 + $0x8] sm:$0xff]
    %v1686 = vld [vmem:[%s1683 + $0x10] sm:$0xff]
    %v1687 = vld [vmem:[%s1683 + $0x18] sm:$0xff]
    %s1688 = scalar_lea.vmem %s5, 3
    %v1689 = vld [vmem:[%s1688] sm:$0x1]
    %v1691 = vperm.slane %v1689, 0
    %1693 = vmatpush.msra.mxu0 0.0
    %1694 = vmatpush.msra.mxu0 0.0
    %1695 = vmatpush.msra.mxu0 0.0
    %1696 = vmatpush.msra.mxu0 0.0
    %1697 = vmatpush.msra.mxu0 0.0
    %1698 = vmatpush.msra.mxu0 0.0
    %1699 = vmatpush.msra.mxu0 0.0
    %1700 = vmatpush.msra.mxu0 0.0
    %1701 = vmatpush.msra.mxu0 0.0
    %1702 = vmatpush.msra.mxu0 0.0
    %1703 = vmatpush.msra.mxu0 0.0
    %1704 = vmatpush.msra.mxu0 0.0
    %1705 = vmatpush.msra.mxu0 %v1687
    %1706 = vmatpush.msra.mxu0 %v1686
    %1707 = vmatpush.msra.mxu0 %v1685
    %1708 = vmatpush.msra.mxu0 %v1684
    %1709 = vmatmul.f32.gmra.mxu0 %v1295
    %v1710 = vpop.f32.mrf.mxu0
    %v1711 = vadd.f32 %v1691, %v1710
    %1712 = vdwg.mxu0
    %v1714 = vrot.slane %v1711, 1
    %v1715 = vrot.slane %v1711, 2
    %v1716 = vrot.slane %v1711, 3
    %s1717 = scalar_lea.vmem %s6, 96
    %v1718 = vld [vmem:[%s1717] sm:$0xff]
    %v1719 = vld [vmem:[%s1717 + $0x8] sm:$0xff]
    %v1720 = vld [vmem:[%s1717 + $0x10] sm:$0xff]
    %v1721 = vld [vmem:[%s1717 + $0x18] sm:$0xff]
    %s1722 = scalar_lea.vmem %s7, 3
    %v1723 = vld [vmem:[%s1722] sm:$0x1]
    %v1725 = vperm.slane %v1723, 0
    %1727 = vmatpush.msra.mxu0 0.0
    %1728 = vmatpush.msra.mxu0 0.0
    %1729 = vmatpush.msra.mxu0 0.0
    %1730 = vmatpush.msra.mxu0 0.0
    %1731 = vmatpush.msra.mxu0 0.0
    %1732 = vmatpush.msra.mxu0 0.0
    %1733 = vmatpush.msra.mxu0 0.0
    %1734 = vmatpush.msra.mxu0 0.0
    %1735 = vmatpush.msra.mxu0 0.0
    %1736 = vmatpush.msra.mxu0 0.0
    %1737 = vmatpush.msra.mxu0 0.0
    %1738 = vmatpush.msra.mxu0 0.0
    %1739 = vmatpush.msra.mxu0 %v1721
    %1740 = vmatpush.msra.mxu0 %v1720
    %1741 = vmatpush.msra.mxu0 %v1719
    %1742 = vmatpush.msra.mxu0 %v1718
    %1743 = vmatmul.f32.gmra.mxu0 %v1331
    %v1744 = vpop.f32.mrf.mxu0
    %v1745 = vadd.f32 %v1725, %v1744
    %1746 = vmatmul.f32.gmra.mxu0 %v1333
    %v1747 = vpop.f32.mrf.mxu0
    %v1748 = vadd.f32 %v1725, %v1747
    %1749 = vmatmul.f32.gmra.mxu0 %v1335
    %v1750 = vpop.f32.mrf.mxu0
    %v1751 = vadd.f32 %v1725, %v1750
    %1752 = vmatmul.f32.gmra.mxu0 %v1337
    %v1753 = vpop.f32.mrf.mxu0
    %v1754 = vadd.f32 %v1725, %v1753
    %1755 = vdwg.mxu0
    %s1756 = scalar_lea.vmem %s8, 96
    %v1757 = vld [vmem:[%s1756] sm:$0xff]
    %v1758 = vld [vmem:[%s1756 + $0x8] sm:$0xff]
    %v1759 = vld [vmem:[%s1756 + $0x10] sm:$0xff]
    %v1760 = vld [vmem:[%s1756 + $0x18] sm:$0xff]
    %s1761 = scalar_lea.vmem %s9, 3
    %v1762 = vld [vmem:[%s1761] sm:$0x1]
    %v1764 = vperm.slane %v1762, 0
    %1766 = vmatpush.msra.mxu0 0.0
    %1767 = vmatpush.msra.mxu0 0.0
    %1768 = vmatpush.msra.mxu0 0.0
    %1769 = vmatpush.msra.mxu0 0.0
    %1770 = vmatpush.msra.mxu0 0.0
    %1771 = vmatpush.msra.mxu0 0.0
    %1772 = vmatpush.msra.mxu0 0.0
    %1773 = vmatpush.msra.mxu0 0.0
    %1774 = vmatpush.msra.mxu0 0.0
    %1775 = vmatpush.msra.mxu0 0.0
    %1776 = vmatpush.msra.mxu0 0.0
    %1777 = vmatpush.msra.mxu0 0.0
    %1778 = vmatpush.msra.mxu0 %v1760
    %1779 = vmatpush.msra.mxu0 %v1759
    %1780 = vmatpush.msra.mxu0 %v1758
    %1781 = vmatpush.msra.mxu0 %v1757
    %1782 = vmatmul.f32.gmra.mxu0 %v1331
    %v1783 = vpop.f32.mrf.mxu0
    %v1784 = vadd.f32 %v1764, %v1783
    %1785 = vmatmul.f32.gmra.mxu0 %v1333
    %v1786 = vpop.f32.mrf.mxu0
    %v1787 = vadd.f32 %v1764, %v1786
    %1788 = vmatmul.f32.gmra.mxu0 %v1335
    %v1789 = vpop.f32.mrf.mxu0
    %v1790 = vadd.f32 %v1764, %v1789
    %1791 = vmatmul.f32.gmra.mxu0 %v1337
    %v1792 = vpop.f32.mrf.mxu0
    %v1793 = vadd.f32 %v1764, %v1792
    %1794 = vdwg.mxu0
    %v1795 = vsel %vm81, %v1711, 0
    %v1798 = vsel %vm81, %v1745, 0
    %1800 = vmatpush.xpose.msra.mxu0 0.0
    %1801 = vmatpush.xpose.msra.mxu0 0.0
    %1802 = vmatpush.xpose.msra.mxu0 0.0
    %1803 = vmatpush.xpose.msra.mxu0 0.0
    %1804 = vmatpush.xpose.msra.mxu0 0.0
    %1805 = vmatpush.xpose.msra.mxu0 0.0
    %1806 = vmatpush.xpose.msra.mxu0 0.0
    %1807 = vmatpush.xpose.msra.mxu0 0.0
    %1808 = vmatpush.xpose.msra.mxu0 0.0
    %1809 = vmatpush.xpose.msra.mxu0 0.0
    %1810 = vmatpush.xpose.msra.mxu0 0.0
    %1811 = vmatpush.xpose.msra.mxu0 0.0
    %1812 = vmatpush.xpose.msra.mxu0 0.0
    %1813 = vmatpush.xpose.msra.mxu0 0.0
    %1814 = vmatpush.xpose.msra.mxu0 0.0
    %1815 = vmatpush.xpose.msra.mxu0 %v1798
    %1816 = vmatmul.f32.gmra.mxu0 %v1795
    %v1817 = vpop.f32.mrf.mxu0
    %v1818 = vadd.f32 0.0, %v1817
    %1819 = vdwg.mxu0
    %v1820 = vsel %vm81, %v1714, 0
    %v1823 = vsel %vm81, %v1748, 0
    %1825 = vmatpush.xpose.msra.mxu0 0.0
    %1826 = vmatpush.xpose.msra.mxu0 0.0
    %1827 = vmatpush.xpose.msra.mxu0 0.0
    %1828 = vmatpush.xpose.msra.mxu0 0.0
    %1829 = vmatpush.xpose.msra.mxu0 0.0
    %1830 = vmatpush.xpose.msra.mxu0 0.0
    %1831 = vmatpush.xpose.msra.mxu0 0.0
    %1832 = vmatpush.xpose.msra.mxu0 0.0
    %1833 = vmatpush.xpose.msra.mxu0 0.0
    %1834 = vmatpush.xpose.msra.mxu0 0.0
    %1835 = vmatpush.xpose.msra.mxu0 0.0
    %1836 = vmatpush.xpose.msra.mxu0 0.0
    %1837 = vmatpush.xpose.msra.mxu0 0.0
    %1838 = vmatpush.xpose.msra.mxu0 0.0
    %1839 = vmatpush.xpose.msra.mxu0 0.0
    %1840 = vmatpush.xpose.msra.mxu0 %v1823
    %1841 = vmatmul.f32.gmra.mxu0 %v1820
    %v1842 = vpop.f32.mrf.mxu0
    %v1843 = vadd.f32 0.0, %v1842
    %1844 = vdwg.mxu0
    %v1845 = vsel %vm81, %v1715, 0
    %v1848 = vsel %vm81, %v1751, 0
    %1850 = vmatpush.xpose.msra.mxu0 0.0
    %1851 = vmatpush.xpose.msra.mxu0 0.0
    %1852 = vmatpush.xpose.msra.mxu0 0.0
    %1853 = vmatpush.xpose.msra.mxu0 0.0
    %1854 = vmatpush.xpose.msra.mxu0 0.0
    %1855 = vmatpush.xpose.msra.mxu0 0.0
    %1856 = vmatpush.xpose.msra.mxu0 0.0
    %1857 = vmatpush.xpose.msra.mxu0 0.0
    %1858 = vmatpush.xpose.msra.mxu0 0.0
    %1859 = vmatpush.xpose.msra.mxu0 0.0
    %1860 = vmatpush.xpose.msra.mxu0 0.0
    %1861 = vmatpush.xpose.msra.mxu0 0.0
    %1862 = vmatpush.xpose.msra.mxu0 0.0
    %1863 = vmatpush.xpose.msra.mxu0 0.0
    %1864 = vmatpush.xpose.msra.mxu0 0.0
    %1865 = vmatpush.xpose.msra.mxu0 %v1848
    %1866 = vmatmul.f32.gmra.mxu0 %v1845
    %v1867 = vpop.f32.mrf.mxu0
    %v1868 = vadd.f32 0.0, %v1867
    %1869 = vdwg.mxu0
    %v1870 = vsel %vm81, %v1716, 0
    %v1873 = vsel %vm81, %v1754, 0
    %1875 = vmatpush.xpose.msra.mxu0 0.0
    %1876 = vmatpush.xpose.msra.mxu0 0.0
    %1877 = vmatpush.xpose.msra.mxu0 0.0
    %1878 = vmatpush.xpose.msra.mxu0 0.0
    %1879 = vmatpush.xpose.msra.mxu0 0.0
    %1880 = vmatpush.xpose.msra.mxu0 0.0
    %1881 = vmatpush.xpose.msra.mxu0 0.0
    %1882 = vmatpush.xpose.msra.mxu0 0.0
    %1883 = vmatpush.xpose.msra.mxu0 0.0
    %1884 = vmatpush.xpose.msra.mxu0 0.0
    %1885 = vmatpush.xpose.msra.mxu0 0.0
    %1886 = vmatpush.xpose.msra.mxu0 0.0
    %1887 = vmatpush.xpose.msra.mxu0 0.0
    %1888 = vmatpush.xpose.msra.mxu0 0.0
    %1889 = vmatpush.xpose.msra.mxu0 0.0
    %1890 = vmatpush.xpose.msra.mxu0 %v1873
    %1891 = vmatmul.f32.gmra.mxu0 %v1870
    %v1892 = vpop.f32.mrf.mxu0
    %v1893 = vadd.f32 0.0, %v1892
    %1894 = vdwg.mxu0
    %v1895 = vsel %vm1507, %v1818, -inf
    %1896 = vmax.xlane.f32.xlu0 %v1895
    %v1897 = vpop.xlane.xlu0 %1896
    %v1898 = vsel %vm1507, %v1843, -inf
    %1899 = vmax.xlane.f32.xlu0 %v1898
    %v1900 = vpop.xlane.xlu0 %1899
    %v1901 = vsel %vm1507, %v1868, -inf
    %1902 = vmax.xlane.f32.xlu0 %v1901
    %v1903 = vpop.xlane.xlu0 %1902
    %v1904 = vsel %vm1507, %v1893, -inf
    %1905 = vmax.xlane.f32.xlu0 %v1904
    %v1906 = vpop.xlane.xlu0 %1905
    %v1907 = vsub.f32 %v1818, %v1897
    %v1908 = vsub.f32 %v1843, %v1900
    %v1909 = vsub.f32 %v1868, %v1903
    %v1910 = vsub.f32 %v1893, %v1906
    %v1911 = vmul.f32 %v1907, 1.442695
    %v1912 = vpow.pop %v1911
    %v1913 = vmul.f32 %v1908, 1.442695
    %v1914 = vpow.pop %v1913
    %v1915 = vmul.f32 %v1909, 1.442695
    %v1916 = vpow.pop %v1915
    %v1917 = vmul.f32 %v1910, 1.442695
    %v1918 = vpow.pop %v1917
    %v1919 = vsel %vm1507, %v1912, 0.0
    %1920 = vadd.xlane.f32.xlu0 %v1919
    %v1921 = vpop.xlane.xlu0 %1920
    %v1922 = vsel %vm1507, %v1914, 0.0
    %1923 = vadd.xlane.f32.xlu0 %v1922
    %v1924 = vpop.xlane.xlu0 %1923
    %v1925 = vsel %vm1507, %v1916, 0.0
    %1926 = vadd.xlane.f32.xlu0 %v1925
    %v1927 = vpop.xlane.xlu0 %1926
    %v1928 = vsel %vm1507, %v1918, 0.0
    %1929 = vadd.xlane.f32.xlu0 %v1928
    %v1930 = vpop.xlane.xlu0 %1929
    %v1931 = vrcp.pop %v1921
    %v1932 = vrcp.pop %v1924
    %v1933 = vrcp.pop %v1927
    %v1934 = vrcp.pop %v1930
    %v1935 = vmul.f32 %v1912, %v1931
    %v1936 = vmul.f32 %v1914, %v1932
    %v1937 = vmul.f32 %v1916, %v1933
    %v1938 = vmul.f32 %v1918, %v1934
    %v1940 = vsel %vm352, %v1935, 0
    %1942 = vmatpush.msra.mxu0 0.0
    %1943 = vmatpush.msra.mxu0 0.0
    %1944 = vmatpush.msra.mxu0 0.0
    %1945 = vmatpush.msra.mxu0 0.0
    %1946 = vmatpush.msra.mxu0 0.0
    %1947 = vmatpush.msra.mxu0 0.0
    %1948 = vmatpush.msra.mxu0 0.0
    %1949 = vmatpush.msra.mxu0 0.0
    %1950 = vmatpush.msra.mxu0 0.0
    %1951 = vmatpush.msra.mxu0 0.0
    %1952 = vmatpush.msra.mxu0 0.0
    %1953 = vmatpush.msra.mxu0 0.0
    %1954 = vmatpush.msra.mxu0 0.0
    %1955 = vmatpush.msra.mxu0 0.0
    %1956 = vmatpush.msra.mxu0 0.0
    %1957 = vmatpush.msra.mxu0 %v1784
    %1958 = vmatmul.f32.gmra.mxu0 %v1940
    %v1959 = vpop.f32.mrf.mxu0
    %v1960 = vadd.f32 0.0, %v1959
    %1961 = vdwg.mxu0
    %v1963 = vsel %vm352, %v1936, 0
    %1965 = vmatpush.msra.mxu0 0.0
    %1966 = vmatpush.msra.mxu0 0.0
    %1967 = vmatpush.msra.mxu0 0.0
    %1968 = vmatpush.msra.mxu0 0.0
    %1969 = vmatpush.msra.mxu0 0.0
    %1970 = vmatpush.msra.mxu0 0.0
    %1971 = vmatpush.msra.mxu0 0.0
    %1972 = vmatpush.msra.mxu0 0.0
    %1973 = vmatpush.msra.mxu0 0.0
    %1974 = vmatpush.msra.mxu0 0.0
    %1975 = vmatpush.msra.mxu0 0.0
    %1976 = vmatpush.msra.mxu0 0.0
    %1977 = vmatpush.msra.mxu0 0.0
    %1978 = vmatpush.msra.mxu0 0.0
    %1979 = vmatpush.msra.mxu0 0.0
    %1980 = vmatpush.msra.mxu0 %v1787
    %1981 = vmatmul.f32.gmra.mxu0 %v1963
    %v1982 = vpop.f32.mrf.mxu0
    %v1983 = vadd.f32 0.0, %v1982
    %1984 = vdwg.mxu0
    %v1986 = vsel %vm352, %v1937, 0
    %1988 = vmatpush.msra.mxu0 0.0
    %1989 = vmatpush.msra.mxu0 0.0
    %1990 = vmatpush.msra.mxu0 0.0
    %1991 = vmatpush.msra.mxu0 0.0
    %1992 = vmatpush.msra.mxu0 0.0
    %1993 = vmatpush.msra.mxu0 0.0
    %1994 = vmatpush.msra.mxu0 0.0
    %1995 = vmatpush.msra.mxu0 0.0
    %1996 = vmatpush.msra.mxu0 0.0
    %1997 = vmatpush.msra.mxu0 0.0
    %1998 = vmatpush.msra.mxu0 0.0
    %1999 = vmatpush.msra.mxu0 0.0
    %2000 = vmatpush.msra.mxu0 0.0
    %2001 = vmatpush.msra.mxu0 0.0
    %2002 = vmatpush.msra.mxu0 0.0
    %2003 = vmatpush.msra.mxu0 %v1790
    %2004 = vmatmul.f32.gmra.mxu0 %v1986
    %v2005 = vpop.f32.mrf.mxu0
    %v2006 = vadd.f32 0.0, %v2005
    %2007 = vdwg.mxu0
    %v2009 = vsel %vm352, %v1938, 0
    %2011 = vmatpush.msra.mxu0 0.0
    %2012 = vmatpush.msra.mxu0 0.0
    %2013 = vmatpush.msra.mxu0 0.0
    %2014 = vmatpush.msra.mxu0 0.0
    %2015 = vmatpush.msra.mxu0 0.0
    %2016 = vmatpush.msra.mxu0 0.0
    %2017 = vmatpush.msra.mxu0 0.0
    %2018 = vmatpush.msra.mxu0 0.0
    %2019 = vmatpush.msra.mxu0 0.0
    %2020 = vmatpush.msra.mxu0 0.0
    %2021 = vmatpush.msra.mxu0 0.0
    %2022 = vmatpush.msra.mxu0 0.0
    %2023 = vmatpush.msra.mxu0 0.0
    %2024 = vmatpush.msra.mxu0 0.0
    %2025 = vmatpush.msra.mxu0 0.0
    %2026 = vmatpush.msra.mxu0 %v1793
    %2027 = vmatmul.f32.gmra.mxu0 %v2009
    %v2028 = vpop.f32.mrf.mxu0
    %v2029 = vadd.f32 0.0, %v2028
    %2030 = vdwg.mxu0
    %s2031 = scalar_lea.vmem %s10, 48
    %v2032 = vld [vmem:[%s2031] sm:$0xff]
    %v2033 = vld [vmem:[%s2031 + $0x8] sm:$0xff]
    %v2038 = vrot.slane %v1983, 7
    %v2039 = vsel %vm1287, %v2038, %v1960
    %v2040 = vrot.slane %v2006, 6
    %v2041 = vsel %vm1290, %v2040, %v2039
    %v2042 = vrot.slane %v2029, 5
    %v2043 = vsel %vm1293, %v2042, %v2041
    %v2044 = vsel %vm81, %v2043, 0
    %2046 = vmatpush.msra.mxu0 0.0
    %2047 = vmatpush.msra.mxu0 0.0
    %2048 = vmatpush.msra.mxu0 0.0
    %2049 = vmatpush.msra.mxu0 0.0
    %2050 = vmatpush.msra.mxu0 0.0
    %2051 = vmatpush.msra.mxu0 0.0
    %2052 = vmatpush.msra.mxu0 0.0
    %2053 = vmatpush.msra.mxu0 0.0
    %2054 = vmatpush.msra.mxu0 0.0
    %2055 = vmatpush.msra.mxu0 0.0
    %2056 = vmatpush.msra.mxu0 0.0
    %2057 = vmatpush.msra.mxu0 0.0
    %2058 = vmatpush.msra.mxu0 0.0
    %2059 = vmatpush.msra.mxu0 0.0
    %2060 = vmatpush.msra.mxu0 %v2033
    %2061 = vmatpush.msra.mxu0 %v2032
    %2062 = vmatmul.f32.gmra.mxu0 %v2044
    %v2063 = vpop.f32.mrf.mxu0
    %v2064 = vadd.f32 0.0, %v2063
    %2065 = vdwg.mxu0
    %v2066 = vadd.f32 %v1682, %v2064
    %v2068 = vrot.slane %v2066, 1
    %v2069 = vrot.slane %v2066, 2
    %v2070 = vrot.slane %v2066, 3
    %v2071 = vrot.slane %v2066, 4
    %v2076 = vadd.f32 %v1265, %v2068
    %v2077 = vadd.f32 %v1266, %v2069
    %v2078 = vadd.f32 %v1267, %v2070
    %v2079 = vadd.f32 %v1268, %v2071
    %s2080 = scalar_lea.vmem %s16, 1
    %v2081 = vld [vmem:[%s2080] sm:$0x1]
    %s2082 = scalar_lea.vmem %s17, 1
    %v2083 = vld [vmem:[%s2082] sm:$0x1]
    %v2088 = vrot.slane %v2077, 7
    %v2089 = vrot.slane %v2078, 6
    %v2090 = vsel %vm1287, %v2089, %v2088
    %v2091 = vrot.slane %v2079, 5
    %v2092 = vsel %vm1290, %v2091, %v2090
    %vm2095 = vcmask 261127
    %v2096 = vsel %vm2095, %v2076, 0.0
    %2097 = vadd.xlane.f32.xlu0 %v2096
    %v2098 = vpop.xlane.xlu0 %2097
    %vm2099 = vcmask 256000
    %v2100 = vsel %vm2099, %v2092, 0.0
    %2101 = vadd.xlane.f32.xlu0 %v2100
    %v2102 = vpop.xlane.xlu0 %2101
    %v2103 = vmul.f32 %v2098, %v968
    %v2104 = vmul.f32 %v2102, %v968
    %v2107 = vrot.slane %v2104, 1
    %v2108 = vrot.slane %v2104, 2
    %v2109 = vrot.slane %v2104, 3
    %v2114 = vsub.f32 %v2076, %v2103
    %v2115 = vsub.f32 %v2077, %v2107
    %v2116 = vsub.f32 %v2078, %v2108
    %v2117 = vsub.f32 %v2079, %v2109
    %v2118 = vmul.f32 %v2114, %v2114
    %v2119 = vmul.f32 %v2115, %v2115
    %v2120 = vmul.f32 %v2116, %v2116
    %v2121 = vmul.f32 %v2117, %v2117
    %v2126 = vrot.slane %v2119, 7
    %v2127 = vrot.slane %v2120, 6
    %v2128 = vsel %vm1287, %v2127, %v2126
    %v2129 = vrot.slane %v2121, 5
    %v2130 = vsel %vm1290, %v2129, %v2128
    %v2133 = vsel %vm2095, %v2118, 0.0
    %2134 = vadd.xlane.f32.xlu0 %v2133
    %v2135 = vpop.xlane.xlu0 %2134
    %v2136 = vsel %vm2099, %v2130, 0.0
    %2137 = vadd.xlane.f32.xlu0 %v2136
    %v2138 = vpop.xlane.xlu0 %2137
    %v2139 = vmul.f32 %v2135, %v968
    %v2140 = vmul.f32 %v2138, %v968
    %v2141 = vadd.f32 %v2139, 1e-05
    %v2142 = vadd.f32 %v2140, 1e-05
    %v2143 = vrsqrt.pop %v2141
    %v2144 = vmul.f32 %v2143, %v2141
    %v2145 = vmul.f32 %v2144, %v2143
    %v2146 = vmul.f32 0.5, %v2145
    %v2147 = vsub.f32 1.5, %v2146
    %v2148 = vmul.f32 %v2143, %v2147
    %vm2149 = vweird.f32 %v2141
    %vm2150 = vweird.f32 %v2143
    %vm2151 = vmor %vm2149, %vm2150
    %v2152 = vsel %vm2151, %v2143, %v2148
    %v2153 = vrsqrt.pop %v2142
    %v2154 = vmul.f32 %v2153, %v2142
    %v2155 = vmul.f32 %v2154, %v2153
    %v2156 = vmul.f32 0.5, %v2155
    %v2157 = vsub.f32 1.5, %v2156
    %v2158 = vmul.f32 %v2153, %v2157
    %vm2159 = vweird.f32 %v2142
    %vm2160 = vweird.f32 %v2153
    %vm2161 = vmor %vm2159, %vm2160
    %v2162 = vsel %vm2161, %v2153, %v2158
    %v2165 = vrot.slane %v2162, 1
    %v2166 = vrot.slane %v2162, 2
    %v2167 = vrot.slane %v2162, 3
    %v2172 = vmul.f32 %v2114, %v2152
    %v2173 = vmul.f32 %v2115, %v2165
    %v2174 = vmul.f32 %v2116, %v2166
    %v2175 = vmul.f32 %v2117, %v2167
    %v2177 = vperm.slane %v2081, 0
    %v2179 = vmul.f32 %v2172, %v2177
    %v2180 = vmul.f32 %v2173, %v2177
    %v2181 = vmul.f32 %v2174, %v2177
    %v2182 = vmul.f32 %v2175, %v2177
    %v2184 = vperm.slane %v2083, 0
    %v2186 = vadd.f32 %v2179, %v2184
    %v2187 = vadd.f32 %v2180, %v2184
    %v2188 = vadd.f32 %v2181, %v2184
    %v2189 = vadd.f32 %v2182, %v2184
    %s2190 = scalar_lea.vmem %s12, 32
    %v2191 = vld [vmem:[%s2190] sm:$0xff]
    %v2192 = vld [vmem:[%s2190 + $0x8] sm:$0xff]
    %v2193 = vld [vmem:[%s2190 + $0x10] sm:$0xff]
    %v2194 = vld [vmem:[%s2190 + $0x18] sm:$0xff]
    %s2195 = scalar_lea.vmem %s13, 1
    %v2196 = vld [vmem:[%s2195] sm:$0x1]
    %v2198 = vperm.slane %v2196, 0
    %v2204 = vrot.slane %v2186, 7
    %v2205 = vrot.slane %v2187, 6
    %v2206 = vsel %vm1287, %v2205, %v2204
    %v2207 = vrot.slane %v2188, 5
    %v2208 = vsel %vm1290, %v2207, %v2206
    %v2209 = vrot.slane %v2189, 4
    %v2210 = vsel %vm1293, %v2209, %v2208
    %v2211 = vsel %vm132, %v2210, 0
    %2213 = vmatpush.msra.mxu0 0.0
    %2214 = vmatpush.msra.mxu0 0.0
    %2215 = vmatpush.msra.mxu0 0.0
    %2216 = vmatpush.msra.mxu0 0.0
    %2217 = vmatpush.msra.mxu0 0.0
    %2218 = vmatpush.msra.mxu0 0.0
    %2219 = vmatpush.msra.mxu0 0.0
    %2220 = vmatpush.msra.mxu0 0.0
    %2221 = vmatpush.msra.mxu0 0.0
    %2222 = vmatpush.msra.mxu0 0.0
    %2223 = vmatpush.msra.mxu0 0.0
    %2224 = vmatpush.msra.mxu0 0.0
    %2225 = vmatpush.msra.mxu0 %v2194
    %2226 = vmatpush.msra.mxu0 %v2193
    %2227 = vmatpush.msra.mxu0 %v2192
    %2228 = vmatpush.msra.mxu0 %v2191
    %2229 = vmatmul.f32.gmra.mxu0 %v2211
    %v2230 = vpop.f32.mrf.mxu0
    %v2231 = vadd.f32 %v2198, %v2230
    %2232 = vdwg.mxu0
    %v2233 = vmax.f32 %v2231, 0.0
    %s2234 = scalar_lea.vmem %s14, 128
    %v2235 = vld [vmem:[%s2234] sm:$0xff]
    %v2236 = vld [vmem:[%s2234 + $0x8] sm:$0xff]
    %v2237 = vld [vmem:[%s2234 + $0x10] sm:$0xff]
    %v2238 = vld [vmem:[%s2234 + $0x18] sm:$0xff]
    %v2239 = vld [vmem:[%s2234 + $0x20] sm:$0xff]
    %v2240 = vld [vmem:[%s2234 + $0x28] sm:$0xff]
    %v2241 = vld [vmem:[%s2234 + $0x30] sm:$0xff]
    %v2242 = vld [vmem:[%s2234 + $0x38] sm:$0xff]
    %v2243 = vld [vmem:[%s2234 + $0x40] sm:$0xff]
    %v2244 = vld [vmem:[%s2234 + $0x48] sm:$0xff]
    %v2245 = vld [vmem:[%s2234 + $0x50] sm:$0xff]
    %v2246 = vld [vmem:[%s2234 + $0x58] sm:$0xff]
    %v2247 = vld [vmem:[%s2234 + $0x60] sm:$0xff]
    %v2248 = vld [vmem:[%s2234 + $0x68] sm:$0xff]
    %v2249 = vld [vmem:[%s2234 + $0x70] sm:$0xff]
    %v2250 = vld [vmem:[%s2234 + $0x78] sm:$0xff]
    %s2251 = scalar_lea.vmem %s15, 1
    %v2252 = vld [vmem:[%s2251] sm:$0x1]
    %v2254 = vperm.slane %v2252, 0
    %2256 = vmatpush.msra.mxu0 %v2250
    %2257 = vmatpush.msra.mxu0 %v2249
    %2258 = vmatpush.msra.mxu0 %v2248
    %2259 = vmatpush.msra.mxu0 %v2247
    %2260 = vmatpush.msra.mxu0 %v2246
    %2261 = vmatpush.msra.mxu0 %v2245
    %2262 = vmatpush.msra.mxu0 %v2244
    %2263 = vmatpush.msra.mxu0 %v2243
    %2264 = vmatpush.msra.mxu0 %v2242
    %2265 = vmatpush.msra.mxu0 %v2241
    %2266 = vmatpush.msra.mxu0 %v2240
    %2267 = vmatpush.msra.mxu0 %v2239
    %2268 = vmatpush.msra.mxu0 %v2238
    %2269 = vmatpush.msra.mxu0 %v2237
    %2270 = vmatpush.msra.mxu0 %v2236
    %2271 = vmatpush.msra.mxu0 %v2235
    %2272 = vmatmul.f32.gmra.mxu0 %v2233
    %v2273 = vpop.f32.mrf.mxu0
    %v2274 = vadd.f32 %v2254, %v2273
    %2275 = vdwg.mxu0
    %v2277 = vrot.slane %v2274, 1
    %v2278 = vrot.slane %v2274, 2
    %v2279 = vrot.slane %v2274, 3
    %v2280 = vrot.slane %v2274, 4
    %v2285 = vadd.f32 %v2186, %v2277
    %v2286 = vadd.f32 %v2187, %v2278
    %v2287 = vadd.f32 %v2188, %v2279
    %v2288 = vadd.f32 %v2189, %v2280
    %s2289 = scalar_lea.vmem %s18, 1
    %v2290 = vld [vmem:[%s2289] sm:$0x1]
    %s2291 = scalar_lea.vmem %s19, 1
    %v2292 = vld [vmem:[%s2291] sm:$0x1]
    %v2297 = vrot.slane %v2286, 7
    %v2298 = vrot.slane %v2287, 6
    %v2299 = vsel %vm1287, %v2298, %v2297
    %v2300 = vrot.slane %v2288, 5
    %v2301 = vsel %vm1290, %v2300, %v2299
    %v2304 = vsel %vm2095, %v2285, 0.0
    %2305 = vadd.xlane.f32.xlu0 %v2304
    %v2306 = vpop.xlane.xlu0 %2305
    %v2307 = vsel %vm2099, %v2301, 0.0
    %2308 = vadd.xlane.f32.xlu0 %v2307
    %v2309 = vpop.xlane.xlu0 %2308
    %v2310 = vmul.f32 %v2306, %v968
    %v2311 = vmul.f32 %v2309, %v968
    %v2314 = vrot.slane %v2311, 1
    %v2315 = vrot.slane %v2311, 2
    %v2316 = vrot.slane %v2311, 3
    %v2321 = vsub.f32 %v2285, %v2310
    %v2322 = vsub.f32 %v2286, %v2314
    %v2323 = vsub.f32 %v2287, %v2315
    %v2324 = vsub.f32 %v2288, %v2316
    %v2325 = vmul.f32 %v2321, %v2321
    %v2326 = vmul.f32 %v2322, %v2322
    %v2327 = vmul.f32 %v2323, %v2323
    %v2328 = vmul.f32 %v2324, %v2324
    %v2333 = vrot.slane %v2326, 7
    %v2334 = vrot.slane %v2327, 6
    %v2335 = vsel %vm1287, %v2334, %v2333
    %v2336 = vrot.slane %v2328, 5
    %v2337 = vsel %vm1290, %v2336, %v2335
    %v2340 = vsel %vm2095, %v2325, 0.0
    %2341 = vadd.xlane.f32.xlu0 %v2340
    %v2342 = vpop.xlane.xlu0 %2341
    %v2343 = vsel %vm2099, %v2337, 0.0
    %2344 = vadd.xlane.f32.xlu0 %v2343
    %v2345 = vpop.xlane.xlu0 %2344
    %v2346 = vmul.f32 %v2342, %v968
    %v2347 = vmul.f32 %v2345, %v968
    %v2348 = vadd.f32 %v2346, 1e-05
    %v2349 = vadd.f32 %v2347, 1e-05
    %v2350 = vrsqrt.pop %v2348
    %v2351 = vmul.f32 %v2350, %v2348
    %v2352 = vmul.f32 %v2351, %v2350
    %v2353 = vmul.f32 0.5, %v2352
    %v2354 = vsub.f32 1.5, %v2353
    %v2355 = vmul.f32 %v2350, %v2354
    %vm2356 = vweird.f32 %v2348
    %vm2357 = vweird.f32 %v2350
    %vm2358 = vmor %vm2356, %vm2357
    %v2359 = vsel %vm2358, %v2350, %v2355
    %v2360 = vrsqrt.pop %v2349
    %v2361 = vmul.f32 %v2360, %v2349
    %v2362 = vmul.f32 %v2361, %v2360
    %v2363 = vmul.f32 0.5, %v2362
    %v2364 = vsub.f32 1.5, %v2363
    %v2365 = vmul.f32 %v2360, %v2364
    %vm2366 = vweird.f32 %v2349
    %vm2367 = vweird.f32 %v2360
    %vm2368 = vmor %vm2366, %vm2367
    %v2369 = vsel %vm2368, %v2360, %v2365
    %v2372 = vrot.slane %v2369, 1
    %v2373 = vrot.slane %v2369, 2
    %v2374 = vrot.slane %v2369, 3
    %v2379 = vmul.f32 %v2321, %v2359
    %v2380 = vmul.f32 %v2322, %v2372
    %v2381 = vmul.f32 %v2323, %v2373
    %v2382 = vmul.f32 %v2324, %v2374
    %v2384 = vperm.slane %v2290, 0
    %v2386 = vmul.f32 %v2379, %v2384
    %v2387 = vmul.f32 %v2380, %v2384
    %v2388 = vmul.f32 %v2381, %v2384
    %v2389 = vmul.f32 %v2382, %v2384
    %v2391 = vperm.slane %v2292, 0
    %v2393 = vadd.f32 %v2386, %v2391
    %v2394 = vadd.f32 %v2387, %v2391
    %v2395 = vadd.f32 %v2388, %v2391
    %v2396 = vadd.f32 %v2389, %v2391
    %2397 = vst.msk [vmem:[#allocation2 - $0x7] sm:$0x80] %vm2095, %v2393
    %2398 = vst.msk [vmem:[#allocation2 - $0x6] sm:$0x80] %vm2095, %v2394
    %2399 = vst.msk [vmem:[#allocation2 - $0x5] sm:$0x80] %vm2095, %v2395
    %2400 = vst.msk [vmem:[#allocation2 - $0x4] sm:$0x80] %vm2095, %v2396
    // Predicated region
    $region82: #{tpu_custom_call.1} parent=1 // pred_check
      _
    $region83: #{tpu_custom_call.1} parent=1 // pred_check_branch
      %2402 = sbr.rel (0) target = $region85
    $region84: #{tpu_custom_call.1} parent=1 // pred_region
      %2404 = vsyncadd [#allocation3], 0
      %s2405 = sshll.u32 [#allocation2], 4
      %s2406 = int_to_ptr.vmem [resolvable:$true] %s2405
      %s2407 = sshll.u32 %s20, 4
      %s2408 = int_to_ptr.hbm [resolvable:$true] %s2407
      %2413 = dma.vmem_to_hbm [thread:$0]  %s2406, 64, %s2408, [#allocation3], 16, 16, 1
    $region85: #{tpu_custom_call.1} parent=1 // pred_fallthru
      _
    // Predicated region
    $region86: #{tpu_custom_call.1} parent=1 // pred_check
      _
    $region87: #{tpu_custom_call.1} parent=1 // pred_check_branch
      %2415 = sbr.rel (0) target = $region89
    $region88: #{tpu_custom_call.1} parent=1 // pred_region
      %2417 = dma.done [#allocation3], 64
    $region89: #{tpu_custom_call.1} parent=1 // pred_fallthru
      _
    %2418 = vsyncpa [#allocation3], 1

</llo_original>
